<compile_context>
chip_gen: v7x
topology: tpu7x:2x2x1
jax: 0.10.0
libtpu: 0.0.40
codegen_flags: <defaults>
</compile_context>

<pallas_src>
import functools

import numpy as np
import jax
import jax.numpy as jnp
from jax.experimental import pallas as pl
from jax.experimental.pallas import tpu as pltpu

LEAKY_SLOPE = 0.01   # nn.LeakyReLU default
BN_EPS = 1e-5        # nn.BatchNorm2d default


# --------------------------------------------------------------------------
# Fused Pallas kernel: all 4 convs + folded BN + LeakyReLU + AvgPool per image
# --------------------------------------------------------------------------
def _fused_conv_kernel(x_ref,
                       w1_ref, w2_ref, w3_ref, w4_ref,
                       s1_ref, b1_ref, s2_ref, b2_ref,
                       s3_ref, b3_ref, s4_ref, b4_ref,
                       pool_ref,
                       o_ref,
                       xp1_ref, xp2_ref, xp3_ref, xp4_ref,
                       *, H, W):
    """One grid step == one image; all intermediate activations stay in VMEM."""
    H2, W2 = H // 2, W // 2

    # Zero the padded scratch buffers (halo must be 0; scratch is not
    # zero-initialised and may be per-core, so re-zero every step — it is only
    # a handful of vector stores).
    xp1_ref[...] = jnp.zeros_like(xp1_ref)
    xp2_ref[...] = jnp.zeros_like(xp2_ref)
    xp3_ref[...] = jnp.zeros_like(xp3_ref)
    xp4_ref[...] = jnp.zeros_like(xp4_ref)

    def im2col(pad_ref, hh, ww, cin):
        # (hh*ww, 9*cin) patch matrix; column order (kh, kw, cin) matches the
        # host-side weight reshape HWIO (3,3,cin,cout) -> (9*cin, cout).
        cols = [pad_ref[kh:kh + hh, kw:kw + ww, :].reshape(hh * ww, cin)
                for kh in range(3) for kw in range(3)]
        return jnp.concatenate(cols, axis=1)

    def conv_block(pad_ref, hh, ww, cin, w_ref, s_ref, b_ref, act):
        patches = im2col(pad_ref, hh, ww, cin)
        y = jnp.dot(patches, w_ref[...], preferred_element_type=jnp.float32)
        y = y * s_ref[...] + b_ref[...]                 # conv bias + BN folded
        if act:
            y = jnp.where(y >= 0, y, LEAKY_SLOPE * y)   # LeakyReLU
        return y

    # Stage the input image into the padded VMEM scratch (interior only;
    # halo stays zero).
    xp1_ref[1:H + 1, 1:W + 1, :] = x_ref[0]

    # layer1 / conv1: 1 -> 32
    y = conv_block(xp1_ref, H, W, 1, w1_ref, s1_ref, b1_ref, act=True)
    xp2_ref[1:H + 1, 1:W + 1, :] = y.reshape(H, W, 32)

    # layer1 / conv2: 32 -> 64, then AvgPool2d(2, 2) as a pooling matmul
    y = conv_block(xp2_ref, H, W, 32, w2_ref, s2_ref, b2_ref, act=True)
    y = jnp.dot(pool_ref[...], y, preferred_element_type=jnp.float32)
    xp3_ref[1:H2 + 1, 1:W2 + 1, :] = y.reshape(H2, W2, 64)

    # layer2 / conv1: 64 -> 32
    y = conv_block(xp3_ref, H2, W2, 64, w3_ref, s3_ref, b3_ref, act=True)
    xp4_ref[1:H2 + 1, 1:W2 + 1, :] = y.reshape(H2, W2, 32)

    # layer2 / conv2: 32 -> 8 (no BN, no activation; s4 == 1, b4 == conv bias)
    y = conv_block(xp4_ref, H2, W2, 32, w4_ref, s4_ref, b4_ref, act=False)
    o_ref[0] = y                                        # (H2*W2, 8)


def make_pool_matrix(H, W):
    """(H/2*W/2, H*W) matrix implementing AvgPool2d(2, 2) on flattened HW."""
    Ho, Wo = H // 2, W // 2
    P = np.zeros((Ho * Wo, H * W), np.float32)
    for ho in range(Ho):
        for wo in range(Wo):
            for dh in range(2):
                for dw in range(2):
                    P[ho * Wo + wo, (2 * ho + dh) * W + (2 * wo + dw)] = 0.25
    return jnp.asarray(P)


@jax.jit
def conv_forward(x_nchw, p):
    """Fused forward.  x_nchw: (N, 1, H, W) f32 -> (N, 8 * H/2 * W/2)."""
    x = jnp.transpose(x_nchw, (0, 2, 3, 1)).astype(jnp.float32)   # NCHW -> NHWC
    N, H, W, Cin = x.shape
    H2, W2 = H // 2, W // 2
    pool = make_pool_matrix(H, W)

    # im2col weight layout: HWIO (3,3,Cin,Cout) -> (9*Cin, Cout)
    w1 = p['w1'].reshape(9 * 1, 32)
    w2 = p['w2'].reshape(9 * 32, 64)
    w3 = p['w3'].reshape(9 * 64, 32)
    w4 = p['w4'].reshape(9 * 32, 8)
    s1, b1 = p['s1'].reshape(1, 32), p['b1'].reshape(1, 32)
    s2, b2 = p['s2'].reshape(1, 64), p['b2'].reshape(1, 64)
    s3, b3 = p['s3'].reshape(1, 32), p['b3'].reshape(1, 32)
    s4, b4 = p['s4'].reshape(1, 8), p['b4'].reshape(1, 8)

    kernel = functools.partial(_fused_conv_kernel, H=H, W=W)

    def whole(arr):
        nd = arr.ndim
        return pl.BlockSpec(arr.shape, lambda n, _nd=nd: (0,) * _nd)

    in_specs = [
        pl.BlockSpec((1, H, W, Cin), lambda n: (n, 0, 0, 0)),
        whole(w1), whole(w2), whole(w3), whole(w4),
        whole(s1), whole(b1), whole(s2), whole(b2),
        whole(s3), whole(b3), whole(s4), whole(b4),
        whole(pool),
    ]

    flops = 2 * N * (H * W * 9 * 1 * 32
                     + H * W * 9 * 32 * 64
                     + H2 * W2 * H * W * 64            # pooling matmul
                     + H2 * W2 * 9 * 64 * 32
                     + H2 * W2 * 9 * 32 * 8)
    bytes_accessed = 4 * (x.size + w1.size + w2.size + w3.size + w4.size
                          + pool.size + 2 * (32 + 64 + 32 + 8)
                          + N * H2 * W2 * 8)

    out = pl.pallas_call(
        kernel,
        out_shape=jax.ShapeDtypeStruct((N, H2 * W2, 8), jnp.float32),
        grid=(N,),
        in_specs=in_specs,
        out_specs=pl.BlockSpec((1, H2 * W2, 8), lambda n: (n, 0, 0)),
        scratch_shapes=[
            pltpu.VMEM((H + 2, W + 2, 1), jnp.float32),    # padded input
            pltpu.VMEM((H + 2, W + 2, 32), jnp.float32),   # padded act 1
            pltpu.VMEM((H2 + 2, W2 + 2, 64), jnp.float32),  # padded pooled act
            pltpu.VMEM((H2 + 2, W2 + 2, 32), jnp.float32),  # padded act 3
        ],
        compiler_params=pltpu.CompilerParams(dimension_semantics=("parallel",)),
        cost_estimate=pl.CostEstimate(flops=int(flops), transcendentals=0,
                                      bytes_accessed=int(bytes_accessed)),
    )(x, w1, w2, w3, w4, s1, b1, s2, b2, s3, b3, s4, b4, pool)

    # (N, H2*W2, 8) -> NCHW-flattened (N, 8*H2*W2) to match out.view(N, -1).
    return jnp.transpose(out, (0, 2, 1)).reshape(N, -1)


# --------------------------------------------------------------------------
# Parameter construction (deterministic, synthetic) + BN/bias folding
# --------------------------------------------------------------------------
def init_params(key):
    def conv_init(k, cin, cout):
        k1, k2 = jax.random.split(k)
        w = jax.random.normal(k1, (3, 3, cin, cout), jnp.float32) / np.sqrt(9 * cin)
        b = 0.1 * jax.random.normal(k2, (cout,), jnp.float32)
        return w, b

    def bn_init(k, c):
        k1, k2, k3, k4 = jax.random.split(k, 4)
        gamma = 1.0 + 0.1 * jax.random.normal(k1, (c,), jnp.float32)
        beta = 0.1 * jax.random.normal(k2, (c,), jnp.float32)
        mean = 0.1 * jax.random.normal(k3, (c,), jnp.float32)
        var = 0.5 + jnp.abs(jax.random.normal(k4, (c,), jnp.float32))
        return gamma, beta, mean, var

    ks = jax.random.split(key, 7)
    raw = {}
    raw['w1'], raw['cb1'] = conv_init(ks[0], 1, 32)
    raw['bn1'] = bn_init(ks[1], 32)
    raw['w2'], raw['cb2'] = conv_init(ks[2], 32, 64)
    raw['bn2'] = bn_init(ks[3], 64)
    raw['w3'], raw['cb3'] = conv_init(ks[4], 64, 32)
    raw['bn3'] = bn_init(ks[5], 32)
    raw['w4'], raw['cb4'] = conv_init(ks[6], 32, 8)

    def fold(cb, bn):
        if bn is None:
            return jnp.ones_like(cb), cb
        g, be, m, v = bn
        s = g / jnp.sqrt(v + BN_EPS)
        return s, be + (cb - m) * s

    folded = {'w1': raw['w1'], 'w2': raw['w2'], 'w3': raw['w3'], 'w4': raw['w4']}
    folded['s1'], folded['b1'] = fold(raw['cb1'], raw['bn1'])
    folded['s2'], folded['b2'] = fold(raw['cb2'], raw['bn2'])
    folded['s3'], folded['b3'] = fold(raw['cb3'], raw['bn3'])
    folded['s4'], folded['b4'] = fold(raw['cb4'], None)
    return raw, folded


# --------------------------------------------------------------------------
# Pure-JAX reference (matches the PyTorch module semantics)
# --------------------------------------------------------------------------
def reference_forward(x_nchw, raw):
    x = jnp.transpose(x_nchw, (0, 2, 3, 1)).astype(jnp.float32)

    def block(x, w, b, bn, act):
        y = jax.lax.conv_general_dilated(
            x, w, (1, 1), 'SAME',
            dimension_numbers=('NHWC', 'HWIO', 'NHWC')) + b
        if bn is not None:
            g, be, m, v = bn
            y = (y - m) / jnp.sqrt(v + BN_EPS) * g + be
        if act:
            y = jnp.where(y >= 0, y, LEAKY_SLOPE * y)
        return y

    y = block(x, raw['w1'], raw['cb1'], raw['bn1'], True)
    y = block(y, raw['w2'], raw['cb2'], raw['bn2'], True)
    N, H, W, C = y.shape
    y = y.reshape(N, H // 2, 2, W // 2, 2, C).mean(axis=(2, 4))   # AvgPool2d(2, 2)
    y = block(y, raw['w3'], raw['cb3'], raw['bn3'], True)
    y = block(y, raw['w4'], raw['cb4'], None, False)
    return jnp.transpose(y, (0, 3, 1, 2)).reshape(N, -1)


if __name__ == "__main__":
    key = jax.random.PRNGKey(0)
    kx, kp = jax.random.split(key)
    # small input consistent with the module: batch=2, 1 channel, 16x16 spatial
    x = jax.random.normal(kx, (2, 1, 16, 16), jnp.float32)

    raw, folded = init_params(kp)

    feats = jax.block_until_ready(conv_forward(x, folded))
    ref = jax.block_until_ready(reference_forward(x, raw))

    assert feats.shape == (2, 8 * 8 * 8), feats.shape
    np.testing.assert_allclose(np.asarray(feats), np.asarray(ref),
                               rtol=1e-3, atol=1e-3)
    print("KERNEL_OK")
</pallas_src>

<mosaic_0001>
module attributes {stable_mosaic.version = 11 : i64} {
  func.func @_fused_conv_kernel(%arg0: i32, %arg1: memref<1x16x16x1xf32, #tpu.memory_space<vmem>>, %arg2: memref<9x32xf32, #tpu.memory_space<vmem>>, %arg3: memref<288x64xf32, #tpu.memory_space<vmem>>, %arg4: memref<576x32xf32, #tpu.memory_space<vmem>>, %arg5: memref<288x8xf32, #tpu.memory_space<vmem>>, %arg6: memref<1x32xf32, #tpu.memory_space<vmem>>, %arg7: memref<1x32xf32, #tpu.memory_space<vmem>>, %arg8: memref<1x64xf32, #tpu.memory_space<vmem>>, %arg9: memref<1x64xf32, #tpu.memory_space<vmem>>, %arg10: memref<1x32xf32, #tpu.memory_space<vmem>>, %arg11: memref<1x32xf32, #tpu.memory_space<vmem>>, %arg12: memref<1x8xf32, #tpu.memory_space<vmem>>, %arg13: memref<1x8xf32, #tpu.memory_space<vmem>>, %arg14: memref<64x256xf32, #tpu.memory_space<vmem>>, %arg15: memref<1x64x8xf32, #tpu.memory_space<vmem>>, %arg16: memref<18x18x1xf32, #tpu.memory_space<vmem>>, %arg17: memref<18x18x32xf32, #tpu.memory_space<vmem>>, %arg18: memref<10x10x64xf32, #tpu.memory_space<vmem>>, %arg19: memref<10x10x32xf32, #tpu.memory_space<vmem>>) attributes {dimension_semantics = [#tpu.dimension_semantics<parallel>], iteration_bounds = array<i64: 2>, scalar_prefetch = 0 : i64, scratch_operands = 4 : i64, tpu.core_type = #tpu.core_type<tc>, window_params = [{transform_indices = @transform_0, window_bounds = array<i64: 1, 16, 16, 1>}, {pipeline_mode = #tpu.pipeline_mode<synchronous>, transform_indices = @transform_1, window_bounds = array<i64: 9, 32>}, {pipeline_mode = #tpu.pipeline_mode<synchronous>, transform_indices = @transform_2, window_bounds = array<i64: 288, 64>}, {pipeline_mode = #tpu.pipeline_mode<synchronous>, transform_indices = @transform_3, window_bounds = array<i64: 576, 32>}, {pipeline_mode = #tpu.pipeline_mode<synchronous>, transform_indices = @transform_4, window_bounds = array<i64: 288, 8>}, {pipeline_mode = #tpu.pipeline_mode<synchronous>, transform_indices = @transform_5, window_bounds = array<i64: 1, 32>}, {pipeline_mode = #tpu.pipeline_mode<synchronous>, transform_indices = @transform_6, window_bounds = array<i64: 1, 32>}, {pipeline_mode = #tpu.pipeline_mode<synchronous>, transform_indices = @transform_7, window_bounds = array<i64: 1, 64>}, {pipeline_mode = #tpu.pipeline_mode<synchronous>, transform_indices = @transform_8, window_bounds = array<i64: 1, 64>}, {pipeline_mode = #tpu.pipeline_mode<synchronous>, transform_indices = @transform_9, window_bounds = array<i64: 1, 32>}, {pipeline_mode = #tpu.pipeline_mode<synchronous>, transform_indices = @transform_10, window_bounds = array<i64: 1, 32>}, {pipeline_mode = #tpu.pipeline_mode<synchronous>, transform_indices = @transform_11, window_bounds = array<i64: 1, 8>}, {pipeline_mode = #tpu.pipeline_mode<synchronous>, transform_indices = @transform_12, window_bounds = array<i64: 1, 8>}, {pipeline_mode = #tpu.pipeline_mode<synchronous>, transform_indices = @transform_13, window_bounds = array<i64: 64, 256>}, {transform_indices = @transform_14, window_bounds = array<i64: 1, 64, 8>}]} {
    %cst = arith.constant 0.000000e+00 : f32
    %0 = vector.broadcast %cst : f32 to vector<18x18x1xf32>
    %c0 = arith.constant 0 : index
    %c0_0 = arith.constant 0 : index
    %c0_1 = arith.constant 0 : index
    %1 = vector.load %arg16[%c0, %c0_0, %c0_1] : memref<18x18x1xf32, #tpu.memory_space<vmem>>, vector<18x18x1xf32>
    tpu.vector_store %arg16[%c0, %c0_0, %c0_1], %0 {strides = array<i32>} : memref<18x18x1xf32, #tpu.memory_space<vmem>>, vector<18x18x1xf32>,
    %cst_2 = arith.constant 0.000000e+00 : f32
    %2 = vector.broadcast %cst_2 : f32 to vector<18x18x32xf32>
    %c0_3 = arith.constant 0 : index
    %c0_4 = arith.constant 0 : index
    %c0_5 = arith.constant 0 : index
    %3 = vector.load %arg17[%c0_3, %c0_4, %c0_5] : memref<18x18x32xf32, #tpu.memory_space<vmem>>, vector<18x18x32xf32>
    tpu.vector_store %arg17[%c0_3, %c0_4, %c0_5], %2 {strides = array<i32>} : memref<18x18x32xf32, #tpu.memory_space<vmem>>, vector<18x18x32xf32>,
    %cst_6 = arith.constant 0.000000e+00 : f32
    %4 = vector.broadcast %cst_6 : f32 to vector<10x10x64xf32>
    %c0_7 = arith.constant 0 : index
    %c0_8 = arith.constant 0 : index
    %c0_9 = arith.constant 0 : index
    %5 = vector.load %arg18[%c0_7, %c0_8, %c0_9] : memref<10x10x64xf32, #tpu.memory_space<vmem>>, vector<10x10x64xf32>
    tpu.vector_store %arg18[%c0_7, %c0_8, %c0_9], %4 {strides = array<i32>} : memref<10x10x64xf32, #tpu.memory_space<vmem>>, vector<10x10x64xf32>,
    %cst_10 = arith.constant 0.000000e+00 : f32
    %6 = vector.broadcast %cst_10 : f32 to vector<10x10x32xf32>
    %c0_11 = arith.constant 0 : index
    %c0_12 = arith.constant 0 : index
    %c0_13 = arith.constant 0 : index
    %7 = vector.load %arg19[%c0_11, %c0_12, %c0_13] : memref<10x10x32xf32, #tpu.memory_space<vmem>>, vector<10x10x32xf32>
    tpu.vector_store %arg19[%c0_11, %c0_12, %c0_13], %6 {strides = array<i32>} : memref<10x10x32xf32, #tpu.memory_space<vmem>>, vector<10x10x32xf32>,
    %c0_14 = arith.constant 0 : index
    %c0_15 = arith.constant 0 : index
    %c0_16 = arith.constant 0 : index
    %c0_17 = arith.constant 0 : index
    %8 = vector.load %arg1[%c0_14, %c0_15, %c0_16, %c0_17] : memref<1x16x16x1xf32, #tpu.memory_space<vmem>>, vector<1x16x16x1xf32>
    %9 = vector.shape_cast %8 : vector<1x16x16x1xf32> to vector<16x16x1xf32>
    %c1 = arith.constant 1 : index
    %c1_18 = arith.constant 1 : index
    %c0_19 = arith.constant 0 : index
    %10 = vector.load %arg16[%c1, %c1_18, %c0_19] : memref<18x18x1xf32, #tpu.memory_space<vmem>>, vector<16x16x1xf32>
    tpu.vector_store %arg16[%c1, %c1_18, %c0_19], %9 {strides = array<i32>} : memref<18x18x1xf32, #tpu.memory_space<vmem>>, vector<16x16x1xf32>,
    %c0_20 = arith.constant 0 : index
    %c0_21 = arith.constant 0 : index
    %c0_22 = arith.constant 0 : index
    %11 = vector.load %arg16[%c0_20, %c0_21, %c0_22] : memref<18x18x1xf32, #tpu.memory_space<vmem>>, vector<16x16x1xf32>
    %12 = vector.shape_cast %11 : vector<16x16x1xf32> to vector<256x1xf32>
    %c0_23 = arith.constant 0 : index
    %c1_24 = arith.constant 1 : index
    %c0_25 = arith.constant 0 : index
    %13 = vector.load %arg16[%c0_23, %c1_24, %c0_25] : memref<18x18x1xf32, #tpu.memory_space<vmem>>, vector<16x16x1xf32>
    %14 = vector.shape_cast %13 : vector<16x16x1xf32> to vector<256x1xf32>
    %c0_26 = arith.constant 0 : index
    %c2 = arith.constant 2 : index
    %c0_27 = arith.constant 0 : index
    %15 = vector.load %arg16[%c0_26, %c2, %c0_27] : memref<18x18x1xf32, #tpu.memory_space<vmem>>, vector<16x16x1xf32>
    %16 = vector.shape_cast %15 : vector<16x16x1xf32> to vector<256x1xf32>
    %c1_28 = arith.constant 1 : index
    %c0_29 = arith.constant 0 : index
    %c0_30 = arith.constant 0 : index
    %17 = vector.load %arg16[%c1_28, %c0_29, %c0_30] : memref<18x18x1xf32, #tpu.memory_space<vmem>>, vector<16x16x1xf32>
    %18 = vector.shape_cast %17 : vector<16x16x1xf32> to vector<256x1xf32>
    %c1_31 = arith.constant 1 : index
    %c1_32 = arith.constant 1 : index
    %c0_33 = arith.constant 0 : index
    %19 = vector.load %arg16[%c1_31, %c1_32, %c0_33] : memref<18x18x1xf32, #tpu.memory_space<vmem>>, vector<16x16x1xf32>
    %20 = vector.shape_cast %19 : vector<16x16x1xf32> to vector<256x1xf32>
    %c1_34 = arith.constant 1 : index
    %c2_35 = arith.constant 2 : index
    %c0_36 = arith.constant 0 : index
    %21 = vector.load %arg16[%c1_34, %c2_35, %c0_36] : memref<18x18x1xf32, #tpu.memory_space<vmem>>, vector<16x16x1xf32>
    %22 = vector.shape_cast %21 : vector<16x16x1xf32> to vector<256x1xf32>
    %c2_37 = arith.constant 2 : index
    %c0_38 = arith.constant 0 : index
    %c0_39 = arith.constant 0 : index
    %23 = vector.load %arg16[%c2_37, %c0_38, %c0_39] : memref<18x18x1xf32, #tpu.memory_space<vmem>>, vector<16x16x1xf32>
    %24 = vector.shape_cast %23 : vector<16x16x1xf32> to vector<256x1xf32>
    %c2_40 = arith.constant 2 : index
    %c1_41 = arith.constant 1 : index
    %c0_42 = arith.constant 0 : index
    %25 = vector.load %arg16[%c2_40, %c1_41, %c0_42] : memref<18x18x1xf32, #tpu.memory_space<vmem>>, vector<16x16x1xf32>
    %26 = vector.shape_cast %25 : vector<16x16x1xf32> to vector<256x1xf32>
    %c2_43 = arith.constant 2 : index
    %c2_44 = arith.constant 2 : index
    %c0_45 = arith.constant 0 : index
    %27 = vector.load %arg16[%c2_43, %c2_44, %c0_45] : memref<18x18x1xf32, #tpu.memory_space<vmem>>, vector<16x16x1xf32>
    %28 = vector.shape_cast %27 : vector<16x16x1xf32> to vector<256x1xf32>
    %29 = tpu.concatenate %12, %14, %16, %18, %20, %22, %24, %26, %28 in 1 : vector<256x1xf32>, vector<256x1xf32>, vector<256x1xf32>, vector<256x1xf32>, vector<256x1xf32>, vector<256x1xf32>, vector<256x1xf32>, vector<256x1xf32>, vector<256x1xf32> -> vector<256x9xf32>
    %c0_46 = arith.constant 0 : index
    %c0_47 = arith.constant 0 : index
    %30 = vector.load %arg2[%c0_46, %c0_47] : memref<9x32xf32, #tpu.memory_space<vmem>>, vector<9x32xf32>
    %cst_48 = arith.constant dense<0.000000e+00> : vector<256x32xf32>
    %31 = tpu.matmul %29, %30, %cst_48 {dimension_numbers = #tpu.dot_dimension_numbers<[1], [0], [0], [1], [0, 0, 1, 1], [], []>} : vector<256x9xf32>, vector<9x32xf32>, vector<256x32xf32> -> vector<256x32xf32>
    %c0_49 = arith.constant 0 : index
    %c0_50 = arith.constant 0 : index
    %32 = vector.load %arg6[%c0_49, %c0_50] : memref<1x32xf32, #tpu.memory_space<vmem>>, vector<1x32xf32>
    %33 = vector.broadcast %32 : vector<1x32xf32> to vector<256x32xf32>
    %34 = arith.mulf %31, %33 : vector<256x32xf32>
    %c0_51 = arith.constant 0 : index
    %c0_52 = arith.constant 0 : index
    %35 = vector.load %arg7[%c0_51, %c0_52] : memref<1x32xf32, #tpu.memory_space<vmem>>, vector<1x32xf32>
    %36 = vector.broadcast %35 : vector<1x32xf32> to vector<256x32xf32>
    %37 = arith.addf %34, %36 : vector<256x32xf32>
    %cst_53 = arith.constant 0.000000e+00 : f32
    %38 = vector.broadcast %cst_53 : f32 to vector<256x32xf32>
    %39 = arith.cmpf oge, %37, %38 : vector<256x32xf32>
    %cst_54 = arith.constant 0.00999999977 : f32
    %40 = vector.broadcast %cst_54 : f32 to vector<256x32xf32>
    %41 = arith.mulf %40, %37 : vector<256x32xf32>
    %42 = arith.select %39, %37, %41 : vector<256x32xi1>, vector<256x32xf32>
    %43 = vector.shape_cast %42 : vector<256x32xf32> to vector<16x16x32xf32>
    %c1_55 = arith.constant 1 : index
    %c1_56 = arith.constant 1 : index
    %c0_57 = arith.constant 0 : index
    %44 = vector.load %arg17[%c1_55, %c1_56, %c0_57] : memref<18x18x32xf32, #tpu.memory_space<vmem>>, vector<16x16x32xf32>
    tpu.vector_store %arg17[%c1_55, %c1_56, %c0_57], %43 {strides = array<i32>} : memref<18x18x32xf32, #tpu.memory_space<vmem>>, vector<16x16x32xf32>,
    %c0_58 = arith.constant 0 : index
    %c0_59 = arith.constant 0 : index
    %c0_60 = arith.constant 0 : index
    %45 = vector.load %arg17[%c0_58, %c0_59, %c0_60] : memref<18x18x32xf32, #tpu.memory_space<vmem>>, vector<16x16x32xf32>
    %46 = vector.shape_cast %45 : vector<16x16x32xf32> to vector<256x32xf32>
    %c0_61 = arith.constant 0 : index
    %c1_62 = arith.constant 1 : index
    %c0_63 = arith.constant 0 : index
    %47 = vector.load %arg17[%c0_61, %c1_62, %c0_63] : memref<18x18x32xf32, #tpu.memory_space<vmem>>, vector<16x16x32xf32>
    %48 = vector.shape_cast %47 : vector<16x16x32xf32> to vector<256x32xf32>
    %c0_64 = arith.constant 0 : index
    %c2_65 = arith.constant 2 : index
    %c0_66 = arith.constant 0 : index
    %49 = vector.load %arg17[%c0_64, %c2_65, %c0_66] : memref<18x18x32xf32, #tpu.memory_space<vmem>>, vector<16x16x32xf32>
    %50 = vector.shape_cast %49 : vector<16x16x32xf32> to vector<256x32xf32>
    %c1_67 = arith.constant 1 : index
    %c0_68 = arith.constant 0 : index
    %c0_69 = arith.constant 0 : index
    %51 = vector.load %arg17[%c1_67, %c0_68, %c0_69] : memref<18x18x32xf32, #tpu.memory_space<vmem>>, vector<16x16x32xf32>
    %52 = vector.shape_cast %51 : vector<16x16x32xf32> to vector<256x32xf32>
    %c1_70 = arith.constant 1 : index
    %c1_71 = arith.constant 1 : index
    %c0_72 = arith.constant 0 : index
    %53 = vector.load %arg17[%c1_70, %c1_71, %c0_72] : memref<18x18x32xf32, #tpu.memory_space<vmem>>, vector<16x16x32xf32>
    %54 = vector.shape_cast %53 : vector<16x16x32xf32> to vector<256x32xf32>
    %c1_73 = arith.constant 1 : index
    %c2_74 = arith.constant 2 : index
    %c0_75 = arith.constant 0 : index
    %55 = vector.load %arg17[%c1_73, %c2_74, %c0_75] : memref<18x18x32xf32, #tpu.memory_space<vmem>>, vector<16x16x32xf32>
    %56 = vector.shape_cast %55 : vector<16x16x32xf32> to vector<256x32xf32>
    %c2_76 = arith.constant 2 : index
    %c0_77 = arith.constant 0 : index
    %c0_78 = arith.constant 0 : index
    %57 = vector.load %arg17[%c2_76, %c0_77, %c0_78] : memref<18x18x32xf32, #tpu.memory_space<vmem>>, vector<16x16x32xf32>
    %58 = vector.shape_cast %57 : vector<16x16x32xf32> to vector<256x32xf32>
    %c2_79 = arith.constant 2 : index
    %c1_80 = arith.constant 1 : index
    %c0_81 = arith.constant 0 : index
    %59 = vector.load %arg17[%c2_79, %c1_80, %c0_81] : memref<18x18x32xf32, #tpu.memory_space<vmem>>, vector<16x16x32xf32>
    %60 = vector.shape_cast %59 : vector<16x16x32xf32> to vector<256x32xf32>
    %c2_82 = arith.constant 2 : index
    %c2_83 = arith.constant 2 : index
    %c0_84 = arith.constant 0 : index
    %61 = vector.load %arg17[%c2_82, %c2_83, %c0_84] : memref<18x18x32xf32, #tpu.memory_space<vmem>>, vector<16x16x32xf32>
    %62 = vector.shape_cast %61 : vector<16x16x32xf32> to vector<256x32xf32>
    %63 = tpu.concatenate %46, %48, %50, %52, %54, %56, %58, %60, %62 in 1 : vector<256x32xf32>, vector<256x32xf32>, vector<256x32xf32>, vector<256x32xf32>, vector<256x32xf32>, vector<256x32xf32>, vector<256x32xf32>, vector<256x32xf32>, vector<256x32xf32> -> vector<256x288xf32>
    %c0_85 = arith.constant 0 : index
    %c0_86 = arith.constant 0 : index
    %64 = vector.load %arg3[%c0_85, %c0_86] : memref<288x64xf32, #tpu.memory_space<vmem>>, vector<288x64xf32>
    %cst_87 = arith.constant dense<0.000000e+00> : vector<256x64xf32>
    %65 = tpu.matmul %63, %64, %cst_87 {dimension_numbers = #tpu.dot_dimension_numbers<[1], [0], [0], [1], [0, 0, 1, 1], [], []>} : vector<256x288xf32>, vector<288x64xf32>, vector<256x64xf32> -> vector<256x64xf32>
    %c0_88 = arith.constant 0 : index
    %c0_89 = arith.constant 0 : index
    %66 = vector.load %arg8[%c0_88, %c0_89] : memref<1x64xf32, #tpu.memory_space<vmem>>, vector<1x64xf32>
    %67 = vector.broadcast %66 : vector<1x64xf32> to vector<256x64xf32>
    %68 = arith.mulf %65, %67 : vector<256x64xf32>
    %c0_90 = arith.constant 0 : index
    %c0_91 = arith.constant 0 : index
    %69 = vector.load %arg9[%c0_90, %c0_91] : memref<1x64xf32, #tpu.memory_space<vmem>>, vector<1x64xf32>
    %70 = vector.broadcast %69 : vector<1x64xf32> to vector<256x64xf32>
    %71 = arith.addf %68, %70 : vector<256x64xf32>
    %cst_92 = arith.constant 0.000000e+00 : f32
    %72 = vector.broadcast %cst_92 : f32 to vector<256x64xf32>
    %73 = arith.cmpf oge, %71, %72 : vector<256x64xf32>
    %cst_93 = arith.constant 0.00999999977 : f32
    %74 = vector.broadcast %cst_93 : f32 to vector<256x64xf32>
    %75 = arith.mulf %74, %71 : vector<256x64xf32>
    %76 = arith.select %73, %71, %75 : vector<256x64xi1>, vector<256x64xf32>
    %c0_94 = arith.constant 0 : index
    %c0_95 = arith.constant 0 : index
    %77 = vector.load %arg14[%c0_94, %c0_95] : memref<64x256xf32, #tpu.memory_space<vmem>>, vector<64x256xf32>
    %cst_96 = arith.constant dense<0.000000e+00> : vector<64x64xf32>
    %78 = tpu.matmul %77, %76, %cst_96 {dimension_numbers = #tpu.dot_dimension_numbers<[1], [0], [0], [1], [0, 0, 1, 1], [], []>} : vector<64x256xf32>, vector<256x64xf32>, vector<64x64xf32> -> vector<64x64xf32>
    %79 = vector.shape_cast %78 : vector<64x64xf32> to vector<8x8x64xf32>
    %c1_97 = arith.constant 1 : index
    %c1_98 = arith.constant 1 : index
    %c0_99 = arith.constant 0 : index
    %80 = vector.load %arg18[%c1_97, %c1_98, %c0_99] : memref<10x10x64xf32, #tpu.memory_space<vmem>>, vector<8x8x64xf32>
    tpu.vector_store %arg18[%c1_97, %c1_98, %c0_99], %79 {strides = array<i32>} : memref<10x10x64xf32, #tpu.memory_space<vmem>>, vector<8x8x64xf32>,
    %c0_100 = arith.constant 0 : index
    %c0_101 = arith.constant 0 : index
    %c0_102 = arith.constant 0 : index
    %81 = vector.load %arg18[%c0_100, %c0_101, %c0_102] : memref<10x10x64xf32, #tpu.memory_space<vmem>>, vector<8x8x64xf32>
    %82 = vector.shape_cast %81 : vector<8x8x64xf32> to vector<64x64xf32>
    %c0_103 = arith.constant 0 : index
    %c1_104 = arith.constant 1 : index
    %c0_105 = arith.constant 0 : index
    %83 = vector.load %arg18[%c0_103, %c1_104, %c0_105] : memref<10x10x64xf32, #tpu.memory_space<vmem>>, vector<8x8x64xf32>
    %84 = vector.shape_cast %83 : vector<8x8x64xf32> to vector<64x64xf32>
    %c0_106 = arith.constant 0 : index
    %c2_107 = arith.constant 2 : index
    %c0_108 = arith.constant 0 : index
    %85 = vector.load %arg18[%c0_106, %c2_107, %c0_108] : memref<10x10x64xf32, #tpu.memory_space<vmem>>, vector<8x8x64xf32>
    %86 = vector.shape_cast %85 : vector<8x8x64xf32> to vector<64x64xf32>
    %c1_109 = arith.constant 1 : index
    %c0_110 = arith.constant 0 : index
    %c0_111 = arith.constant 0 : index
    %87 = vector.load %arg18[%c1_109, %c0_110, %c0_111] : memref<10x10x64xf32, #tpu.memory_space<vmem>>, vector<8x8x64xf32>
    %88 = vector.shape_cast %87 : vector<8x8x64xf32> to vector<64x64xf32>
    %c1_112 = arith.constant 1 : index
    %c1_113 = arith.constant 1 : index
    %c0_114 = arith.constant 0 : index
    %89 = vector.load %arg18[%c1_112, %c1_113, %c0_114] : memref<10x10x64xf32, #tpu.memory_space<vmem>>, vector<8x8x64xf32>
    %90 = vector.shape_cast %89 : vector<8x8x64xf32> to vector<64x64xf32>
    %c1_115 = arith.constant 1 : index
    %c2_116 = arith.constant 2 : index
    %c0_117 = arith.constant 0 : index
    %91 = vector.load %arg18[%c1_115, %c2_116, %c0_117] : memref<10x10x64xf32, #tpu.memory_space<vmem>>, vector<8x8x64xf32>
    %92 = vector.shape_cast %91 : vector<8x8x64xf32> to vector<64x64xf32>
    %c2_118 = arith.constant 2 : index
    %c0_119 = arith.constant 0 : index
    %c0_120 = arith.constant 0 : index
    %93 = vector.load %arg18[%c2_118, %c0_119, %c0_120] : memref<10x10x64xf32, #tpu.memory_space<vmem>>, vector<8x8x64xf32>
    %94 = vector.shape_cast %93 : vector<8x8x64xf32> to vector<64x64xf32>
    %c2_121 = arith.constant 2 : index
    %c1_122 = arith.constant 1 : index
    %c0_123 = arith.constant 0 : index
    %95 = vector.load %arg18[%c2_121, %c1_122, %c0_123] : memref<10x10x64xf32, #tpu.memory_space<vmem>>, vector<8x8x64xf32>
    %96 = vector.shape_cast %95 : vector<8x8x64xf32> to vector<64x64xf32>
    %c2_124 = arith.constant 2 : index
    %c2_125 = arith.constant 2 : index
    %c0_126 = arith.constant 0 : index
    %97 = vector.load %arg18[%c2_124, %c2_125, %c0_126] : memref<10x10x64xf32, #tpu.memory_space<vmem>>, vector<8x8x64xf32>
    %98 = vector.shape_cast %97 : vector<8x8x64xf32> to vector<64x64xf32>
    %99 = tpu.concatenate %82, %84, %86, %88, %90, %92, %94, %96, %98 in 1 : vector<64x64xf32>, vector<64x64xf32>, vector<64x64xf32>, vector<64x64xf32>, vector<64x64xf32>, vector<64x64xf32>, vector<64x64xf32>, vector<64x64xf32>, vector<64x64xf32> -> vector<64x576xf32>
    %c0_127 = arith.constant 0 : index
    %c0_128 = arith.constant 0 : index
    %100 = vector.load %arg4[%c0_127, %c0_128] : memref<576x32xf32, #tpu.memory_space<vmem>>, vector<576x32xf32>
    %cst_129 = arith.constant dense<0.000000e+00> : vector<64x32xf32>
    %101 = tpu.matmul %99, %100, %cst_129 {dimension_numbers = #tpu.dot_dimension_numbers<[1], [0], [0], [1], [0, 0, 1, 1], [], []>} : vector<64x576xf32>, vector<576x32xf32>, vector<64x32xf32> -> vector<64x32xf32>
    %c0_130 = arith.constant 0 : index
    %c0_131 = arith.constant 0 : index
    %102 = vector.load %arg10[%c0_130, %c0_131] : memref<1x32xf32, #tpu.memory_space<vmem>>, vector<1x32xf32>
    %103 = vector.broadcast %102 : vector<1x32xf32> to vector<64x32xf32>
    %104 = arith.mulf %101, %103 : vector<64x32xf32>
    %c0_132 = arith.constant 0 : index
    %c0_133 = arith.constant 0 : index
    %105 = vector.load %arg11[%c0_132, %c0_133] : memref<1x32xf32, #tpu.memory_space<vmem>>, vector<1x32xf32>
    %106 = vector.broadcast %105 : vector<1x32xf32> to vector<64x32xf32>
    %107 = arith.addf %104, %106 : vector<64x32xf32>
    %cst_134 = arith.constant 0.000000e+00 : f32
    %108 = vector.broadcast %cst_134 : f32 to vector<64x32xf32>
    %109 = arith.cmpf oge, %107, %108 : vector<64x32xf32>
    %cst_135 = arith.constant 0.00999999977 : f32
    %110 = vector.broadcast %cst_135 : f32 to vector<64x32xf32>
    %111 = arith.mulf %110, %107 : vector<64x32xf32>
    %112 = arith.select %109, %107, %111 : vector<64x32xi1>, vector<64x32xf32>
    %113 = vector.shape_cast %112 : vector<64x32xf32> to vector<8x8x32xf32>
    %c1_136 = arith.constant 1 : index
    %c1_137 = arith.constant 1 : index
    %c0_138 = arith.constant 0 : index
    %114 = vector.load %arg19[%c1_136, %c1_137, %c0_138] : memref<10x10x32xf32, #tpu.memory_space<vmem>>, vector<8x8x32xf32>
    tpu.vector_store %arg19[%c1_136, %c1_137, %c0_138], %113 {strides = array<i32>} : memref<10x10x32xf32, #tpu.memory_space<vmem>>, vector<8x8x32xf32>,
    %c0_139 = arith.constant 0 : index
    %c0_140 = arith.constant 0 : index
    %c0_141 = arith.constant 0 : index
    %115 = vector.load %arg19[%c0_139, %c0_140, %c0_141] : memref<10x10x32xf32, #tpu.memory_space<vmem>>, vector<8x8x32xf32>
    %116 = vector.shape_cast %115 : vector<8x8x32xf32> to vector<64x32xf32>
    %c0_142 = arith.constant 0 : index
    %c1_143 = arith.constant 1 : index
    %c0_144 = arith.constant 0 : index
    %117 = vector.load %arg19[%c0_142, %c1_143, %c0_144] : memref<10x10x32xf32, #tpu.memory_space<vmem>>, vector<8x8x32xf32>
    %118 = vector.shape_cast %117 : vector<8x8x32xf32> to vector<64x32xf32>
    %c0_145 = arith.constant 0 : index
    %c2_146 = arith.constant 2 : index
    %c0_147 = arith.constant 0 : index
    %119 = vector.load %arg19[%c0_145, %c2_146, %c0_147] : memref<10x10x32xf32, #tpu.memory_space<vmem>>, vector<8x8x32xf32>
    %120 = vector.shape_cast %119 : vector<8x8x32xf32> to vector<64x32xf32>
    %c1_148 = arith.constant 1 : index
    %c0_149 = arith.constant 0 : index
    %c0_150 = arith.constant 0 : index
    %121 = vector.load %arg19[%c1_148, %c0_149, %c0_150] : memref<10x10x32xf32, #tpu.memory_space<vmem>>, vector<8x8x32xf32>
    %122 = vector.shape_cast %121 : vector<8x8x32xf32> to vector<64x32xf32>
    %c1_151 = arith.constant 1 : index
    %c1_152 = arith.constant 1 : index
    %c0_153 = arith.constant 0 : index
    %123 = vector.load %arg19[%c1_151, %c1_152, %c0_153] : memref<10x10x32xf32, #tpu.memory_space<vmem>>, vector<8x8x32xf32>
    %124 = vector.shape_cast %123 : vector<8x8x32xf32> to vector<64x32xf32>
    %c1_154 = arith.constant 1 : index
    %c2_155 = arith.constant 2 : index
    %c0_156 = arith.constant 0 : index
    %125 = vector.load %arg19[%c1_154, %c2_155, %c0_156] : memref<10x10x32xf32, #tpu.memory_space<vmem>>, vector<8x8x32xf32>
    %126 = vector.shape_cast %125 : vector<8x8x32xf32> to vector<64x32xf32>
    %c2_157 = arith.constant 2 : index
    %c0_158 = arith.constant 0 : index
    %c0_159 = arith.constant 0 : index
    %127 = vector.load %arg19[%c2_157, %c0_158, %c0_159] : memref<10x10x32xf32, #tpu.memory_space<vmem>>, vector<8x8x32xf32>
    %128 = vector.shape_cast %127 : vector<8x8x32xf32> to vector<64x32xf32>
    %c2_160 = arith.constant 2 : index
    %c1_161 = arith.constant 1 : index
    %c0_162 = arith.constant 0 : index
    %129 = vector.load %arg19[%c2_160, %c1_161, %c0_162] : memref<10x10x32xf32, #tpu.memory_space<vmem>>, vector<8x8x32xf32>
    %130 = vector.shape_cast %129 : vector<8x8x32xf32> to vector<64x32xf32>
    %c2_163 = arith.constant 2 : index
    %c2_164 = arith.constant 2 : index
    %c0_165 = arith.constant 0 : index
    %131 = vector.load %arg19[%c2_163, %c2_164, %c0_165] : memref<10x10x32xf32, #tpu.memory_space<vmem>>, vector<8x8x32xf32>
    %132 = vector.shape_cast %131 : vector<8x8x32xf32> to vector<64x32xf32>
    %133 = tpu.concatenate %116, %118, %120, %122, %124, %126, %128, %130, %132 in 1 : vector<64x32xf32>, vector<64x32xf32>, vector<64x32xf32>, vector<64x32xf32>, vector<64x32xf32>, vector<64x32xf32>, vector<64x32xf32>, vector<64x32xf32>, vector<64x32xf32> -> vector<64x288xf32>
    %c0_166 = arith.constant 0 : index
    %c0_167 = arith.constant 0 : index
    %134 = vector.load %arg5[%c0_166, %c0_167] : memref<288x8xf32, #tpu.memory_space<vmem>>, vector<288x8xf32>
    %cst_168 = arith.constant dense<0.000000e+00> : vector<64x8xf32>
    %135 = tpu.matmul %133, %134, %cst_168 {dimension_numbers = #tpu.dot_dimension_numbers<[1], [0], [0], [1], [0, 0, 1, 1], [], []>} : vector<64x288xf32>, vector<288x8xf32>, vector<64x8xf32> -> vector<64x8xf32>
    %c0_169 = arith.constant 0 : index
    %c0_170 = arith.constant 0 : index
    %136 = vector.load %arg12[%c0_169, %c0_170] : memref<1x8xf32, #tpu.memory_space<vmem>>, vector<1x8xf32>
    %137 = vector.broadcast %136 : vector<1x8xf32> to vector<64x8xf32>
    %138 = arith.mulf %135, %137 : vector<64x8xf32>
    %c0_171 = arith.constant 0 : index
    %c0_172 = arith.constant 0 : index
    %139 = vector.load %arg13[%c0_171, %c0_172] : memref<1x8xf32, #tpu.memory_space<vmem>>, vector<1x8xf32>
    %140 = vector.broadcast %139 : vector<1x8xf32> to vector<64x8xf32>
    %141 = arith.addf %138, %140 : vector<64x8xf32>
    %c0_173 = arith.constant 0 : index
    %c0_174 = arith.constant 0 : index
    %c0_175 = arith.constant 0 : index
    %142 = vector.load %arg15[%c0_173, %c0_174, %c0_175] : memref<1x64x8xf32, #tpu.memory_space<vmem>>, vector<1x64x8xf32>
    %143 = vector.shape_cast %142 : vector<1x64x8xf32> to vector<64x8xf32>
    %144 = vector.shape_cast %141 : vector<64x8xf32> to vector<1x64x8xf32>
    tpu.vector_store %arg15[%c0_173, %c0_174, %c0_175], %144 {strides = array<i32>} : memref<1x64x8xf32, #tpu.memory_space<vmem>>, vector<1x64x8xf32>,
    return
  }
  func.func @transform_0(%arg0: i32) -> (i32, i32, i32, i32) {
    %c0_i32 = arith.constant 0 : i32
    %c0_i32_0 = arith.constant 0 : i32
    %c0_i32_1 = arith.constant 0 : i32
    %c0_i32_2 = arith.constant 0 : i32
    return %arg0, %c0_i32, %c0_i32_0, %c0_i32_1 : i32, i32, i32, i32
  }
  func.func @transform_1(%arg0: i32) -> (i32, i32) {
    %c0_i32 = arith.constant 0 : i32
    %c0_i32_0 = arith.constant 0 : i32
    %c0_i32_1 = arith.constant 0 : i32
    return %c0_i32, %c0_i32_0 : i32, i32
  }
  func.func @transform_2(%arg0: i32) -> (i32, i32) {
    %c0_i32 = arith.constant 0 : i32
    %c0_i32_0 = arith.constant 0 : i32
    %c0_i32_1 = arith.constant 0 : i32
    return %c0_i32, %c0_i32_0 : i32, i32
  }
  func.func @transform_3(%arg0: i32) -> (i32, i32) {
    %c0_i32 = arith.constant 0 : i32
    %c0_i32_0 = arith.constant 0 : i32
    %c0_i32_1 = arith.constant 0 : i32
    return %c0_i32, %c0_i32_0 : i32, i32
  }
  func.func @transform_4(%arg0: i32) -> (i32, i32) {
    %c0_i32 = arith.constant 0 : i32
    %c0_i32_0 = arith.constant 0 : i32
    %c0_i32_1 = arith.constant 0 : i32
    return %c0_i32, %c0_i32_0 : i32, i32
  }
  func.func @transform_5(%arg0: i32) -> (i32, i32) {
    %c0_i32 = arith.constant 0 : i32
    %c0_i32_0 = arith.constant 0 : i32
    %c0_i32_1 = arith.constant 0 : i32
    return %c0_i32, %c0_i32_0 : i32, i32
  }
  func.func @transform_6(%arg0: i32) -> (i32, i32) {
    %c0_i32 = arith.constant 0 : i32
    %c0_i32_0 = arith.constant 0 : i32
    %c0_i32_1 = arith.constant 0 : i32
    return %c0_i32, %c0_i32_0 : i32, i32
  }
  func.func @transform_7(%arg0: i32) -> (i32, i32) {
    %c0_i32 = arith.constant 0 : i32
    %c0_i32_0 = arith.constant 0 : i32
    %c0_i32_1 = arith.constant 0 : i32
    return %c0_i32, %c0_i32_0 : i32, i32
  }
  func.func @transform_8(%arg0: i32) -> (i32, i32) {
    %c0_i32 = arith.constant 0 : i32
    %c0_i32_0 = arith.constant 0 : i32
    %c0_i32_1 = arith.constant 0 : i32
    return %c0_i32, %c0_i32_0 : i32, i32
  }
  func.func @transform_9(%arg0: i32) -> (i32, i32) {
    %c0_i32 = arith.constant 0 : i32
    %c0_i32_0 = arith.constant 0 : i32
    %c0_i32_1 = arith.constant 0 : i32
    return %c0_i32, %c0_i32_0 : i32, i32
  }
  func.func @transform_10(%arg0: i32) -> (i32, i32) {
    %c0_i32 = arith.constant 0 : i32
    %c0_i32_0 = arith.constant 0 : i32
    %c0_i32_1 = arith.constant 0 : i32
    return %c0_i32, %c0_i32_0 : i32, i32
  }
  func.func @transform_11(%arg0: i32) -> (i32, i32) {
    %c0_i32 = arith.constant 0 : i32
    %c0_i32_0 = arith.constant 0 : i32
    %c0_i32_1 = arith.constant 0 : i32
    return %c0_i32, %c0_i32_0 : i32, i32
  }
  func.func @transform_12(%arg0: i32) -> (i32, i32) {
    %c0_i32 = arith.constant 0 : i32
    %c0_i32_0 = arith.constant 0 : i32
    %c0_i32_1 = arith.constant 0 : i32
    return %c0_i32, %c0_i32_0 : i32, i32
  }
  func.func @transform_13(%arg0: i32) -> (i32, i32) {
    %c0_i32 = arith.constant 0 : i32
    %c0_i32_0 = arith.constant 0 : i32
    %c0_i32_1 = arith.constant 0 : i32
    return %c0_i32, %c0_i32_0 : i32, i32
  }
  func.func @transform_14(%arg0: i32) -> (i32, i32, i32) {
    %c0_i32 = arith.constant 0 : i32
    %c0_i32_0 = arith.constant 0 : i32
    %c0_i32_1 = arith.constant 0 : i32
    return %arg0, %c0_i32, %c0_i32_0 : i32, i32, i32
  }
}

</mosaic_0001>

<llo_original>
// kernel: conv_forward.1
$region0: #{conv_forward.1}
  #allocation0 [shape = 'u32[]', space=smem, size = 0x4, offset = 0x4, fixed_abs, tag = 'smem constant byte address 0x4 - core index']
  #allocation1 [shape = 'u32[144,128]{1,0:T(1,128)}', space=vmem, size = 0x12000, scoped, tag = 'internal scratch']
  #allocation2 [shape = 'f32[18,18,1]{2,1,0:T(8,128)}', space=vmem, size = 0x36000, scoped, tag = 'scratch operand']
  #allocation3 [shape = 'f32[18,18,32]{2,1,0:T(8,128)}', space=vmem, size = 0x36000, scoped, tag = 'scratch operand']
  #allocation4 [shape = 'f32[10,10,64]{2,1,0:T(8,128)}', space=vmem, size = 0x14000, scoped, tag = 'scratch operand']
  #allocation5 [shape = 'f32[10,10,32]{2,1,0:T(8,128)}', space=vmem, size = 0x14000, scoped, tag = 'scratch operand']
  %s0 = inlined_call_operand.vmem [shape: f32[2,16,16,1], index: 0, kind: input, shape index: {}]
  %s1 = inlined_call_operand.vmem [shape: f32[9,32], index: 1, kind: input, shape index: {}]
  %s2 = inlined_call_operand.vmem [shape: f32[288,64], index: 2, kind: input, shape index: {}]
  %s3 = inlined_call_operand.vmem [shape: f32[576,32], index: 3, kind: input, shape index: {}]
  %s4 = inlined_call_operand.vmem [shape: f32[288,8], index: 4, kind: input, shape index: {}]
  %s5 = inlined_call_operand.vmem [shape: f32[1,32], index: 5, kind: input, shape index: {}]
  %s6 = inlined_call_operand.vmem [shape: f32[1,32], index: 6, kind: input, shape index: {}]
  %s7 = inlined_call_operand.vmem [shape: f32[1,64], index: 7, kind: input, shape index: {}]
  %s8 = inlined_call_operand.vmem [shape: f32[1,64], index: 8, kind: input, shape index: {}]
  %s9 = inlined_call_operand.vmem [shape: f32[1,32], index: 9, kind: input, shape index: {}]
  %s10 = inlined_call_operand.vmem [shape: f32[1,32], index: 10, kind: input, shape index: {}]
  %s11 = inlined_call_operand.vmem [shape: f32[1,8], index: 11, kind: input, shape index: {}]
  %s12 = inlined_call_operand.vmem [shape: f32[1,8], index: 12, kind: input, shape index: {}]
  %s13 = inlined_call_operand.vmem [shape: f32[64,256], index: 13, kind: input, shape index: {}]
  %s14 = inlined_call_operand.vmem [shape: f32[2,64,8], index: 14, kind: output, shape index: {}]
  %s15 = sld [smem:[#allocation0]]
  $region89: #{conv_forward.1} parent=0
    _
  %s17 = ssub.s32 1, %s15
  %s18 = scalar_select 0, %s17, %s15
  loop: start=0, step=1, limit=4
  $region2: #{conv_forward.1} parent=0 // loop_pre_header
    _
  $region3: #{conv_forward.1} parent=0 // loop_header
    %s20 = sphi 0, %s24
    %p21 = scmp.ge.s32.totalorder %s20, 4
    %s30 = sphi 0, %s32
    %s33 = sphi 0, %s30
    %s34 = sphi 0, %s33
    %s50 = sphi 0, %s34
    %s54 = sphi 0, %s54
    %s56 = sphi 0, %s54
    %s57 = sphi 0, %s56
    %s71 = sphi 0, %s57
    %s75 = sphi 0, %s75
    %s77 = sphi 0, %s75
    %s78 = sphi 0, %s77
    %s92 = sphi 0, %s78
    %s96 = sphi 0, %s96
    %s98 = sphi 0, %s96
    %s99 = sphi 0, %s98
    %s113 = sphi 0, %s99
    %s117 = sphi 0, %s117
    %s119 = sphi 0, %s117
    %s120 = sphi 0, %s119
    %s134 = sphi 0, %s120
    %s138 = sphi 0, %s138
    %s140 = sphi 0, %s138
    %s141 = sphi 0, %s140
    %s155 = sphi 0, %s141
    %s159 = sphi 0, %s159
    %s161 = sphi 0, %s159
    %s162 = sphi 0, %s161
    %s176 = sphi 0, %s162
    %s180 = sphi 0, %s180
    %s182 = sphi 0, %s180
    %s183 = sphi 0, %s182
    %s197 = sphi 0, %s183
    %s201 = sphi 0, %s201
    %s203 = sphi 0, %s201
    %s204 = sphi 0, %s203
    %s218 = sphi 0, %s204
    %s222 = sphi 0, %s222
    %s224 = sphi 0, %s222
    %s225 = sphi 0, %s224
    %s239 = sphi 0, %s225
    %s243 = sphi 0, %s243
    %s245 = sphi 0, %s243
    %s246 = sphi 0, %s245
    %s260 = sphi 0, %s246
    %s264 = sphi 0, %s264
    %s266 = sphi 0, %s264
    %s267 = sphi 0, %s266
    %s281 = sphi 0, %s267
    %s285 = sphi 0, %s285
    %s287 = sphi 0, %s285
    %s288 = sphi 0, %s287
    %s302 = sphi 0, %s288
    %s306 = sphi 0, %s306
    %s308 = sphi 0, %s306
    %s309 = sphi 0, %s308
    %s323 = sphi 0, %s309
    %s329 = sphi 0, %s331
    %s332 = sphi 0, %s329
    %s333 = sphi 0, %s332
    %s349 = sphi 0, %s333
  $region4: #{conv_forward.1} parent=0 // loop_header_branch
    %23 = sbr.rel (%p21) target = $region8
  $region5: #{conv_forward.1} parent=0 // loop_body
    %s25 = ssub.s32 %s20, 1
    %s26 = ssub.s32 %s20, 2
    %s27 = sadd.s32 %s20, 1
    %s28 = ssub.s32 %s20, %s27
    %p29 = scmp.eq.s32.totalorder %s28, 0
    %s31 = sadd.s32 %s30, 1
    %s32 = scalar_select %p29, %s30, %s31
    %p35 = pneg %p29
    %p36 = scmp.eq.s32.totalorder %s20, 1
    %p37 = por %p35, %p36
    %p38 = scmp.ne.s32.totalorder %s30, %s33
    %p39 = scmp.eq.s32.totalorder %s20, 0
    %p40 = por %p38, %p39
    %p41 = scmp.ne.s32.totalorder %s30, %s33
    %p42 = scmp.eq.s32.totalorder %s25, 1
    %p43 = por %p41, %p42
    %p44 = scmp.ne.s32.totalorder %s33, %s34
    %p45 = scmp.eq.s32.totalorder %s25, 0
    %p46 = por %p44, %p45
    %p47 = scmp.ne.s32.totalorder %s33, %s34
    %p48 = scmp.eq.s32.totalorder %s26, 1
    %p49 = por %p47, %p48
    %p51 = scmp.ne.s32.totalorder %s34, %s50
    %p52 = scmp.eq.s32.totalorder %s26, 0
    %p53 = por %p51, %p52
    %s55 = sadd.s32 %s54, 1
    %p58 = scmp.eq.s32.totalorder %s20, 1
    %p59 = scmp.ne.s32.totalorder %s54, %s56
    %p60 = scmp.eq.s32.totalorder %s20, 0
    %p61 = por %p59, %p60
    %p62 = scmp.ne.s32.totalorder %s54, %s56
    %p63 = scmp.eq.s32.totalorder %s25, 1
    %p64 = por %p62, %p63
    %p65 = scmp.ne.s32.totalorder %s56, %s57
    %p66 = scmp.eq.s32.totalorder %s25, 0
    %p67 = por %p65, %p66
    %p68 = scmp.ne.s32.totalorder %s56, %s57
    %p69 = scmp.eq.s32.totalorder %s26, 1
    %p70 = por %p68, %p69
    %p72 = scmp.ne.s32.totalorder %s57, %s71
    %p73 = scmp.eq.s32.totalorder %s26, 0
    %p74 = por %p72, %p73
    %s76 = sadd.s32 %s75, 1
    %p79 = scmp.eq.s32.totalorder %s20, 1
    %p80 = scmp.ne.s32.totalorder %s75, %s77
    %p81 = scmp.eq.s32.totalorder %s20, 0
    %p82 = por %p80, %p81
    %p83 = scmp.ne.s32.totalorder %s75, %s77
    %p84 = scmp.eq.s32.totalorder %s25, 1
    %p85 = por %p83, %p84
    %p86 = scmp.ne.s32.totalorder %s77, %s78
    %p87 = scmp.eq.s32.totalorder %s25, 0
    %p88 = por %p86, %p87
    %p89 = scmp.ne.s32.totalorder %s77, %s78
    %p90 = scmp.eq.s32.totalorder %s26, 1
    %p91 = por %p89, %p90
    %p93 = scmp.ne.s32.totalorder %s78, %s92
    %p94 = scmp.eq.s32.totalorder %s26, 0
    %p95 = por %p93, %p94
    %s97 = sadd.s32 %s96, 1
    %p100 = scmp.eq.s32.totalorder %s20, 1
    %p101 = scmp.ne.s32.totalorder %s96, %s98
    %p102 = scmp.eq.s32.totalorder %s20, 0
    %p103 = por %p101, %p102
    %p104 = scmp.ne.s32.totalorder %s96, %s98
    %p105 = scmp.eq.s32.totalorder %s25, 1
    %p106 = por %p104, %p105
    %p107 = scmp.ne.s32.totalorder %s98, %s99
    %p108 = scmp.eq.s32.totalorder %s25, 0
    %p109 = por %p107, %p108
    %p110 = scmp.ne.s32.totalorder %s98, %s99
    %p111 = scmp.eq.s32.totalorder %s26, 1
    %p112 = por %p110, %p111
    %p114 = scmp.ne.s32.totalorder %s99, %s113
    %p115 = scmp.eq.s32.totalorder %s26, 0
    %p116 = por %p114, %p115
    %s118 = sadd.s32 %s117, 1
    %p121 = scmp.eq.s32.totalorder %s20, 1
    %p122 = scmp.ne.s32.totalorder %s117, %s119
    %p123 = scmp.eq.s32.totalorder %s20, 0
    %p124 = por %p122, %p123
    %p125 = scmp.ne.s32.totalorder %s117, %s119
    %p126 = scmp.eq.s32.totalorder %s25, 1
    %p127 = por %p125, %p126
    %p128 = scmp.ne.s32.totalorder %s119, %s120
    %p129 = scmp.eq.s32.totalorder %s25, 0
    %p130 = por %p128, %p129
    %p131 = scmp.ne.s32.totalorder %s119, %s120
    %p132 = scmp.eq.s32.totalorder %s26, 1
    %p133 = por %p131, %p132
    %p135 = scmp.ne.s32.totalorder %s120, %s134
    %p136 = scmp.eq.s32.totalorder %s26, 0
    %p137 = por %p135, %p136
    %s139 = sadd.s32 %s138, 1
    %p142 = scmp.eq.s32.totalorder %s20, 1
    %p143 = scmp.ne.s32.totalorder %s138, %s140
    %p144 = scmp.eq.s32.totalorder %s20, 0
    %p145 = por %p143, %p144
    %p146 = scmp.ne.s32.totalorder %s138, %s140
    %p147 = scmp.eq.s32.totalorder %s25, 1
    %p148 = por %p146, %p147
    %p149 = scmp.ne.s32.totalorder %s140, %s141
    %p150 = scmp.eq.s32.totalorder %s25, 0
    %p151 = por %p149, %p150
    %p152 = scmp.ne.s32.totalorder %s140, %s141
    %p153 = scmp.eq.s32.totalorder %s26, 1
    %p154 = por %p152, %p153
    %p156 = scmp.ne.s32.totalorder %s141, %s155
    %p157 = scmp.eq.s32.totalorder %s26, 0
    %p158 = por %p156, %p157
    %s160 = sadd.s32 %s159, 1
    %p163 = scmp.eq.s32.totalorder %s20, 1
    %p164 = scmp.ne.s32.totalorder %s159, %s161
    %p165 = scmp.eq.s32.totalorder %s20, 0
    %p166 = por %p164, %p165
    %p167 = scmp.ne.s32.totalorder %s159, %s161
    %p168 = scmp.eq.s32.totalorder %s25, 1
    %p169 = por %p167, %p168
    %p170 = scmp.ne.s32.totalorder %s161, %s162
    %p171 = scmp.eq.s32.totalorder %s25, 0
    %p172 = por %p170, %p171
    %p173 = scmp.ne.s32.totalorder %s161, %s162
    %p174 = scmp.eq.s32.totalorder %s26, 1
    %p175 = por %p173, %p174
    %p177 = scmp.ne.s32.totalorder %s162, %s176
    %p178 = scmp.eq.s32.totalorder %s26, 0
    %p179 = por %p177, %p178
    %s181 = sadd.s32 %s180, 1
    %p184 = scmp.eq.s32.totalorder %s20, 1
    %p185 = scmp.ne.s32.totalorder %s180, %s182
    %p186 = scmp.eq.s32.totalorder %s20, 0
    %p187 = por %p185, %p186
    %p188 = scmp.ne.s32.totalorder %s180, %s182
    %p189 = scmp.eq.s32.totalorder %s25, 1
    %p190 = por %p188, %p189
    %p191 = scmp.ne.s32.totalorder %s182, %s183
    %p192 = scmp.eq.s32.totalorder %s25, 0
    %p193 = por %p191, %p192
    %p194 = scmp.ne.s32.totalorder %s182, %s183
    %p195 = scmp.eq.s32.totalorder %s26, 1
    %p196 = por %p194, %p195
    %p198 = scmp.ne.s32.totalorder %s183, %s197
    %p199 = scmp.eq.s32.totalorder %s26, 0
    %p200 = por %p198, %p199
    %s202 = sadd.s32 %s201, 1
    %p205 = scmp.eq.s32.totalorder %s20, 1
    %p206 = scmp.ne.s32.totalorder %s201, %s203
    %p207 = scmp.eq.s32.totalorder %s20, 0
    %p208 = por %p206, %p207
    %p209 = scmp.ne.s32.totalorder %s201, %s203
    %p210 = scmp.eq.s32.totalorder %s25, 1
    %p211 = por %p209, %p210
    %p212 = scmp.ne.s32.totalorder %s203, %s204
    %p213 = scmp.eq.s32.totalorder %s25, 0
    %p214 = por %p212, %p213
    %p215 = scmp.ne.s32.totalorder %s203, %s204
    %p216 = scmp.eq.s32.totalorder %s26, 1
    %p217 = por %p215, %p216
    %p219 = scmp.ne.s32.totalorder %s204, %s218
    %p220 = scmp.eq.s32.totalorder %s26, 0
    %p221 = por %p219, %p220
    %s223 = sadd.s32 %s222, 1
    %p226 = scmp.eq.s32.totalorder %s20, 1
    %p227 = scmp.ne.s32.totalorder %s222, %s224
    %p228 = scmp.eq.s32.totalorder %s20, 0
    %p229 = por %p227, %p228
    %p230 = scmp.ne.s32.totalorder %s222, %s224
    %p231 = scmp.eq.s32.totalorder %s25, 1
    %p232 = por %p230, %p231
    %p233 = scmp.ne.s32.totalorder %s224, %s225
    %p234 = scmp.eq.s32.totalorder %s25, 0
    %p235 = por %p233, %p234
    %p236 = scmp.ne.s32.totalorder %s224, %s225
    %p237 = scmp.eq.s32.totalorder %s26, 1
    %p238 = por %p236, %p237
    %p240 = scmp.ne.s32.totalorder %s225, %s239
    %p241 = scmp.eq.s32.totalorder %s26, 0
    %p242 = por %p240, %p241
    %s244 = sadd.s32 %s243, 1
    %p247 = scmp.eq.s32.totalorder %s20, 1
    %p248 = scmp.ne.s32.totalorder %s243, %s245
    %p249 = scmp.eq.s32.totalorder %s20, 0
    %p250 = por %p248, %p249
    %p251 = scmp.ne.s32.totalorder %s243, %s245
    %p252 = scmp.eq.s32.totalorder %s25, 1
    %p253 = por %p251, %p252
    %p254 = scmp.ne.s32.totalorder %s245, %s246
    %p255 = scmp.eq.s32.totalorder %s25, 0
    %p256 = por %p254, %p255
    %p257 = scmp.ne.s32.totalorder %s245, %s246
    %p258 = scmp.eq.s32.totalorder %s26, 1
    %p259 = por %p257, %p258
    %p261 = scmp.ne.s32.totalorder %s246, %s260
    %p262 = scmp.eq.s32.totalorder %s26, 0
    %p263 = por %p261, %p262
    %s265 = sadd.s32 %s264, 1
    %p268 = scmp.eq.s32.totalorder %s20, 1
    %p269 = scmp.ne.s32.totalorder %s264, %s266
    %p270 = scmp.eq.s32.totalorder %s20, 0
    %p271 = por %p269, %p270
    %p272 = scmp.ne.s32.totalorder %s264, %s266
    %p273 = scmp.eq.s32.totalorder %s25, 1
    %p274 = por %p272, %p273
    %p275 = scmp.ne.s32.totalorder %s266, %s267
    %p276 = scmp.eq.s32.totalorder %s25, 0
    %p277 = por %p275, %p276
    %p278 = scmp.ne.s32.totalorder %s266, %s267
    %p279 = scmp.eq.s32.totalorder %s26, 1
    %p280 = por %p278, %p279
    %p282 = scmp.ne.s32.totalorder %s267, %s281
    %p283 = scmp.eq.s32.totalorder %s26, 0
    %p284 = por %p282, %p283
    %s286 = sadd.s32 %s285, 1
    %p289 = scmp.eq.s32.totalorder %s20, 1
    %p290 = scmp.ne.s32.totalorder %s285, %s287
    %p291 = scmp.eq.s32.totalorder %s20, 0
    %p292 = por %p290, %p291
    %p293 = scmp.ne.s32.totalorder %s285, %s287
    %p294 = scmp.eq.s32.totalorder %s25, 1
    %p295 = por %p293, %p294
    %p296 = scmp.ne.s32.totalorder %s287, %s288
    %p297 = scmp.eq.s32.totalorder %s25, 0
    %p298 = por %p296, %p297
    %p299 = scmp.ne.s32.totalorder %s287, %s288
    %p300 = scmp.eq.s32.totalorder %s26, 1
    %p301 = por %p299, %p300
    %p303 = scmp.ne.s32.totalorder %s288, %s302
    %p304 = scmp.eq.s32.totalorder %s26, 0
    %p305 = por %p303, %p304
    %s307 = sadd.s32 %s306, 1
    %p310 = scmp.eq.s32.totalorder %s20, 1
    %p311 = scmp.ne.s32.totalorder %s306, %s308
    %p312 = scmp.eq.s32.totalorder %s20, 0
    %p313 = por %p311, %p312
    %p314 = scmp.ne.s32.totalorder %s306, %s308
    %p315 = scmp.eq.s32.totalorder %s25, 1
    %p316 = por %p314, %p315
    %p317 = scmp.ne.s32.totalorder %s308, %s309
    %p318 = scmp.eq.s32.totalorder %s25, 0
    %p319 = por %p317, %p318
    %p320 = scmp.ne.s32.totalorder %s308, %s309
    %p321 = scmp.eq.s32.totalorder %s26, 1
    %p322 = por %p320, %p321
    %p324 = scmp.ne.s32.totalorder %s309, %s323
    %p325 = scmp.eq.s32.totalorder %s26, 0
    %p326 = por %p324, %p325
    %s327 = ssub.s32 %s20, %s27
    %p328 = scmp.eq.s32.totalorder %s327, 0
    %s330 = sadd.s32 %s329, 1
    %s331 = scalar_select %p328, %s329, %s330
    %p334 = pneg %p328
    %p335 = scmp.eq.s32.totalorder %s20, 1
    %p336 = por %p334, %p335
    %p337 = scmp.ne.s32.totalorder %s329, %s332
    %p338 = scmp.eq.s32.totalorder %s20, 0
    %p339 = por %p337, %p338
    %p340 = scmp.ne.s32.totalorder %s329, %s332
    %p341 = scmp.eq.s32.totalorder %s25, 1
    %p342 = por %p340, %p341
    %p343 = scmp.ne.s32.totalorder %s332, %s333
    %p344 = scmp.eq.s32.totalorder %s25, 0
    %p345 = por %p343, %p344
    %p346 = scmp.ne.s32.totalorder %s332, %s333
    %p347 = scmp.eq.s32.totalorder %s26, 1
    %p348 = por %p346, %p347
    %p350 = scmp.ne.s32.totalorder %s333, %s349
    %p351 = scmp.eq.s32.totalorder %s26, 0
    %p352 = por %p350, %p351
    %p353 = scmp.le.s32.totalorder 1, %s20
    %p354 = scmp.lt.s32.totalorder %s20, 3
    %p355 = pnand %p353, %p354
    %p356 = pneg %p355
    // Predicated region
    $region9: #{conv_forward.1} parent=5 // pred_check
      _
    $region10: #{conv_forward.1} parent=5 // pred_check_branch
      %358 = sbr.rel (%p355) target = $region12
    $region11: #{conv_forward.1} parent=5 // pred_region
      %s359 = ssub.s32 %s20, 1
      // Predicated region
      $region13: #{conv_forward.1} parent=11 // pred_check
        %p360 = pneg %p67
      $region14: #{conv_forward.1} parent=11 // pred_check_branch
        %362 = sbr.rel (%p360) target = $region16
      $region15: #{conv_forward.1} parent=11 // pred_region
        _
      $region16: #{conv_forward.1} parent=11 // pred_fallthru
        _
      // Predicated region
      $region17: #{conv_forward.1} parent=11 // pred_check
        %p363 = pneg %p88
      $region18: #{conv_forward.1} parent=11 // pred_check_branch
        %365 = sbr.rel (%p363) target = $region20
      $region19: #{conv_forward.1} parent=11 // pred_region
        _
      $region20: #{conv_forward.1} parent=11 // pred_fallthru
        _
      // Predicated region
      $region21: #{conv_forward.1} parent=11 // pred_check
        %p366 = pneg %p109
      $region22: #{conv_forward.1} parent=11 // pred_check_branch
        %368 = sbr.rel (%p366) target = $region24
      $region23: #{conv_forward.1} parent=11 // pred_region
        _
      $region24: #{conv_forward.1} parent=11 // pred_fallthru
        _
      // Predicated region
      $region25: #{conv_forward.1} parent=11 // pred_check
        %p369 = pneg %p130
      $region26: #{conv_forward.1} parent=11 // pred_check_branch
        %371 = sbr.rel (%p369) target = $region28
      $region27: #{conv_forward.1} parent=11 // pred_region
        _
      $region28: #{conv_forward.1} parent=11 // pred_fallthru
        _
      // Predicated region
      $region29: #{conv_forward.1} parent=11 // pred_check
        %p372 = pneg %p151
      $region30: #{conv_forward.1} parent=11 // pred_check_branch
        %374 = sbr.rel (%p372) target = $region32
      $region31: #{conv_forward.1} parent=11 // pred_region
        _
      $region32: #{conv_forward.1} parent=11 // pred_fallthru
        _
      // Predicated region
      $region33: #{conv_forward.1} parent=11 // pred_check
        %p375 = pneg %p172
      $region34: #{conv_forward.1} parent=11 // pred_check_branch
        %377 = sbr.rel (%p375) target = $region36
      $region35: #{conv_forward.1} parent=11 // pred_region
        _
      $region36: #{conv_forward.1} parent=11 // pred_fallthru
        _
      // Predicated region
      $region37: #{conv_forward.1} parent=11 // pred_check
        %p378 = pneg %p193
      $region38: #{conv_forward.1} parent=11 // pred_check_branch
        %380 = sbr.rel (%p378) target = $region40
      $region39: #{conv_forward.1} parent=11 // pred_region
        _
      $region40: #{conv_forward.1} parent=11 // pred_fallthru
        _
      // Predicated region
      $region41: #{conv_forward.1} parent=11 // pred_check
        %p381 = pneg %p214
      $region42: #{conv_forward.1} parent=11 // pred_check_branch
        %383 = sbr.rel (%p381) target = $region44
      $region43: #{conv_forward.1} parent=11 // pred_region
        _
      $region44: #{conv_forward.1} parent=11 // pred_fallthru
        _
      // Predicated region
      $region45: #{conv_forward.1} parent=11 // pred_check
        %p384 = pneg %p235
      $region46: #{conv_forward.1} parent=11 // pred_check_branch
        %386 = sbr.rel (%p384) target = $region48
      $region47: #{conv_forward.1} parent=11 // pred_region
        _
      $region48: #{conv_forward.1} parent=11 // pred_fallthru
        _
      // Predicated region
      $region49: #{conv_forward.1} parent=11 // pred_check
        %p387 = pneg %p256
      $region50: #{conv_forward.1} parent=11 // pred_check_branch
        %389 = sbr.rel (%p387) target = $region52
      $region51: #{conv_forward.1} parent=11 // pred_region
        _
      $region52: #{conv_forward.1} parent=11 // pred_fallthru
        _
      // Predicated region
      $region53: #{conv_forward.1} parent=11 // pred_check
        %p390 = pneg %p277
      $region54: #{conv_forward.1} parent=11 // pred_check_branch
        %392 = sbr.rel (%p390) target = $region56
      $region55: #{conv_forward.1} parent=11 // pred_region
        _
      $region56: #{conv_forward.1} parent=11 // pred_fallthru
        _
      // Predicated region
      $region57: #{conv_forward.1} parent=11 // pred_check
        %p393 = pneg %p298
      $region58: #{conv_forward.1} parent=11 // pred_check_branch
        %395 = sbr.rel (%p393) target = $region60
      $region59: #{conv_forward.1} parent=11 // pred_region
        _
      $region60: #{conv_forward.1} parent=11 // pred_fallthru
        _
      // Predicated region
      $region61: #{conv_forward.1} parent=11 // pred_check
        %p396 = pneg %p319
      $region62: #{conv_forward.1} parent=11 // pred_check_branch
        %398 = sbr.rel (%p396) target = $region64
      $region63: #{conv_forward.1} parent=11 // pred_region
        _
      $region64: #{conv_forward.1} parent=11 // pred_fallthru
        _
    $region12: #{conv_forward.1} parent=5 // pred_fallthru
      _
    %p399 = scmp.lt.s32.totalorder %s20, 2
    // Predicated region
    $region65: #{conv_forward.1} parent=5 // pred_check
      %p400 = pneg %p399
    $region66: #{conv_forward.1} parent=5 // pred_check_branch
      %402 = sbr.rel (%p400) target = $region68
    $region67: #{conv_forward.1} parent=5 // pred_region
      // Predicated region
      $region69: #{conv_forward.1} parent=67 // pred_check
        %p403 = pneg %p40
      $region70: #{conv_forward.1} parent=67 // pred_check_branch
        %405 = sbr.rel (%p403) target = $region72
      $region71: #{conv_forward.1} parent=67 // pred_region
        %p406 = scmp.lt.s32.totalorder %s20, 1
        %s407 = scalar_select %p406, %s20, 1
        %s408 = smul.addr %s407, 32
        %s409 = smul.addr %s408, 8
        %s410 = scalar_lea.vmem %s0, %s409
      $region72: #{conv_forward.1} parent=67 // pred_fallthru
        _
    $region68: #{conv_forward.1} parent=5 // pred_fallthru
      _
    %p411 = scmp.le.s32.totalorder 1, %s20
    %p412 = scmp.lt.s32.totalorder %s20, 3
    %p413 = pnand %p411, %p412
    %p414 = pneg %p413
    // Predicated region
    $region73: #{conv_forward.1} parent=5 // pred_check
      _
    $region74: #{conv_forward.1} parent=5 // pred_check_branch
      %416 = sbr.rel (%p413) target = $region76
    $region75: #{conv_forward.1} parent=5 // pred_region
      %s417 = ssub.s32 %s20, 1
      %p418 = scmp.lt.s32.totalorder %s25, 1
      %s419 = scalar_select %p418, %s25, 1
      %s420 = smul.addr %s419, 32
      %s421 = smul.addr %s420, 8
      %s422 = scalar_lea.vmem %s0, %s421
      %p423 = pneg %p46
      %p424 = pneg %p43
      %p425 = pneg %p67
      %p426 = pneg %p64
      %p427 = pneg %p88
      %p428 = pneg %p85
      %p429 = pneg %p109
      %p430 = pneg %p106
      %p431 = pneg %p130
      %p432 = pneg %p127
      %p433 = pneg %p151
      %p434 = pneg %p148
      %p435 = pneg %p172
      %p436 = pneg %p169
      %p437 = pneg %p193
      %p438 = pneg %p190
      %p439 = pneg %p214
      %p440 = pneg %p211
      %p441 = pneg %p235
      %p442 = pneg %p232
      %p443 = pneg %p256
      %p444 = pneg %p253
      %p445 = pneg %p277
      %p446 = pneg %p274
      %p447 = pneg %p298
      %p448 = pneg %p295
      %p449 = pneg %p319
      %p450 = pneg %p316
      %p451 = pneg %p345
      %p452 = pneg %p342
      %p453 = scmp.lt.s32.totalorder %s25, 1
      %s454 = scalar_select %p453, %s25, 1
      %s455 = smul.addr %s454, 8
      %s456 = smul.addr %s455, 8
      %s457 = scalar_lea.vmem %s14, %s456
      %p458 = scmp.lt.s32.totalorder %s25, 1
      %s459 = scalar_select %p458, %s25, 1
      %s460 = smul.addr %s459, 32
      %s461 = smul.addr %s460, 8
      %s462 = scalar_lea.vmem %s0, %s461
      %p463 = scmp.lt.s32.totalorder %s25, 1
      %s464 = scalar_select %p463, %s25, 1
      %s465 = smul.addr %s464, 8
      %s466 = smul.addr %s465, 8
      %s467 = scalar_lea.vmem %s14, %s466
      %vm468 = vcmask 7168
      %469 = vst.msk [vmem:[#allocation2] sm:$0xff] %vm468, 0.0
      %470 = vst.msk [vmem:[#allocation2 + $0x8] sm:$0xff] %vm468, 0.0
      %vm471 = vcmask 1024
      %472 = vst.msk [vmem:[#allocation2 + $0x10] sm:$0x3] %vm471, 0.0
      %473 = vst.msk [vmem:[#allocation2 + $0x18] sm:$0xff] %vm468, 0.0
      %474 = vst.msk [vmem:[#allocation2 + $0x20] sm:$0xff] %vm468, 0.0
      %475 = vst.msk [vmem:[#allocation2 + $0x28] sm:$0x3] %vm471, 0.0
      %476 = vst.msk [vmem:[#allocation2 + $0x30] sm:$0xff] %vm468, 0.0
      %477 = vst.msk [vmem:[#allocation2 + $0x38] sm:$0xff] %vm468, 0.0
      %478 = vst.msk [vmem:[#allocation2 + $0x40] sm:$0x3] %vm471, 0.0
      %479 = vst.msk [vmem:[#allocation2 + $0x48] sm:$0xff] %vm468, 0.0
      %480 = vst.msk [vmem:[#allocation2 + $0x50] sm:$0xff] %vm468, 0.0
      %481 = vst.msk [vmem:[#allocation2 + $0x58] sm:$0x3] %vm471, 0.0
      %482 = vst.msk [vmem:[#allocation2 + $0x60] sm:$0xff] %vm468, 0.0
      %483 = vst.msk [vmem:[#allocation2 + $0x68] sm:$0xff] %vm468, 0.0
      %484 = vst.msk [vmem:[#allocation2 + $0x70] sm:$0x3] %vm471, 0.0
      %485 = vst.msk [vmem:[#allocation2 + $0x78] sm:$0xff] %vm468, 0.0
      %486 = vst.msk [vmem:[#allocation2 + $0x80] sm:$0xff] %vm468, 0.0
      %487 = vst.msk [vmem:[#allocation2 + $0x88] sm:$0x3] %vm471, 0.0
      %488 = vst.msk [vmem:[#allocation2 + $0x90] sm:$0xff] %vm468, 0.0
      %489 = vst.msk [vmem:[#allocation2 + $0x98] sm:$0xff] %vm468, 0.0
      %490 = vst.msk [vmem:[#allocation2 + $0xa0] sm:$0x3] %vm471, 0.0
      %491 = vst.msk [vmem:[#allocation2 + $0xa8] sm:$0xff] %vm468, 0.0
      %492 = vst.msk [vmem:[#allocation2 + $0xb0] sm:$0xff] %vm468, 0.0
      %493 = vst.msk [vmem:[#allocation2 + $0xb8] sm:$0x3] %vm471, 0.0
      %494 = vst.msk [vmem:[#allocation2 + $0xc0] sm:$0xff] %vm468, 0.0
      %495 = vst.msk [vmem:[#allocation2 + $0xc8] sm:$0xff] %vm468, 0.0
      %496 = vst.msk [vmem:[#allocation2 + $0xd0] sm:$0x3] %vm471, 0.0
      %497 = vst.msk [vmem:[#allocation2 + $0xd8] sm:$0xff] %vm468, 0.0
      %498 = vst.msk [vmem:[#allocation2 + $0xe0] sm:$0xff] %vm468, 0.0
      %499 = vst.msk [vmem:[#allocation2 + $0xe8] sm:$0x3] %vm471, 0.0
      %500 = vst.msk [vmem:[#allocation2 + $0xf0] sm:$0xff] %vm468, 0.0
      %501 = vst.msk [vmem:[#allocation2 + $0xf8] sm:$0xff] %vm468, 0.0
      %502 = vst.msk [vmem:[#allocation2 + $0x100] sm:$0x3] %vm471, 0.0
      %503 = vst.msk [vmem:[#allocation2 + $0x108] sm:$0xff] %vm468, 0.0
      %504 = vst.msk [vmem:[#allocation2 + $0x110] sm:$0xff] %vm468, 0.0
      %505 = vst.msk [vmem:[#allocation2 + $0x118] sm:$0x3] %vm471, 0.0
      %506 = vst.msk [vmem:[#allocation2 + $0x120] sm:$0xff] %vm468, 0.0
      %507 = vst.msk [vmem:[#allocation2 + $0x128] sm:$0xff] %vm468, 0.0
      %508 = vst.msk [vmem:[#allocation2 + $0x130] sm:$0x3] %vm471, 0.0
      %509 = vst.msk [vmem:[#allocation2 + $0x138] sm:$0xff] %vm468, 0.0
      %510 = vst.msk [vmem:[#allocation2 + $0x140] sm:$0xff] %vm468, 0.0
      %511 = vst.msk [vmem:[#allocation2 + $0x148] sm:$0x3] %vm471, 0.0
      %512 = vst.msk [vmem:[#allocation2 + $0x150] sm:$0xff] %vm468, 0.0
      %513 = vst.msk [vmem:[#allocation2 + $0x158] sm:$0xff] %vm468, 0.0
      %514 = vst.msk [vmem:[#allocation2 + $0x160] sm:$0x3] %vm471, 0.0
      %515 = vst.msk [vmem:[#allocation2 + $0x168] sm:$0xff] %vm468, 0.0
      %516 = vst.msk [vmem:[#allocation2 + $0x170] sm:$0xff] %vm468, 0.0
      %517 = vst.msk [vmem:[#allocation2 + $0x178] sm:$0x3] %vm471, 0.0
      %518 = vst.msk [vmem:[#allocation2 + $0x180] sm:$0xff] %vm468, 0.0
      %519 = vst.msk [vmem:[#allocation2 + $0x188] sm:$0xff] %vm468, 0.0
      %520 = vst.msk [vmem:[#allocation2 + $0x190] sm:$0x3] %vm471, 0.0
      %521 = vst.msk [vmem:[#allocation2 + $0x198] sm:$0xff] %vm468, 0.0
      %522 = vst.msk [vmem:[#allocation2 + $0x1a0] sm:$0xff] %vm468, 0.0
      %523 = vst.msk [vmem:[#allocation2 + $0x1a8] sm:$0x3] %vm471, 0.0
      %vm524 = vcmask 261120
      %525 = vst.msk [vmem:[#allocation3] sm:$0xff] %vm524, 0.0
      %526 = vst.msk [vmem:[#allocation3 + $0x8] sm:$0xff] %vm524, 0.0
      %vm527 = vcmask 254976
      %528 = vst.msk [vmem:[#allocation3 + $0x10] sm:$0x3] %vm527, 0.0
      %529 = vst.msk [vmem:[#allocation3 + $0x18] sm:$0xff] %vm524, 0.0
      %530 = vst.msk [vmem:[#allocation3 + $0x20] sm:$0xff] %vm524, 0.0
      %531 = vst.msk [vmem:[#allocation3 + $0x28] sm:$0x3] %vm527, 0.0
      %532 = vst.msk [vmem:[#allocation3 + $0x30] sm:$0xff] %vm524, 0.0
      %533 = vst.msk [vmem:[#allocation3 + $0x38] sm:$0xff] %vm524, 0.0
      %534 = vst.msk [vmem:[#allocation3 + $0x40] sm:$0x3] %vm527, 0.0
      %535 = vst.msk [vmem:[#allocation3 + $0x48] sm:$0xff] %vm524, 0.0
      %536 = vst.msk [vmem:[#allocation3 + $0x50] sm:$0xff] %vm524, 0.0
      %537 = vst.msk [vmem:[#allocation3 + $0x58] sm:$0x3] %vm527, 0.0
      %538 = vst.msk [vmem:[#allocation3 + $0x60] sm:$0xff] %vm524, 0.0
      %539 = vst.msk [vmem:[#allocation3 + $0x68] sm:$0xff] %vm524, 0.0
      %540 = vst.msk [vmem:[#allocation3 + $0x70] sm:$0x3] %vm527, 0.0
      %541 = vst.msk [vmem:[#allocation3 + $0x78] sm:$0xff] %vm524, 0.0
      %542 = vst.msk [vmem:[#allocation3 + $0x80] sm:$0xff] %vm524, 0.0
      %543 = vst.msk [vmem:[#allocation3 + $0x88] sm:$0x3] %vm527, 0.0
      %544 = vst.msk [vmem:[#allocation3 + $0x90] sm:$0xff] %vm524, 0.0
      %545 = vst.msk [vmem:[#allocation3 + $0x98] sm:$0xff] %vm524, 0.0
      %546 = vst.msk [vmem:[#allocation3 + $0xa0] sm:$0x3] %vm527, 0.0
      %547 = vst.msk [vmem:[#allocation3 + $0xa8] sm:$0xff] %vm524, 0.0
      %548 = vst.msk [vmem:[#allocation3 + $0xb0] sm:$0xff] %vm524, 0.0
      %549 = vst.msk [vmem:[#allocation3 + $0xb8] sm:$0x3] %vm527, 0.0
      %550 = vst.msk [vmem:[#allocation3 + $0xc0] sm:$0xff] %vm524, 0.0
      %551 = vst.msk [vmem:[#allocation3 + $0xc8] sm:$0xff] %vm524, 0.0
      %552 = vst.msk [vmem:[#allocation3 + $0xd0] sm:$0x3] %vm527, 0.0
      %553 = vst.msk [vmem:[#allocation3 + $0xd8] sm:$0xff] %vm524, 0.0
      %554 = vst.msk [vmem:[#allocation3 + $0xe0] sm:$0xff] %vm524, 0.0
      %555 = vst.msk [vmem:[#allocation3 + $0xe8] sm:$0x3] %vm527, 0.0
      %556 = vst.msk [vmem:[#allocation3 + $0xf0] sm:$0xff] %vm524, 0.0
      %557 = vst.msk [vmem:[#allocation3 + $0xf8] sm:$0xff] %vm524, 0.0
      %558 = vst.msk [vmem:[#allocation3 + $0x100] sm:$0x3] %vm527, 0.0
      %559 = vst.msk [vmem:[#allocation3 + $0x108] sm:$0xff] %vm524, 0.0
      %560 = vst.msk [vmem:[#allocation3 + $0x110] sm:$0xff] %vm524, 0.0
      %561 = vst.msk [vmem:[#allocation3 + $0x118] sm:$0x3] %vm527, 0.0
      %562 = vst.msk [vmem:[#allocation3 + $0x120] sm:$0xff] %vm524, 0.0
      %563 = vst.msk [vmem:[#allocation3 + $0x128] sm:$0xff] %vm524, 0.0
      %564 = vst.msk [vmem:[#allocation3 + $0x130] sm:$0x3] %vm527, 0.0
      %565 = vst.msk [vmem:[#allocation3 + $0x138] sm:$0xff] %vm524, 0.0
      %566 = vst.msk [vmem:[#allocation3 + $0x140] sm:$0xff] %vm524, 0.0
      %567 = vst.msk [vmem:[#allocation3 + $0x148] sm:$0x3] %vm527, 0.0
      %568 = vst.msk [vmem:[#allocation3 + $0x150] sm:$0xff] %vm524, 0.0
      %569 = vst.msk [vmem:[#allocation3 + $0x158] sm:$0xff] %vm524, 0.0
      %570 = vst.msk [vmem:[#allocation3 + $0x160] sm:$0x3] %vm527, 0.0
      %571 = vst.msk [vmem:[#allocation3 + $0x168] sm:$0xff] %vm524, 0.0
      %572 = vst.msk [vmem:[#allocation3 + $0x170] sm:$0xff] %vm524, 0.0
      %573 = vst.msk [vmem:[#allocation3 + $0x178] sm:$0x3] %vm527, 0.0
      %574 = vst.msk [vmem:[#allocation3 + $0x180] sm:$0xff] %vm524, 0.0
      %575 = vst.msk [vmem:[#allocation3 + $0x188] sm:$0xff] %vm524, 0.0
      %576 = vst.msk [vmem:[#allocation3 + $0x190] sm:$0x3] %vm527, 0.0
      %577 = vst.msk [vmem:[#allocation3 + $0x198] sm:$0xff] %vm524, 0.0
      %578 = vst.msk [vmem:[#allocation3 + $0x1a0] sm:$0xff] %vm524, 0.0
      %579 = vst.msk [vmem:[#allocation3 + $0x1a8] sm:$0x3] %vm527, 0.0
      %vm580 = vcmask 523264
      %581 = vst.msk [vmem:[#allocation4] sm:$0xff] %vm580, 0.0
      %vm582 = vcmask 517120
      %583 = vst.msk [vmem:[#allocation4 + $0x8] sm:$0x3] %vm582, 0.0
      %584 = vst.msk [vmem:[#allocation4 + $0x10] sm:$0xff] %vm580, 0.0
      %585 = vst.msk [vmem:[#allocation4 + $0x18] sm:$0x3] %vm582, 0.0
      %586 = vst.msk [vmem:[#allocation4 + $0x20] sm:$0xff] %vm580, 0.0
      %587 = vst.msk [vmem:[#allocation4 + $0x28] sm:$0x3] %vm582, 0.0
      %588 = vst.msk [vmem:[#allocation4 + $0x30] sm:$0xff] %vm580, 0.0
      %589 = vst.msk [vmem:[#allocation4 + $0x38] sm:$0x3] %vm582, 0.0
      %590 = vst.msk [vmem:[#allocation4 + $0x40] sm:$0xff] %vm580, 0.0
      %591 = vst.msk [vmem:[#allocation4 + $0x48] sm:$0x3] %vm582, 0.0
      %592 = vst.msk [vmem:[#allocation4 + $0x50] sm:$0xff] %vm580, 0.0
      %593 = vst.msk [vmem:[#allocation4 + $0x58] sm:$0x3] %vm582, 0.0
      %594 = vst.msk [vmem:[#allocation4 + $0x60] sm:$0xff] %vm580, 0.0
      %595 = vst.msk [vmem:[#allocation4 + $0x68] sm:$0x3] %vm582, 0.0
      %596 = vst.msk [vmem:[#allocation4 + $0x70] sm:$0xff] %vm580, 0.0
      %597 = vst.msk [vmem:[#allocation4 + $0x78] sm:$0x3] %vm582, 0.0
      %598 = vst.msk [vmem:[#allocation4 + $0x80] sm:$0xff] %vm580, 0.0
      %599 = vst.msk [vmem:[#allocation4 + $0x88] sm:$0x3] %vm582, 0.0
      %600 = vst.msk [vmem:[#allocation4 + $0x90] sm:$0xff] %vm580, 0.0
      %601 = vst.msk [vmem:[#allocation4 + $0x98] sm:$0x3] %vm582, 0.0
      %602 = vst.msk [vmem:[#allocation5] sm:$0xff] %vm524, 0.0
      %603 = vst.msk [vmem:[#allocation5 + $0x8] sm:$0x3] %vm527, 0.0
      %604 = vst.msk [vmem:[#allocation5 + $0x10] sm:$0xff] %vm524, 0.0
      %605 = vst.msk [vmem:[#allocation5 + $0x18] sm:$0x3] %vm527, 0.0
      %606 = vst.msk [vmem:[#allocation5 + $0x20] sm:$0xff] %vm524, 0.0
      %607 = vst.msk [vmem:[#allocation5 + $0x28] sm:$0x3] %vm527, 0.0
      %608 = vst.msk [vmem:[#allocation5 + $0x30] sm:$0xff] %vm524, 0.0
      %609 = vst.msk [vmem:[#allocation5 + $0x38] sm:$0x3] %vm527, 0.0
      %610 = vst.msk [vmem:[#allocation5 + $0x40] sm:$0xff] %vm524, 0.0
      %611 = vst.msk [vmem:[#allocation5 + $0x48] sm:$0x3] %vm527, 0.0
      %612 = vst.msk [vmem:[#allocation5 + $0x50] sm:$0xff] %vm524, 0.0
      %613 = vst.msk [vmem:[#allocation5 + $0x58] sm:$0x3] %vm527, 0.0
      %614 = vst.msk [vmem:[#allocation5 + $0x60] sm:$0xff] %vm524, 0.0
      %615 = vst.msk [vmem:[#allocation5 + $0x68] sm:$0x3] %vm527, 0.0
      %616 = vst.msk [vmem:[#allocation5 + $0x70] sm:$0xff] %vm524, 0.0
      %617 = vst.msk [vmem:[#allocation5 + $0x78] sm:$0x3] %vm527, 0.0
      %618 = vst.msk [vmem:[#allocation5 + $0x80] sm:$0xff] %vm524, 0.0
      %619 = vst.msk [vmem:[#allocation5 + $0x88] sm:$0x3] %vm527, 0.0
      %620 = vst.msk [vmem:[#allocation5 + $0x90] sm:$0xff] %vm524, 0.0
      %621 = vst.msk [vmem:[#allocation5 + $0x98] sm:$0x3] %vm527, 0.0
      %v622 = vld [vmem:[%s462] sm:$0xff]
      %v623 = vld [vmem:[%s462 + $0x8] sm:$0xff]
      %v624 = vld [vmem:[%s462 + $0x10] sm:$0xff]
      %v625 = vld [vmem:[%s462 + $0x18] sm:$0xff]
      %v626 = vld [vmem:[%s462 + $0x20] sm:$0xff]
      %v627 = vld [vmem:[%s462 + $0x28] sm:$0xff]
      %v628 = vld [vmem:[%s462 + $0x30] sm:$0xff]
      %v629 = vld [vmem:[%s462 + $0x38] sm:$0xff]
      %v630 = vld [vmem:[%s462 + $0x40] sm:$0xff]
      %v631 = vld [vmem:[%s462 + $0x48] sm:$0xff]
      %v632 = vld [vmem:[%s462 + $0x50] sm:$0xff]
      %v633 = vld [vmem:[%s462 + $0x58] sm:$0xff]
      %v634 = vld [vmem:[%s462 + $0x60] sm:$0xff]
      %v635 = vld [vmem:[%s462 + $0x68] sm:$0xff]
      %v636 = vld [vmem:[%s462 + $0x70] sm:$0xff]
      %v637 = vld [vmem:[%s462 + $0x78] sm:$0xff]
      %v638 = vld [vmem:[%s462 + $0x80] sm:$0xff]
      %v639 = vld [vmem:[%s462 + $0x88] sm:$0xff]
      %v640 = vld [vmem:[%s462 + $0x90] sm:$0xff]
      %v641 = vld [vmem:[%s462 + $0x98] sm:$0xff]
      %v642 = vld [vmem:[%s462 + $0xa0] sm:$0xff]
      %v643 = vld [vmem:[%s462 + $0xa8] sm:$0xff]
      %v644 = vld [vmem:[%s462 + $0xb0] sm:$0xff]
      %v645 = vld [vmem:[%s462 + $0xb8] sm:$0xff]
      %v646 = vld [vmem:[%s462 + $0xc0] sm:$0xff]
      %v647 = vld [vmem:[%s462 + $0xc8] sm:$0xff]
      %v648 = vld [vmem:[%s462 + $0xd0] sm:$0xff]
      %v649 = vld [vmem:[%s462 + $0xd8] sm:$0xff]
      %v650 = vld [vmem:[%s462 + $0xe0] sm:$0xff]
      %v651 = vld [vmem:[%s462 + $0xe8] sm:$0xff]
      %v652 = vld [vmem:[%s462 + $0xf0] sm:$0xff]
      %v653 = vld [vmem:[%s462 + $0xf8] sm:$0xff]
      %s654 = scalar_lea.vmem [#allocation2], 24
      %655 = vst.msk [vmem:[%s654 + $0x1] sm:$0xff] %vm468, %v622
      %656 = vst.msk [vmem:[%s654 + $0x9] sm:$0xff] %vm468, %v623
      %657 = vst.msk [vmem:[%s654 + $0x19] sm:$0xff] %vm468, %v624
      %658 = vst.msk [vmem:[%s654 + $0x21] sm:$0xff] %vm468, %v625
      %659 = vst.msk [vmem:[%s654 + $0x31] sm:$0xff] %vm468, %v626
      %660 = vst.msk [vmem:[%s654 + $0x39] sm:$0xff] %vm468, %v627
      %661 = vst.msk [vmem:[%s654 + $0x49] sm:$0xff] %vm468, %v628
      %662 = vst.msk [vmem:[%s654 + $0x51] sm:$0xff] %vm468, %v629
      %663 = vst.msk [vmem:[%s654 + $0x61] sm:$0xff] %vm468, %v630
      %664 = vst.msk [vmem:[%s654 + $0x69] sm:$0xff] %vm468, %v631
      %665 = vst.msk [vmem:[%s654 + $0x79] sm:$0xff] %vm468, %v632
      %666 = vst.msk [vmem:[%s654 + $0x81] sm:$0xff] %vm468, %v633
      %667 = vst.msk [vmem:[%s654 + $0x91] sm:$0xff] %vm468, %v634
      %668 = vst.msk [vmem:[%s654 + $0x99] sm:$0xff] %vm468, %v635
      %669 = vst.msk [vmem:[%s654 + $0xa9] sm:$0xff] %vm468, %v636
      %670 = vst.msk [vmem:[%s654 + $0xb1] sm:$0xff] %vm468, %v637
      %671 = vst.msk [vmem:[%s654 + $0xc1] sm:$0xff] %vm468, %v638
      %672 = vst.msk [vmem:[%s654 + $0xc9] sm:$0xff] %vm468, %v639
      %673 = vst.msk [vmem:[%s654 + $0xd9] sm:$0xff] %vm468, %v640
      %674 = vst.msk [vmem:[%s654 + $0xe1] sm:$0xff] %vm468, %v641
      %675 = vst.msk [vmem:[%s654 + $0xf1] sm:$0xff] %vm468, %v642
      %676 = vst.msk [vmem:[%s654 + $0xf9] sm:$0xff] %vm468, %v643
      %677 = vst.msk [vmem:[%s654 + $0x109] sm:$0xff] %vm468, %v644
      %678 = vst.msk [vmem:[%s654 + $0x111] sm:$0xff] %vm468, %v645
      %679 = vst.msk [vmem:[%s654 + $0x121] sm:$0xff] %vm468, %v646
      %680 = vst.msk [vmem:[%s654 + $0x129] sm:$0xff] %vm468, %v647
      %681 = vst.msk [vmem:[%s654 + $0x139] sm:$0xff] %vm468, %v648
      %682 = vst.msk [vmem:[%s654 + $0x141] sm:$0xff] %vm468, %v649
      %683 = vst.msk [vmem:[%s654 + $0x151] sm:$0xff] %vm468, %v650
      %684 = vst.msk [vmem:[%s654 + $0x159] sm:$0xff] %vm468, %v651
      %685 = vst.msk [vmem:[%s654 + $0x169] sm:$0xff] %vm468, %v652
      %686 = vst.msk [vmem:[%s654 + $0x171] sm:$0xff] %vm468, %v653
      %v687 = vld [vmem:[#allocation2] sm:$0xff]
      %v688 = vld [vmem:[#allocation2 + $0x8] sm:$0xff]
      %v689 = vld [vmem:[#allocation2 + $0x18] sm:$0xff]
      %v690 = vld [vmem:[#allocation2 + $0x20] sm:$0xff]
      %v691 = vld [vmem:[#allocation2 + $0x30] sm:$0xff]
      %v692 = vld [vmem:[#allocation2 + $0x38] sm:$0xff]
      %v693 = vld [vmem:[#allocation2 + $0x48] sm:$0xff]
      %v694 = vld [vmem:[#allocation2 + $0x50] sm:$0xff]
      %v695 = vld [vmem:[#allocation2 + $0x60] sm:$0xff]
      %v696 = vld [vmem:[#allocation2 + $0x68] sm:$0xff]
      %v697 = vld [vmem:[#allocation2 + $0x78] sm:$0xff]
      %v698 = vld [vmem:[#allocation2 + $0x80] sm:$0xff]
      %v699 = vld [vmem:[#allocation2 + $0x90] sm:$0xff]
      %v700 = vld [vmem:[#allocation2 + $0x98] sm:$0xff]
      %v701 = vld [vmem:[#allocation2 + $0xa8] sm:$0xff]
      %v702 = vld [vmem:[#allocation2 + $0xb0] sm:$0xff]
      %v703 = vld [vmem:[#allocation2 + $0xc0] sm:$0xff]
      %v704 = vld [vmem:[#allocation2 + $0xc8] sm:$0xff]
      %v705 = vld [vmem:[#allocation2 + $0xd8] sm:$0xff]
      %v706 = vld [vmem:[#allocation2 + $0xe0] sm:$0xff]
      %v707 = vld [vmem:[#allocation2 + $0xf0] sm:$0xff]
      %v708 = vld [vmem:[#allocation2 + $0xf8] sm:$0xff]
      %v709 = vld [vmem:[#allocation2 + $0x108] sm:$0xff]
      %v710 = vld [vmem:[#allocation2 + $0x110] sm:$0xff]
      %v711 = vld [vmem:[#allocation2 + $0x120] sm:$0xff]
      %v712 = vld [vmem:[#allocation2 + $0x128] sm:$0xff]
      %v713 = vld [vmem:[#allocation2 + $0x138] sm:$0xff]
      %v714 = vld [vmem:[#allocation2 + $0x140] sm:$0xff]
      %v715 = vld [vmem:[#allocation2 + $0x150] sm:$0xff]
      %v716 = vld [vmem:[#allocation2 + $0x158] sm:$0xff]
      %v717 = vld [vmem:[#allocation2 + $0x168] sm:$0xff]
      %v718 = vld [vmem:[#allocation2 + $0x170] sm:$0xff]
      %v719 = vld [vmem:[#allocation2 + $0x1] sm:$0xff]
      %v720 = vld [vmem:[#allocation2 + $0x9] sm:$0xff]
      %v721 = vld [vmem:[#allocation2 + $0x19] sm:$0xff]
      %v722 = vld [vmem:[#allocation2 + $0x21] sm:$0xff]
      %v723 = vld [vmem:[#allocation2 + $0x31] sm:$0xff]
      %v724 = vld [vmem:[#allocation2 + $0x39] sm:$0xff]
      %v725 = vld [vmem:[#allocation2 + $0x49] sm:$0xff]
      %v726 = vld [vmem:[#allocation2 + $0x51] sm:$0xff]
      %v727 = vld [vmem:[#allocation2 + $0x61] sm:$0xff]
      %v728 = vld [vmem:[#allocation2 + $0x69] sm:$0xff]
      %v729 = vld [vmem:[#allocation2 + $0x79] sm:$0xff]
      %v730 = vld [vmem:[#allocation2 + $0x81] sm:$0xff]
      %v731 = vld [vmem:[#allocation2 + $0x91] sm:$0xff]
      %v732 = vld [vmem:[#allocation2 + $0x99] sm:$0xff]
      %v733 = vld [vmem:[#allocation2 + $0xa9] sm:$0xff]
      %v734 = vld [vmem:[#allocation2 + $0xb1] sm:$0xff]
      %v735 = vld [vmem:[#allocation2 + $0xc1] sm:$0xff]
      %v736 = vld [vmem:[#allocation2 + $0xc9] sm:$0xff]
      %v737 = vld [vmem:[#allocation2 + $0xd9] sm:$0xff]
      %v738 = vld [vmem:[#allocation2 + $0xe1] sm:$0xff]
      %v739 = vld [vmem:[#allocation2 + $0xf1] sm:$0xff]
      %v740 = vld [vmem:[#allocation2 + $0xf9] sm:$0xff]
      %v741 = vld [vmem:[#allocation2 + $0x109] sm:$0xff]
      %v742 = vld [vmem:[#allocation2 + $0x111] sm:$0xff]
      %v743 = vld [vmem:[#allocation2 + $0x121] sm:$0xff]
      %v744 = vld [vmem:[#allocation2 + $0x129] sm:$0xff]
      %v745 = vld [vmem:[#allocation2 + $0x139] sm:$0xff]
      %v746 = vld [vmem:[#allocation2 + $0x141] sm:$0xff]
      %v747 = vld [vmem:[#allocation2 + $0x151] sm:$0xff]
      %v748 = vld [vmem:[#allocation2 + $0x159] sm:$0xff]
      %v749 = vld [vmem:[#allocation2 + $0x169] sm:$0xff]
      %v750 = vld [vmem:[#allocation2 + $0x171] sm:$0xff]
      %v751 = vld [vmem:[#allocation2 + $0x2] sm:$0xff]
      %v752 = vld [vmem:[#allocation2 + $0xa] sm:$0xff]
      %v753 = vld [vmem:[#allocation2 + $0x1a] sm:$0xff]
      %v754 = vld [vmem:[#allocation2 + $0x22] sm:$0xff]
      %v755 = vld [vmem:[#allocation2 + $0x32] sm:$0xff]
      %v756 = vld [vmem:[#allocation2 + $0x3a] sm:$0xff]
      %v757 = vld [vmem:[#allocation2 + $0x4a] sm:$0xff]
      %v758 = vld [vmem:[#allocation2 + $0x52] sm:$0xff]
      %v759 = vld [vmem:[#allocation2 + $0x62] sm:$0xff]
      %v760 = vld [vmem:[#allocation2 + $0x6a] sm:$0xff]
      %v761 = vld [vmem:[#allocation2 + $0x7a] sm:$0xff]
      %v762 = vld [vmem:[#allocation2 + $0x82] sm:$0xff]
      %v763 = vld [vmem:[#allocation2 + $0x92] sm:$0xff]
      %v764 = vld [vmem:[#allocation2 + $0x9a] sm:$0xff]
      %v765 = vld [vmem:[#allocation2 + $0xaa] sm:$0xff]
      %v766 = vld [vmem:[#allocation2 + $0xb2] sm:$0xff]
      %v767 = vld [vmem:[#allocation2 + $0xc2] sm:$0xff]
      %v768 = vld [vmem:[#allocation2 + $0xca] sm:$0xff]
      %v769 = vld [vmem:[#allocation2 + $0xda] sm:$0xff]
      %v770 = vld [vmem:[#allocation2 + $0xe2] sm:$0xff]
      %v771 = vld [vmem:[#allocation2 + $0xf2] sm:$0xff]
      %v772 = vld [vmem:[#allocation2 + $0xfa] sm:$0xff]
      %v773 = vld [vmem:[#allocation2 + $0x10a] sm:$0xff]
      %v774 = vld [vmem:[#allocation2 + $0x112] sm:$0xff]
      %v775 = vld [vmem:[#allocation2 + $0x122] sm:$0xff]
      %v776 = vld [vmem:[#allocation2 + $0x12a] sm:$0xff]
      %v777 = vld [vmem:[#allocation2 + $0x13a] sm:$0xff]
      %v778 = vld [vmem:[#allocation2 + $0x142] sm:$0xff]
      %v779 = vld [vmem:[#allocation2 + $0x152] sm:$0xff]
      %v780 = vld [vmem:[#allocation2 + $0x15a] sm:$0xff]
      %v781 = vld [vmem:[#allocation2 + $0x16a] sm:$0xff]
      %v782 = vld [vmem:[#allocation2 + $0x172] sm:$0xff]
      %v783 = vld [vmem:[%s654] sm:$0xff]
      %v784 = vld [vmem:[%s654 + $0x8] sm:$0xff]
      %v785 = vld [vmem:[%s654 + $0x18] sm:$0xff]
      %v786 = vld [vmem:[%s654 + $0x20] sm:$0xff]
      %v787 = vld [vmem:[%s654 + $0x30] sm:$0xff]
      %v788 = vld [vmem:[%s654 + $0x38] sm:$0xff]
      %v789 = vld [vmem:[%s654 + $0x48] sm:$0xff]
      %v790 = vld [vmem:[%s654 + $0x50] sm:$0xff]
      %v791 = vld [vmem:[%s654 + $0x60] sm:$0xff]
      %v792 = vld [vmem:[%s654 + $0x68] sm:$0xff]
      %v793 = vld [vmem:[%s654 + $0x78] sm:$0xff]
      %v794 = vld [vmem:[%s654 + $0x80] sm:$0xff]
      %v795 = vld [vmem:[%s654 + $0x90] sm:$0xff]
      %v796 = vld [vmem:[%s654 + $0x98] sm:$0xff]
      %v797 = vld [vmem:[%s654 + $0xa8] sm:$0xff]
      %v798 = vld [vmem:[%s654 + $0xb0] sm:$0xff]
      %v799 = vld [vmem:[%s654 + $0xc0] sm:$0xff]
      %v800 = vld [vmem:[%s654 + $0xc8] sm:$0xff]
      %v801 = vld [vmem:[%s654 + $0xd8] sm:$0xff]
      %v802 = vld [vmem:[%s654 + $0xe0] sm:$0xff]
      %v803 = vld [vmem:[%s654 + $0xf0] sm:$0xff]
      %v804 = vld [vmem:[%s654 + $0xf8] sm:$0xff]
      %v805 = vld [vmem:[%s654 + $0x108] sm:$0xff]
      %v806 = vld [vmem:[%s654 + $0x110] sm:$0xff]
      %v807 = vld [vmem:[%s654 + $0x120] sm:$0xff]
      %v808 = vld [vmem:[%s654 + $0x128] sm:$0xff]
      %v809 = vld [vmem:[%s654 + $0x138] sm:$0xff]
      %v810 = vld [vmem:[%s654 + $0x140] sm:$0xff]
      %v811 = vld [vmem:[%s654 + $0x150] sm:$0xff]
      %v812 = vld [vmem:[%s654 + $0x158] sm:$0xff]
      %v813 = vld [vmem:[%s654 + $0x168] sm:$0xff]
      %v814 = vld [vmem:[%s654 + $0x170] sm:$0xff]
      %v815 = vld [vmem:[%s654 + $0x1] sm:$0xff]
      %v816 = vld [vmem:[%s654 + $0x9] sm:$0xff]
      %v817 = vld [vmem:[%s654 + $0x19] sm:$0xff]
      %v818 = vld [vmem:[%s654 + $0x21] sm:$0xff]
      %v819 = vld [vmem:[%s654 + $0x31] sm:$0xff]
      %v820 = vld [vmem:[%s654 + $0x39] sm:$0xff]
      %v821 = vld [vmem:[%s654 + $0x49] sm:$0xff]
      %v822 = vld [vmem:[%s654 + $0x51] sm:$0xff]
      %v823 = vld [vmem:[%s654 + $0x61] sm:$0xff]
      %v824 = vld [vmem:[%s654 + $0x69] sm:$0xff]
      %v825 = vld [vmem:[%s654 + $0x79] sm:$0xff]
      %v826 = vld [vmem:[%s654 + $0x81] sm:$0xff]
      %v827 = vld [vmem:[%s654 + $0x91] sm:$0xff]
      %v828 = vld [vmem:[%s654 + $0x99] sm:$0xff]
      %v829 = vld [vmem:[%s654 + $0xa9] sm:$0xff]
      %v830 = vld [vmem:[%s654 + $0xb1] sm:$0xff]
      %v831 = vld [vmem:[%s654 + $0xc1] sm:$0xff]
      %v832 = vld [vmem:[%s654 + $0xc9] sm:$0xff]
      %v833 = vld [vmem:[%s654 + $0xd9] sm:$0xff]
      %v834 = vld [vmem:[%s654 + $0xe1] sm:$0xff]
      %v835 = vld [vmem:[%s654 + $0xf1] sm:$0xff]
      %v836 = vld [vmem:[%s654 + $0xf9] sm:$0xff]
      %v837 = vld [vmem:[%s654 + $0x109] sm:$0xff]
      %v838 = vld [vmem:[%s654 + $0x111] sm:$0xff]
      %v839 = vld [vmem:[%s654 + $0x121] sm:$0xff]
      %v840 = vld [vmem:[%s654 + $0x129] sm:$0xff]
      %v841 = vld [vmem:[%s654 + $0x139] sm:$0xff]
      %v842 = vld [vmem:[%s654 + $0x141] sm:$0xff]
      %v843 = vld [vmem:[%s654 + $0x151] sm:$0xff]
      %v844 = vld [vmem:[%s654 + $0x159] sm:$0xff]
      %v845 = vld [vmem:[%s654 + $0x169] sm:$0xff]
      %v846 = vld [vmem:[%s654 + $0x171] sm:$0xff]
      %v847 = vld [vmem:[%s654 + $0x2] sm:$0xff]
      %v848 = vld [vmem:[%s654 + $0xa] sm:$0xff]
      %v849 = vld [vmem:[%s654 + $0x1a] sm:$0xff]
      %v850 = vld [vmem:[%s654 + $0x22] sm:$0xff]
      %v851 = vld [vmem:[%s654 + $0x32] sm:$0xff]
      %v852 = vld [vmem:[%s654 + $0x3a] sm:$0xff]
      %v853 = vld [vmem:[%s654 + $0x4a] sm:$0xff]
      %v854 = vld [vmem:[%s654 + $0x52] sm:$0xff]
      %v855 = vld [vmem:[%s654 + $0x62] sm:$0xff]
      %v856 = vld [vmem:[%s654 + $0x6a] sm:$0xff]
      %v857 = vld [vmem:[%s654 + $0x7a] sm:$0xff]
      %v858 = vld [vmem:[%s654 + $0x82] sm:$0xff]
      %v859 = vld [vmem:[%s654 + $0x92] sm:$0xff]
      %v860 = vld [vmem:[%s654 + $0x9a] sm:$0xff]
      %v861 = vld [vmem:[%s654 + $0xaa] sm:$0xff]
      %v862 = vld [vmem:[%s654 + $0xb2] sm:$0xff]
      %v863 = vld [vmem:[%s654 + $0xc2] sm:$0xff]
      %v864 = vld [vmem:[%s654 + $0xca] sm:$0xff]
      %v865 = vld [vmem:[%s654 + $0xda] sm:$0xff]
      %v866 = vld [vmem:[%s654 + $0xe2] sm:$0xff]
      %v867 = vld [vmem:[%s654 + $0xf2] sm:$0xff]
      %v868 = vld [vmem:[%s654 + $0xfa] sm:$0xff]
      %v869 = vld [vmem:[%s654 + $0x10a] sm:$0xff]
      %v870 = vld [vmem:[%s654 + $0x112] sm:$0xff]
      %v871 = vld [vmem:[%s654 + $0x122] sm:$0xff]
      %v872 = vld [vmem:[%s654 + $0x12a] sm:$0xff]
      %v873 = vld [vmem:[%s654 + $0x13a] sm:$0xff]
      %v874 = vld [vmem:[%s654 + $0x142] sm:$0xff]
      %v875 = vld [vmem:[%s654 + $0x152] sm:$0xff]
      %v876 = vld [vmem:[%s654 + $0x15a] sm:$0xff]
      %v877 = vld [vmem:[%s654 + $0x16a] sm:$0xff]
      %v878 = vld [vmem:[%s654 + $0x172] sm:$0xff]
      %s879 = scalar_lea.vmem [#allocation2], 48
      %v880 = vld [vmem:[%s879] sm:$0xff]
      %v881 = vld [vmem:[%s879 + $0x8] sm:$0xff]
      %v882 = vld [vmem:[%s879 + $0x18] sm:$0xff]
      %v883 = vld [vmem:[%s879 + $0x20] sm:$0xff]
      %v884 = vld [vmem:[%s879 + $0x30] sm:$0xff]
      %v885 = vld [vmem:[%s879 + $0x38] sm:$0xff]
      %v886 = vld [vmem:[%s879 + $0x48] sm:$0xff]
      %v887 = vld [vmem:[%s879 + $0x50] sm:$0xff]
      %v888 = vld [vmem:[%s879 + $0x60] sm:$0xff]
      %v889 = vld [vmem:[%s879 + $0x68] sm:$0xff]
      %v890 = vld [vmem:[%s879 + $0x78] sm:$0xff]
      %v891 = vld [vmem:[%s879 + $0x80] sm:$0xff]
      %v892 = vld [vmem:[%s879 + $0x90] sm:$0xff]
      %v893 = vld [vmem:[%s879 + $0x98] sm:$0xff]
      %v894 = vld [vmem:[%s879 + $0xa8] sm:$0xff]
      %v895 = vld [vmem:[%s879 + $0xb0] sm:$0xff]
      %v896 = vld [vmem:[%s879 + $0xc0] sm:$0xff]
      %v897 = vld [vmem:[%s879 + $0xc8] sm:$0xff]
      %v898 = vld [vmem:[%s879 + $0xd8] sm:$0xff]
      %v899 = vld [vmem:[%s879 + $0xe0] sm:$0xff]
      %v900 = vld [vmem:[%s879 + $0xf0] sm:$0xff]
      %v901 = vld [vmem:[%s879 + $0xf8] sm:$0xff]
      %v902 = vld [vmem:[%s879 + $0x108] sm:$0xff]
      %v903 = vld [vmem:[%s879 + $0x110] sm:$0xff]
      %v904 = vld [vmem:[%s879 + $0x120] sm:$0xff]
      %v905 = vld [vmem:[%s879 + $0x128] sm:$0xff]
      %v906 = vld [vmem:[%s879 + $0x138] sm:$0xff]
      %v907 = vld [vmem:[%s879 + $0x140] sm:$0xff]
      %v908 = vld [vmem:[%s879 + $0x150] sm:$0xff]
      %v909 = vld [vmem:[%s879 + $0x158] sm:$0xff]
      %v910 = vld [vmem:[%s879 + $0x168] sm:$0xff]
      %v911 = vld [vmem:[%s879 + $0x170] sm:$0xff]
      %v912 = vld [vmem:[%s879 + $0x1] sm:$0xff]
      %v913 = vld [vmem:[%s879 + $0x9] sm:$0xff]
      %v914 = vld [vmem:[%s879 + $0x19] sm:$0xff]
      %v915 = vld [vmem:[%s879 + $0x21] sm:$0xff]
      %v916 = vld [vmem:[%s879 + $0x31] sm:$0xff]
      %v917 = vld [vmem:[%s879 + $0x39] sm:$0xff]
      %v918 = vld [vmem:[%s879 + $0x49] sm:$0xff]
      %v919 = vld [vmem:[%s879 + $0x51] sm:$0xff]
      %v920 = vld [vmem:[%s879 + $0x61] sm:$0xff]
      %v921 = vld [vmem:[%s879 + $0x69] sm:$0xff]
      %v922 = vld [vmem:[%s879 + $0x79] sm:$0xff]
      %v923 = vld [vmem:[%s879 + $0x81] sm:$0xff]
      %v924 = vld [vmem:[%s879 + $0x91] sm:$0xff]
      %v925 = vld [vmem:[%s879 + $0x99] sm:$0xff]
      %v926 = vld [vmem:[%s879 + $0xa9] sm:$0xff]
      %v927 = vld [vmem:[%s879 + $0xb1] sm:$0xff]
      %v928 = vld [vmem:[%s879 + $0xc1] sm:$0xff]
      %v929 = vld [vmem:[%s879 + $0xc9] sm:$0xff]
      %v930 = vld [vmem:[%s879 + $0xd9] sm:$0xff]
      %v931 = vld [vmem:[%s879 + $0xe1] sm:$0xff]
      %v932 = vld [vmem:[%s879 + $0xf1] sm:$0xff]
      %v933 = vld [vmem:[%s879 + $0xf9] sm:$0xff]
      %v934 = vld [vmem:[%s879 + $0x109] sm:$0xff]
      %v935 = vld [vmem:[%s879 + $0x111] sm:$0xff]
      %v936 = vld [vmem:[%s879 + $0x121] sm:$0xff]
      %v937 = vld [vmem:[%s879 + $0x129] sm:$0xff]
      %v938 = vld [vmem:[%s879 + $0x139] sm:$0xff]
      %v939 = vld [vmem:[%s879 + $0x141] sm:$0xff]
      %v940 = vld [vmem:[%s879 + $0x151] sm:$0xff]
      %v941 = vld [vmem:[%s879 + $0x159] sm:$0xff]
      %v942 = vld [vmem:[%s879 + $0x169] sm:$0xff]
      %v943 = vld [vmem:[%s879 + $0x171] sm:$0xff]
      %v944 = vld [vmem:[%s879 + $0x2] sm:$0xff]
      %v945 = vld [vmem:[%s879 + $0xa] sm:$0xff]
      %v946 = vld [vmem:[%s879 + $0x1a] sm:$0xff]
      %v947 = vld [vmem:[%s879 + $0x22] sm:$0xff]
      %v948 = vld [vmem:[%s879 + $0x32] sm:$0xff]
      %v949 = vld [vmem:[%s879 + $0x3a] sm:$0xff]
      %v950 = vld [vmem:[%s879 + $0x4a] sm:$0xff]
      %v951 = vld [vmem:[%s879 + $0x52] sm:$0xff]
      %v952 = vld [vmem:[%s879 + $0x62] sm:$0xff]
      %v953 = vld [vmem:[%s879 + $0x6a] sm:$0xff]
      %v954 = vld [vmem:[%s879 + $0x7a] sm:$0xff]
      %v955 = vld [vmem:[%s879 + $0x82] sm:$0xff]
      %v956 = vld [vmem:[%s879 + $0x92] sm:$0xff]
      %v957 = vld [vmem:[%s879 + $0x9a] sm:$0xff]
      %v958 = vld [vmem:[%s879 + $0xaa] sm:$0xff]
      %v959 = vld [vmem:[%s879 + $0xb2] sm:$0xff]
      %v960 = vld [vmem:[%s879 + $0xc2] sm:$0xff]
      %v961 = vld [vmem:[%s879 + $0xca] sm:$0xff]
      %v962 = vld [vmem:[%s879 + $0xda] sm:$0xff]
      %v963 = vld [vmem:[%s879 + $0xe2] sm:$0xff]
      %v964 = vld [vmem:[%s879 + $0xf2] sm:$0xff]
      %v965 = vld [vmem:[%s879 + $0xfa] sm:$0xff]
      %v966 = vld [vmem:[%s879 + $0x10a] sm:$0xff]
      %v967 = vld [vmem:[%s879 + $0x112] sm:$0xff]
      %v968 = vld [vmem:[%s879 + $0x122] sm:$0xff]
      %v969 = vld [vmem:[%s879 + $0x12a] sm:$0xff]
      %v970 = vld [vmem:[%s879 + $0x13a] sm:$0xff]
      %v971 = vld [vmem:[%s879 + $0x142] sm:$0xff]
      %v972 = vld [vmem:[%s879 + $0x152] sm:$0xff]
      %v973 = vld [vmem:[%s879 + $0x15a] sm:$0xff]
      %v974 = vld [vmem:[%s879 + $0x16a] sm:$0xff]
      %v975 = vld [vmem:[%s879 + $0x172] sm:$0xff]
      %1008 = vrot.lane.b32.xlu0 %v719, 1
      %v1009 = vpop.permute.xlu0 %1008
      %1010 = vrot.lane.b32.xlu0 %v720, 1
      %v1011 = vpop.permute.xlu0 %1010
      %1012 = vrot.lane.b32.xlu0 %v721, 1
      %v1013 = vpop.permute.xlu0 %1012
      %1014 = vrot.lane.b32.xlu0 %v722, 1
      %v1015 = vpop.permute.xlu0 %1014
      %1016 = vrot.lane.b32.xlu0 %v723, 1
      %v1017 = vpop.permute.xlu0 %1016
      %1018 = vrot.lane.b32.xlu0 %v724, 1
      %v1019 = vpop.permute.xlu0 %1018
      %1020 = vrot.lane.b32.xlu0 %v725, 1
      %v1021 = vpop.permute.xlu0 %1020
      %1022 = vrot.lane.b32.xlu0 %v726, 1
      %v1023 = vpop.permute.xlu0 %1022
      %1024 = vrot.lane.b32.xlu0 %v727, 1
      %v1025 = vpop.permute.xlu0 %1024
      %1026 = vrot.lane.b32.xlu0 %v728, 1
      %v1027 = vpop.permute.xlu0 %1026
      %1028 = vrot.lane.b32.xlu0 %v729, 1
      %v1029 = vpop.permute.xlu0 %1028
      %1030 = vrot.lane.b32.xlu0 %v730, 1
      %v1031 = vpop.permute.xlu0 %1030
      %1032 = vrot.lane.b32.xlu0 %v731, 1
      %v1033 = vpop.permute.xlu0 %1032
      %1034 = vrot.lane.b32.xlu0 %v732, 1
      %v1035 = vpop.permute.xlu0 %1034
      %1036 = vrot.lane.b32.xlu0 %v733, 1
      %v1037 = vpop.permute.xlu0 %1036
      %1038 = vrot.lane.b32.xlu0 %v734, 1
      %v1039 = vpop.permute.xlu0 %1038
      %1040 = vrot.lane.b32.xlu0 %v735, 1
      %v1041 = vpop.permute.xlu0 %1040
      %1042 = vrot.lane.b32.xlu0 %v736, 1
      %v1043 = vpop.permute.xlu0 %1042
      %1044 = vrot.lane.b32.xlu0 %v737, 1
      %v1045 = vpop.permute.xlu0 %1044
      %1046 = vrot.lane.b32.xlu0 %v738, 1
      %v1047 = vpop.permute.xlu0 %1046
      %1048 = vrot.lane.b32.xlu0 %v739, 1
      %v1049 = vpop.permute.xlu0 %1048
      %1050 = vrot.lane.b32.xlu0 %v740, 1
      %v1051 = vpop.permute.xlu0 %1050
      %1052 = vrot.lane.b32.xlu0 %v741, 1
      %v1053 = vpop.permute.xlu0 %1052
      %1054 = vrot.lane.b32.xlu0 %v742, 1
      %v1055 = vpop.permute.xlu0 %1054
      %1056 = vrot.lane.b32.xlu0 %v743, 1
      %v1057 = vpop.permute.xlu0 %1056
      %1058 = vrot.lane.b32.xlu0 %v744, 1
      %v1059 = vpop.permute.xlu0 %1058
      %1060 = vrot.lane.b32.xlu0 %v745, 1
      %v1061 = vpop.permute.xlu0 %1060
      %1062 = vrot.lane.b32.xlu0 %v746, 1
      %v1063 = vpop.permute.xlu0 %1062
      %1064 = vrot.lane.b32.xlu0 %v747, 1
      %v1065 = vpop.permute.xlu0 %1064
      %1066 = vrot.lane.b32.xlu0 %v748, 1
      %v1067 = vpop.permute.xlu0 %1066
      %1068 = vrot.lane.b32.xlu0 %v749, 1
      %v1069 = vpop.permute.xlu0 %1068
      %1070 = vrot.lane.b32.xlu0 %v750, 1
      %v1071 = vpop.permute.xlu0 %1070
      %1136 = vrot.lane.b32.xlu0 %v751, 2
      %v1137 = vpop.permute.xlu0 %1136
      %1138 = vrot.lane.b32.xlu0 %v752, 2
      %v1139 = vpop.permute.xlu0 %1138
      %1140 = vrot.lane.b32.xlu0 %v753, 2
      %v1141 = vpop.permute.xlu0 %1140
      %1142 = vrot.lane.b32.xlu0 %v754, 2
      %v1143 = vpop.permute.xlu0 %1142
      %1144 = vrot.lane.b32.xlu0 %v755, 2
      %v1145 = vpop.permute.xlu0 %1144
      %1146 = vrot.lane.b32.xlu0 %v756, 2
      %v1147 = vpop.permute.xlu0 %1146
      %1148 = vrot.lane.b32.xlu0 %v757, 2
      %v1149 = vpop.permute.xlu0 %1148
      %1150 = vrot.lane.b32.xlu0 %v758, 2
      %v1151 = vpop.permute.xlu0 %1150
      %1152 = vrot.lane.b32.xlu0 %v759, 2
      %v1153 = vpop.permute.xlu0 %1152
      %1154 = vrot.lane.b32.xlu0 %v760, 2
      %v1155 = vpop.permute.xlu0 %1154
      %1156 = vrot.lane.b32.xlu0 %v761, 2
      %v1157 = vpop.permute.xlu0 %1156
      %1158 = vrot.lane.b32.xlu0 %v762, 2
      %v1159 = vpop.permute.xlu0 %1158
      %1160 = vrot.lane.b32.xlu0 %v763, 2
      %v1161 = vpop.permute.xlu0 %1160
      %1162 = vrot.lane.b32.xlu0 %v764, 2
      %v1163 = vpop.permute.xlu0 %1162
      %1164 = vrot.lane.b32.xlu0 %v765, 2
      %v1165 = vpop.permute.xlu0 %1164
      %1166 = vrot.lane.b32.xlu0 %v766, 2
      %v1167 = vpop.permute.xlu0 %1166
      %1168 = vrot.lane.b32.xlu0 %v767, 2
      %v1169 = vpop.permute.xlu0 %1168
      %1170 = vrot.lane.b32.xlu0 %v768, 2
      %v1171 = vpop.permute.xlu0 %1170
      %1172 = vrot.lane.b32.xlu0 %v769, 2
      %v1173 = vpop.permute.xlu0 %1172
      %1174 = vrot.lane.b32.xlu0 %v770, 2
      %v1175 = vpop.permute.xlu0 %1174
      %1176 = vrot.lane.b32.xlu0 %v771, 2
      %v1177 = vpop.permute.xlu0 %1176
      %1178 = vrot.lane.b32.xlu0 %v772, 2
      %v1179 = vpop.permute.xlu0 %1178
      %1180 = vrot.lane.b32.xlu0 %v773, 2
      %v1181 = vpop.permute.xlu0 %1180
      %1182 = vrot.lane.b32.xlu0 %v774, 2
      %v1183 = vpop.permute.xlu0 %1182
      %1184 = vrot.lane.b32.xlu0 %v775, 2
      %v1185 = vpop.permute.xlu0 %1184
      %1186 = vrot.lane.b32.xlu0 %v776, 2
      %v1187 = vpop.permute.xlu0 %1186
      %1188 = vrot.lane.b32.xlu0 %v777, 2
      %v1189 = vpop.permute.xlu0 %1188
      %1190 = vrot.lane.b32.xlu0 %v778, 2
      %v1191 = vpop.permute.xlu0 %1190
      %1192 = vrot.lane.b32.xlu0 %v779, 2
      %v1193 = vpop.permute.xlu0 %1192
      %1194 = vrot.lane.b32.xlu0 %v780, 2
      %v1195 = vpop.permute.xlu0 %1194
      %1196 = vrot.lane.b32.xlu0 %v781, 2
      %v1197 = vpop.permute.xlu0 %1196
      %1198 = vrot.lane.b32.xlu0 %v782, 2
      %v1199 = vpop.permute.xlu0 %1198
      %1264 = vrot.lane.b32.xlu0 %v783, 3
      %v1265 = vpop.permute.xlu0 %1264
      %1266 = vrot.lane.b32.xlu0 %v784, 3
      %v1267 = vpop.permute.xlu0 %1266
      %1268 = vrot.lane.b32.xlu0 %v785, 3
      %v1269 = vpop.permute.xlu0 %1268
      %1270 = vrot.lane.b32.xlu0 %v786, 3
      %v1271 = vpop.permute.xlu0 %1270
      %1272 = vrot.lane.b32.xlu0 %v787, 3
      %v1273 = vpop.permute.xlu0 %1272
      %1274 = vrot.lane.b32.xlu0 %v788, 3
      %v1275 = vpop.permute.xlu0 %1274
      %1276 = vrot.lane.b32.xlu0 %v789, 3
      %v1277 = vpop.permute.xlu0 %1276
      %1278 = vrot.lane.b32.xlu0 %v790, 3
      %v1279 = vpop.permute.xlu0 %1278
      %1280 = vrot.lane.b32.xlu0 %v791, 3
      %v1281 = vpop.permute.xlu0 %1280
      %1282 = vrot.lane.b32.xlu0 %v792, 3
      %v1283 = vpop.permute.xlu0 %1282
      %1284 = vrot.lane.b32.xlu0 %v793, 3
      %v1285 = vpop.permute.xlu0 %1284
      %1286 = vrot.lane.b32.xlu0 %v794, 3
      %v1287 = vpop.permute.xlu0 %1286
      %1288 = vrot.lane.b32.xlu0 %v795, 3
      %v1289 = vpop.permute.xlu0 %1288
      %1290 = vrot.lane.b32.xlu0 %v796, 3
      %v1291 = vpop.permute.xlu0 %1290
      %1292 = vrot.lane.b32.xlu0 %v797, 3
      %v1293 = vpop.permute.xlu0 %1292
      %1294 = vrot.lane.b32.xlu0 %v798, 3
      %v1295 = vpop.permute.xlu0 %1294
      %1296 = vrot.lane.b32.xlu0 %v799, 3
      %v1297 = vpop.permute.xlu0 %1296
      %1298 = vrot.lane.b32.xlu0 %v800, 3
      %v1299 = vpop.permute.xlu0 %1298
      %1300 = vrot.lane.b32.xlu0 %v801, 3
      %v1301 = vpop.permute.xlu0 %1300
      %1302 = vrot.lane.b32.xlu0 %v802, 3
      %v1303 = vpop.permute.xlu0 %1302
      %1304 = vrot.lane.b32.xlu0 %v803, 3
      %v1305 = vpop.permute.xlu0 %1304
      %1306 = vrot.lane.b32.xlu0 %v804, 3
      %v1307 = vpop.permute.xlu0 %1306
      %1308 = vrot.lane.b32.xlu0 %v805, 3
      %v1309 = vpop.permute.xlu0 %1308
      %1310 = vrot.lane.b32.xlu0 %v806, 3
      %v1311 = vpop.permute.xlu0 %1310
      %1312 = vrot.lane.b32.xlu0 %v807, 3
      %v1313 = vpop.permute.xlu0 %1312
      %1314 = vrot.lane.b32.xlu0 %v808, 3
      %v1315 = vpop.permute.xlu0 %1314
      %1316 = vrot.lane.b32.xlu0 %v809, 3
      %v1317 = vpop.permute.xlu0 %1316
      %1318 = vrot.lane.b32.xlu0 %v810, 3
      %v1319 = vpop.permute.xlu0 %1318
      %1320 = vrot.lane.b32.xlu0 %v811, 3
      %v1321 = vpop.permute.xlu0 %1320
      %1322 = vrot.lane.b32.xlu0 %v812, 3
      %v1323 = vpop.permute.xlu0 %1322
      %1324 = vrot.lane.b32.xlu0 %v813, 3
      %v1325 = vpop.permute.xlu0 %1324
      %1326 = vrot.lane.b32.xlu0 %v814, 3
      %v1327 = vpop.permute.xlu0 %1326
      %1392 = vrot.lane.b32.xlu0 %v815, 4
      %v1393 = vpop.permute.xlu0 %1392
      %1394 = vrot.lane.b32.xlu0 %v816, 4
      %v1395 = vpop.permute.xlu0 %1394
      %1396 = vrot.lane.b32.xlu0 %v817, 4
      %v1397 = vpop.permute.xlu0 %1396
      %1398 = vrot.lane.b32.xlu0 %v818, 4
      %v1399 = vpop.permute.xlu0 %1398
      %1400 = vrot.lane.b32.xlu0 %v819, 4
      %v1401 = vpop.permute.xlu0 %1400
      %1402 = vrot.lane.b32.xlu0 %v820, 4
      %v1403 = vpop.permute.xlu0 %1402
      %1404 = vrot.lane.b32.xlu0 %v821, 4
      %v1405 = vpop.permute.xlu0 %1404
      %1406 = vrot.lane.b32.xlu0 %v822, 4
      %v1407 = vpop.permute.xlu0 %1406
      %1408 = vrot.lane.b32.xlu0 %v823, 4
      %v1409 = vpop.permute.xlu0 %1408
      %1410 = vrot.lane.b32.xlu0 %v824, 4
      %v1411 = vpop.permute.xlu0 %1410
      %1412 = vrot.lane.b32.xlu0 %v825, 4
      %v1413 = vpop.permute.xlu0 %1412
      %1414 = vrot.lane.b32.xlu0 %v826, 4
      %v1415 = vpop.permute.xlu0 %1414
      %1416 = vrot.lane.b32.xlu0 %v827, 4
      %v1417 = vpop.permute.xlu0 %1416
      %1418 = vrot.lane.b32.xlu0 %v828, 4
      %v1419 = vpop.permute.xlu0 %1418
      %1420 = vrot.lane.b32.xlu0 %v829, 4
      %v1421 = vpop.permute.xlu0 %1420
      %1422 = vrot.lane.b32.xlu0 %v830, 4
      %v1423 = vpop.permute.xlu0 %1422
      %1424 = vrot.lane.b32.xlu0 %v831, 4
      %v1425 = vpop.permute.xlu0 %1424
      %1426 = vrot.lane.b32.xlu0 %v832, 4
      %v1427 = vpop.permute.xlu0 %1426
      %1428 = vrot.lane.b32.xlu0 %v833, 4
      %v1429 = vpop.permute.xlu0 %1428
      %1430 = vrot.lane.b32.xlu0 %v834, 4
      %v1431 = vpop.permute.xlu0 %1430
      %1432 = vrot.lane.b32.xlu0 %v835, 4
      %v1433 = vpop.permute.xlu0 %1432
      %1434 = vrot.lane.b32.xlu0 %v836, 4
      %v1435 = vpop.permute.xlu0 %1434
      %1436 = vrot.lane.b32.xlu0 %v837, 4
      %v1437 = vpop.permute.xlu0 %1436
      %1438 = vrot.lane.b32.xlu0 %v838, 4
      %v1439 = vpop.permute.xlu0 %1438
      %1440 = vrot.lane.b32.xlu0 %v839, 4
      %v1441 = vpop.permute.xlu0 %1440
      %1442 = vrot.lane.b32.xlu0 %v840, 4
      %v1443 = vpop.permute.xlu0 %1442
      %1444 = vrot.lane.b32.xlu0 %v841, 4
      %v1445 = vpop.permute.xlu0 %1444
      %1446 = vrot.lane.b32.xlu0 %v842, 4
      %v1447 = vpop.permute.xlu0 %1446
      %1448 = vrot.lane.b32.xlu0 %v843, 4
      %v1449 = vpop.permute.xlu0 %1448
      %1450 = vrot.lane.b32.xlu0 %v844, 4
      %v1451 = vpop.permute.xlu0 %1450
      %1452 = vrot.lane.b32.xlu0 %v845, 4
      %v1453 = vpop.permute.xlu0 %1452
      %1454 = vrot.lane.b32.xlu0 %v846, 4
      %v1455 = vpop.permute.xlu0 %1454
      %1520 = vrot.lane.b32.xlu0 %v847, 5
      %v1521 = vpop.permute.xlu0 %1520
      %1522 = vrot.lane.b32.xlu0 %v848, 5
      %v1523 = vpop.permute.xlu0 %1522
      %1524 = vrot.lane.b32.xlu0 %v849, 5
      %v1525 = vpop.permute.xlu0 %1524
      %1526 = vrot.lane.b32.xlu0 %v850, 5
      %v1527 = vpop.permute.xlu0 %1526
      %1528 = vrot.lane.b32.xlu0 %v851, 5
      %v1529 = vpop.permute.xlu0 %1528
      %1530 = vrot.lane.b32.xlu0 %v852, 5
      %v1531 = vpop.permute.xlu0 %1530
      %1532 = vrot.lane.b32.xlu0 %v853, 5
      %v1533 = vpop.permute.xlu0 %1532
      %1534 = vrot.lane.b32.xlu0 %v854, 5
      %v1535 = vpop.permute.xlu0 %1534
      %1536 = vrot.lane.b32.xlu0 %v855, 5
      %v1537 = vpop.permute.xlu0 %1536
      %1538 = vrot.lane.b32.xlu0 %v856, 5
      %v1539 = vpop.permute.xlu0 %1538
      %1540 = vrot.lane.b32.xlu0 %v857, 5
      %v1541 = vpop.permute.xlu0 %1540
      %1542 = vrot.lane.b32.xlu0 %v858, 5
      %v1543 = vpop.permute.xlu0 %1542
      %1544 = vrot.lane.b32.xlu0 %v859, 5
      %v1545 = vpop.permute.xlu0 %1544
      %1546 = vrot.lane.b32.xlu0 %v860, 5
      %v1547 = vpop.permute.xlu0 %1546
      %1548 = vrot.lane.b32.xlu0 %v861, 5
      %v1549 = vpop.permute.xlu0 %1548
      %1550 = vrot.lane.b32.xlu0 %v862, 5
      %v1551 = vpop.permute.xlu0 %1550
      %1552 = vrot.lane.b32.xlu0 %v863, 5
      %v1553 = vpop.permute.xlu0 %1552
      %1554 = vrot.lane.b32.xlu0 %v864, 5
      %v1555 = vpop.permute.xlu0 %1554
      %1556 = vrot.lane.b32.xlu0 %v865, 5
      %v1557 = vpop.permute.xlu0 %1556
      %1558 = vrot.lane.b32.xlu0 %v866, 5
      %v1559 = vpop.permute.xlu0 %1558
      %1560 = vrot.lane.b32.xlu0 %v867, 5
      %v1561 = vpop.permute.xlu0 %1560
      %1562 = vrot.lane.b32.xlu0 %v868, 5
      %v1563 = vpop.permute.xlu0 %1562
      %1564 = vrot.lane.b32.xlu0 %v869, 5
      %v1565 = vpop.permute.xlu0 %1564
      %1566 = vrot.lane.b32.xlu0 %v870, 5
      %v1567 = vpop.permute.xlu0 %1566
      %1568 = vrot.lane.b32.xlu0 %v871, 5
      %v1569 = vpop.permute.xlu0 %1568
      %1570 = vrot.lane.b32.xlu0 %v872, 5
      %v1571 = vpop.permute.xlu0 %1570
      %1572 = vrot.lane.b32.xlu0 %v873, 5
      %v1573 = vpop.permute.xlu0 %1572
      %1574 = vrot.lane.b32.xlu0 %v874, 5
      %v1575 = vpop.permute.xlu0 %1574
      %1576 = vrot.lane.b32.xlu0 %v875, 5
      %v1577 = vpop.permute.xlu0 %1576
      %1578 = vrot.lane.b32.xlu0 %v876, 5
      %v1579 = vpop.permute.xlu0 %1578
      %1580 = vrot.lane.b32.xlu0 %v877, 5
      %v1581 = vpop.permute.xlu0 %1580
      %1582 = vrot.lane.b32.xlu0 %v878, 5
      %v1583 = vpop.permute.xlu0 %1582
      %1648 = vrot.lane.b32.xlu0 %v880, 6
      %v1649 = vpop.permute.xlu0 %1648
      %1650 = vrot.lane.b32.xlu0 %v881, 6
      %v1651 = vpop.permute.xlu0 %1650
      %1652 = vrot.lane.b32.xlu0 %v882, 6
      %v1653 = vpop.permute.xlu0 %1652
      %1654 = vrot.lane.b32.xlu0 %v883, 6
      %v1655 = vpop.permute.xlu0 %1654
      %1656 = vrot.lane.b32.xlu0 %v884, 6
      %v1657 = vpop.permute.xlu0 %1656
      %1658 = vrot.lane.b32.xlu0 %v885, 6
      %v1659 = vpop.permute.xlu0 %1658
      %1660 = vrot.lane.b32.xlu0 %v886, 6
      %v1661 = vpop.permute.xlu0 %1660
      %1662 = vrot.lane.b32.xlu0 %v887, 6
      %v1663 = vpop.permute.xlu0 %1662
      %1664 = vrot.lane.b32.xlu0 %v888, 6
      %v1665 = vpop.permute.xlu0 %1664
      %1666 = vrot.lane.b32.xlu0 %v889, 6
      %v1667 = vpop.permute.xlu0 %1666
      %1668 = vrot.lane.b32.xlu0 %v890, 6
      %v1669 = vpop.permute.xlu0 %1668
      %1670 = vrot.lane.b32.xlu0 %v891, 6
      %v1671 = vpop.permute.xlu0 %1670
      %1672 = vrot.lane.b32.xlu0 %v892, 6
      %v1673 = vpop.permute.xlu0 %1672
      %1674 = vrot.lane.b32.xlu0 %v893, 6
      %v1675 = vpop.permute.xlu0 %1674
      %1676 = vrot.lane.b32.xlu0 %v894, 6
      %v1677 = vpop.permute.xlu0 %1676
      %1678 = vrot.lane.b32.xlu0 %v895, 6
      %v1679 = vpop.permute.xlu0 %1678
      %1680 = vrot.lane.b32.xlu0 %v896, 6
      %v1681 = vpop.permute.xlu0 %1680
      %1682 = vrot.lane.b32.xlu0 %v897, 6
      %v1683 = vpop.permute.xlu0 %1682
      %1684 = vrot.lane.b32.xlu0 %v898, 6
      %v1685 = vpop.permute.xlu0 %1684
      %1686 = vrot.lane.b32.xlu0 %v899, 6
      %v1687 = vpop.permute.xlu0 %1686
      %1688 = vrot.lane.b32.xlu0 %v900, 6
      %v1689 = vpop.permute.xlu0 %1688
      %1690 = vrot.lane.b32.xlu0 %v901, 6
      %v1691 = vpop.permute.xlu0 %1690
      %1692 = vrot.lane.b32.xlu0 %v902, 6
      %v1693 = vpop.permute.xlu0 %1692
      %1694 = vrot.lane.b32.xlu0 %v903, 6
      %v1695 = vpop.permute.xlu0 %1694
      %1696 = vrot.lane.b32.xlu0 %v904, 6
      %v1697 = vpop.permute.xlu0 %1696
      %1698 = vrot.lane.b32.xlu0 %v905, 6
      %v1699 = vpop.permute.xlu0 %1698
      %1700 = vrot.lane.b32.xlu0 %v906, 6
      %v1701 = vpop.permute.xlu0 %1700
      %1702 = vrot.lane.b32.xlu0 %v907, 6
      %v1703 = vpop.permute.xlu0 %1702
      %1704 = vrot.lane.b32.xlu0 %v908, 6
      %v1705 = vpop.permute.xlu0 %1704
      %1706 = vrot.lane.b32.xlu0 %v909, 6
      %v1707 = vpop.permute.xlu0 %1706
      %1708 = vrot.lane.b32.xlu0 %v910, 6
      %v1709 = vpop.permute.xlu0 %1708
      %1710 = vrot.lane.b32.xlu0 %v911, 6
      %v1711 = vpop.permute.xlu0 %1710
      %1776 = vrot.lane.b32.xlu0 %v912, 7
      %v1777 = vpop.permute.xlu0 %1776
      %1778 = vrot.lane.b32.xlu0 %v913, 7
      %v1779 = vpop.permute.xlu0 %1778
      %1780 = vrot.lane.b32.xlu0 %v914, 7
      %v1781 = vpop.permute.xlu0 %1780
      %1782 = vrot.lane.b32.xlu0 %v915, 7
      %v1783 = vpop.permute.xlu0 %1782
      %1784 = vrot.lane.b32.xlu0 %v916, 7
      %v1785 = vpop.permute.xlu0 %1784
      %1786 = vrot.lane.b32.xlu0 %v917, 7
      %v1787 = vpop.permute.xlu0 %1786
      %1788 = vrot.lane.b32.xlu0 %v918, 7
      %v1789 = vpop.permute.xlu0 %1788
      %1790 = vrot.lane.b32.xlu0 %v919, 7
      %v1791 = vpop.permute.xlu0 %1790
      %1792 = vrot.lane.b32.xlu0 %v920, 7
      %v1793 = vpop.permute.xlu0 %1792
      %1794 = vrot.lane.b32.xlu0 %v921, 7
      %v1795 = vpop.permute.xlu0 %1794
      %1796 = vrot.lane.b32.xlu0 %v922, 7
      %v1797 = vpop.permute.xlu0 %1796
      %1798 = vrot.lane.b32.xlu0 %v923, 7
      %v1799 = vpop.permute.xlu0 %1798
      %1800 = vrot.lane.b32.xlu0 %v924, 7
      %v1801 = vpop.permute.xlu0 %1800
      %1802 = vrot.lane.b32.xlu0 %v925, 7
      %v1803 = vpop.permute.xlu0 %1802
      %1804 = vrot.lane.b32.xlu0 %v926, 7
      %v1805 = vpop.permute.xlu0 %1804
      %1806 = vrot.lane.b32.xlu0 %v927, 7
      %v1807 = vpop.permute.xlu0 %1806
      %1808 = vrot.lane.b32.xlu0 %v928, 7
      %v1809 = vpop.permute.xlu0 %1808
      %1810 = vrot.lane.b32.xlu0 %v929, 7
      %v1811 = vpop.permute.xlu0 %1810
      %1812 = vrot.lane.b32.xlu0 %v930, 7
      %v1813 = vpop.permute.xlu0 %1812
      %1814 = vrot.lane.b32.xlu0 %v931, 7
      %v1815 = vpop.permute.xlu0 %1814
      %1816 = vrot.lane.b32.xlu0 %v932, 7
      %v1817 = vpop.permute.xlu0 %1816
      %1818 = vrot.lane.b32.xlu0 %v933, 7
      %v1819 = vpop.permute.xlu0 %1818
      %1820 = vrot.lane.b32.xlu0 %v934, 7
      %v1821 = vpop.permute.xlu0 %1820
      %1822 = vrot.lane.b32.xlu0 %v935, 7
      %v1823 = vpop.permute.xlu0 %1822
      %1824 = vrot.lane.b32.xlu0 %v936, 7
      %v1825 = vpop.permute.xlu0 %1824
      %1826 = vrot.lane.b32.xlu0 %v937, 7
      %v1827 = vpop.permute.xlu0 %1826
      %1828 = vrot.lane.b32.xlu0 %v938, 7
      %v1829 = vpop.permute.xlu0 %1828
      %1830 = vrot.lane.b32.xlu0 %v939, 7
      %v1831 = vpop.permute.xlu0 %1830
      %1832 = vrot.lane.b32.xlu0 %v940, 7
      %v1833 = vpop.permute.xlu0 %1832
      %1834 = vrot.lane.b32.xlu0 %v941, 7
      %v1835 = vpop.permute.xlu0 %1834
      %1836 = vrot.lane.b32.xlu0 %v942, 7
      %v1837 = vpop.permute.xlu0 %1836
      %1838 = vrot.lane.b32.xlu0 %v943, 7
      %v1839 = vpop.permute.xlu0 %1838
      %1904 = vrot.lane.b32.xlu0 %v944, 8
      %v1905 = vpop.permute.xlu0 %1904
      %1906 = vrot.lane.b32.xlu0 %v945, 8
      %v1907 = vpop.permute.xlu0 %1906
      %1908 = vrot.lane.b32.xlu0 %v946, 8
      %v1909 = vpop.permute.xlu0 %1908
      %1910 = vrot.lane.b32.xlu0 %v947, 8
      %v1911 = vpop.permute.xlu0 %1910
      %1912 = vrot.lane.b32.xlu0 %v948, 8
      %v1913 = vpop.permute.xlu0 %1912
      %1914 = vrot.lane.b32.xlu0 %v949, 8
      %v1915 = vpop.permute.xlu0 %1914
      %1916 = vrot.lane.b32.xlu0 %v950, 8
      %v1917 = vpop.permute.xlu0 %1916
      %1918 = vrot.lane.b32.xlu0 %v951, 8
      %v1919 = vpop.permute.xlu0 %1918
      %1920 = vrot.lane.b32.xlu0 %v952, 8
      %v1921 = vpop.permute.xlu0 %1920
      %1922 = vrot.lane.b32.xlu0 %v953, 8
      %v1923 = vpop.permute.xlu0 %1922
      %1924 = vrot.lane.b32.xlu0 %v954, 8
      %v1925 = vpop.permute.xlu0 %1924
      %1926 = vrot.lane.b32.xlu0 %v955, 8
      %v1927 = vpop.permute.xlu0 %1926
      %1928 = vrot.lane.b32.xlu0 %v956, 8
      %v1929 = vpop.permute.xlu0 %1928
      %1930 = vrot.lane.b32.xlu0 %v957, 8
      %v1931 = vpop.permute.xlu0 %1930
      %1932 = vrot.lane.b32.xlu0 %v958, 8
      %v1933 = vpop.permute.xlu0 %1932
      %1934 = vrot.lane.b32.xlu0 %v959, 8
      %v1935 = vpop.permute.xlu0 %1934
      %1936 = vrot.lane.b32.xlu0 %v960, 8
      %v1937 = vpop.permute.xlu0 %1936
      %1938 = vrot.lane.b32.xlu0 %v961, 8
      %v1939 = vpop.permute.xlu0 %1938
      %1940 = vrot.lane.b32.xlu0 %v962, 8
      %v1941 = vpop.permute.xlu0 %1940
      %1942 = vrot.lane.b32.xlu0 %v963, 8
      %v1943 = vpop.permute.xlu0 %1942
      %1944 = vrot.lane.b32.xlu0 %v964, 8
      %v1945 = vpop.permute.xlu0 %1944
      %1946 = vrot.lane.b32.xlu0 %v965, 8
      %v1947 = vpop.permute.xlu0 %1946
      %1948 = vrot.lane.b32.xlu0 %v966, 8
      %v1949 = vpop.permute.xlu0 %1948
      %1950 = vrot.lane.b32.xlu0 %v967, 8
      %v1951 = vpop.permute.xlu0 %1950
      %1952 = vrot.lane.b32.xlu0 %v968, 8
      %v1953 = vpop.permute.xlu0 %1952
      %1954 = vrot.lane.b32.xlu0 %v969, 8
      %v1955 = vpop.permute.xlu0 %1954
      %1956 = vrot.lane.b32.xlu0 %v970, 8
      %v1957 = vpop.permute.xlu0 %1956
      %1958 = vrot.lane.b32.xlu0 %v971, 8
      %v1959 = vpop.permute.xlu0 %1958
      %1960 = vrot.lane.b32.xlu0 %v972, 8
      %v1961 = vpop.permute.xlu0 %1960
      %1962 = vrot.lane.b32.xlu0 %v973, 8
      %v1963 = vpop.permute.xlu0 %1962
      %1964 = vrot.lane.b32.xlu0 %v974, 8
      %v1965 = vpop.permute.xlu0 %1964
      %1966 = vrot.lane.b32.xlu0 %v975, 8
      %v1967 = vpop.permute.xlu0 %1966
      %v2000 = vsel %vm468, %v687, %v1009
      %v2001 = vsel %vm468, %v688, %v1011
      %v2002 = vsel %vm468, %v689, %v1013
      %v2003 = vsel %vm468, %v690, %v1015
      %v2004 = vsel %vm468, %v691, %v1017
      %v2005 = vsel %vm468, %v692, %v1019
      %v2006 = vsel %vm468, %v693, %v1021
      %v2007 = vsel %vm468, %v694, %v1023
      %v2008 = vsel %vm468, %v695, %v1025
      %v2009 = vsel %vm468, %v696, %v1027
      %v2010 = vsel %vm468, %v697, %v1029
      %v2011 = vsel %vm468, %v698, %v1031
      %v2012 = vsel %vm468, %v699, %v1033
      %v2013 = vsel %vm468, %v700, %v1035
      %v2014 = vsel %vm468, %v701, %v1037
      %v2015 = vsel %vm468, %v702, %v1039
      %v2016 = vsel %vm468, %v703, %v1041
      %v2017 = vsel %vm468, %v704, %v1043
      %v2018 = vsel %vm468, %v705, %v1045
      %v2019 = vsel %vm468, %v706, %v1047
      %v2020 = vsel %vm468, %v707, %v1049
      %v2021 = vsel %vm468, %v708, %v1051
      %v2022 = vsel %vm468, %v709, %v1053
      %v2023 = vsel %vm468, %v710, %v1055
      %v2024 = vsel %vm468, %v711, %v1057
      %v2025 = vsel %vm468, %v712, %v1059
      %v2026 = vsel %vm468, %v713, %v1061
      %v2027 = vsel %vm468, %v714, %v1063
      %v2028 = vsel %vm468, %v715, %v1065
      %v2029 = vsel %vm468, %v716, %v1067
      %v2030 = vsel %vm468, %v717, %v1069
      %v2031 = vsel %vm468, %v718, %v1071
      %vm2032 = vcmask 15360
      %v2033 = vsel %vm2032, %v2000, %v1137
      %v2034 = vsel %vm2032, %v2001, %v1139
      %v2035 = vsel %vm2032, %v2002, %v1141
      %v2036 = vsel %vm2032, %v2003, %v1143
      %v2037 = vsel %vm2032, %v2004, %v1145
      %v2038 = vsel %vm2032, %v2005, %v1147
      %v2039 = vsel %vm2032, %v2006, %v1149
      %v2040 = vsel %vm2032, %v2007, %v1151
      %v2041 = vsel %vm2032, %v2008, %v1153
      %v2042 = vsel %vm2032, %v2009, %v1155
      %v2043 = vsel %vm2032, %v2010, %v1157
      %v2044 = vsel %vm2032, %v2011, %v1159
      %v2045 = vsel %vm2032, %v2012, %v1161
      %v2046 = vsel %vm2032, %v2013, %v1163
      %v2047 = vsel %vm2032, %v2014, %v1165
      %v2048 = vsel %vm2032, %v2015, %v1167
      %v2049 = vsel %vm2032, %v2016, %v1169
      %v2050 = vsel %vm2032, %v2017, %v1171
      %v2051 = vsel %vm2032, %v2018, %v1173
      %v2052 = vsel %vm2032, %v2019, %v1175
      %v2053 = vsel %vm2032, %v2020, %v1177
      %v2054 = vsel %vm2032, %v2021, %v1179
      %v2055 = vsel %vm2032, %v2022, %v1181
      %v2056 = vsel %vm2032, %v2023, %v1183
      %v2057 = vsel %vm2032, %v2024, %v1185
      %v2058 = vsel %vm2032, %v2025, %v1187
      %v2059 = vsel %vm2032, %v2026, %v1189
      %v2060 = vsel %vm2032, %v2027, %v1191
      %v2061 = vsel %vm2032, %v2028, %v1193
      %v2062 = vsel %vm2032, %v2029, %v1195
      %v2063 = vsel %vm2032, %v2030, %v1197
      %v2064 = vsel %vm2032, %v2031, %v1199
      %vm2065 = vcmask 23552
      %v2066 = vsel %vm2065, %v2033, %v1265
      %v2067 = vsel %vm2065, %v2034, %v1267
      %v2068 = vsel %vm2065, %v2035, %v1269
      %v2069 = vsel %vm2065, %v2036, %v1271
      %v2070 = vsel %vm2065, %v2037, %v1273
      %v2071 = vsel %vm2065, %v2038, %v1275
      %v2072 = vsel %vm2065, %v2039, %v1277
      %v2073 = vsel %vm2065, %v2040, %v1279
      %v2074 = vsel %vm2065, %v2041, %v1281
      %v2075 = vsel %vm2065, %v2042, %v1283
      %v2076 = vsel %vm2065, %v2043, %v1285
      %v2077 = vsel %vm2065, %v2044, %v1287
      %v2078 = vsel %vm2065, %v2045, %v1289
      %v2079 = vsel %vm2065, %v2046, %v1291
      %v2080 = vsel %vm2065, %v2047, %v1293
      %v2081 = vsel %vm2065, %v2048, %v1295
      %v2082 = vsel %vm2065, %v2049, %v1297
      %v2083 = vsel %vm2065, %v2050, %v1299
      %v2084 = vsel %vm2065, %v2051, %v1301
      %v2085 = vsel %vm2065, %v2052, %v1303
      %v2086 = vsel %vm2065, %v2053, %v1305
      %v2087 = vsel %vm2065, %v2054, %v1307
      %v2088 = vsel %vm2065, %v2055, %v1309
      %v2089 = vsel %vm2065, %v2056, %v1311
      %v2090 = vsel %vm2065, %v2057, %v1313
      %v2091 = vsel %vm2065, %v2058, %v1315
      %v2092 = vsel %vm2065, %v2059, %v1317
      %v2093 = vsel %vm2065, %v2060, %v1319
      %v2094 = vsel %vm2065, %v2061, %v1321
      %v2095 = vsel %vm2065, %v2062, %v1323
      %v2096 = vsel %vm2065, %v2063, %v1325
      %v2097 = vsel %vm2065, %v2064, %v1327
      %vm2098 = vcmask 31744
      %v2099 = vsel %vm2098, %v2066, %v1393
      %v2100 = vsel %vm2098, %v2067, %v1395
      %v2101 = vsel %vm2098, %v2068, %v1397
      %v2102 = vsel %vm2098, %v2069, %v1399
      %v2103 = vsel %vm2098, %v2070, %v1401
      %v2104 = vsel %vm2098, %v2071, %v1403
      %v2105 = vsel %vm2098, %v2072, %v1405
      %v2106 = vsel %vm2098, %v2073, %v1407
      %v2107 = vsel %vm2098, %v2074, %v1409
      %v2108 = vsel %vm2098, %v2075, %v1411
      %v2109 = vsel %vm2098, %v2076, %v1413
      %v2110 = vsel %vm2098, %v2077, %v1415
      %v2111 = vsel %vm2098, %v2078, %v1417
      %v2112 = vsel %vm2098, %v2079, %v1419
      %v2113 = vsel %vm2098, %v2080, %v1421
      %v2114 = vsel %vm2098, %v2081, %v1423
      %v2115 = vsel %vm2098, %v2082, %v1425
      %v2116 = vsel %vm2098, %v2083, %v1427
      %v2117 = vsel %vm2098, %v2084, %v1429
      %v2118 = vsel %vm2098, %v2085, %v1431
      %v2119 = vsel %vm2098, %v2086, %v1433
      %v2120 = vsel %vm2098, %v2087, %v1435
      %v2121 = vsel %vm2098, %v2088, %v1437
      %v2122 = vsel %vm2098, %v2089, %v1439
      %v2123 = vsel %vm2098, %v2090, %v1441
      %v2124 = vsel %vm2098, %v2091, %v1443
      %v2125 = vsel %vm2098, %v2092, %v1445
      %v2126 = vsel %vm2098, %v2093, %v1447
      %v2127 = vsel %vm2098, %v2094, %v1449
      %v2128 = vsel %vm2098, %v2095, %v1451
      %v2129 = vsel %vm2098, %v2096, %v1453
      %v2130 = vsel %vm2098, %v2097, %v1455
      %vm2131 = vcmask 39936
      %v2132 = vsel %vm2131, %v2099, %v1521
      %v2133 = vsel %vm2131, %v2100, %v1523
      %v2134 = vsel %vm2131, %v2101, %v1525
      %v2135 = vsel %vm2131, %v2102, %v1527
      %v2136 = vsel %vm2131, %v2103, %v1529
      %v2137 = vsel %vm2131, %v2104, %v1531
      %v2138 = vsel %vm2131, %v2105, %v1533
      %v2139 = vsel %vm2131, %v2106, %v1535
      %v2140 = vsel %vm2131, %v2107, %v1537
      %v2141 = vsel %vm2131, %v2108, %v1539
      %v2142 = vsel %vm2131, %v2109, %v1541
      %v2143 = vsel %vm2131, %v2110, %v1543
      %v2144 = vsel %vm2131, %v2111, %v1545
      %v2145 = vsel %vm2131, %v2112, %v1547
      %v2146 = vsel %vm2131, %v2113, %v1549
      %v2147 = vsel %vm2131, %v2114, %v1551
      %v2148 = vsel %vm2131, %v2115, %v1553
      %v2149 = vsel %vm2131, %v2116, %v1555
      %v2150 = vsel %vm2131, %v2117, %v1557
      %v2151 = vsel %vm2131, %v2118, %v1559
      %v2152 = vsel %vm2131, %v2119, %v1561
      %v2153 = vsel %vm2131, %v2120, %v1563
      %v2154 = vsel %vm2131, %v2121, %v1565
      %v2155 = vsel %vm2131, %v2122, %v1567
      %v2156 = vsel %vm2131, %v2123, %v1569
      %v2157 = vsel %vm2131, %v2124, %v1571
      %v2158 = vsel %vm2131, %v2125, %v1573
      %v2159 = vsel %vm2131, %v2126, %v1575
      %v2160 = vsel %vm2131, %v2127, %v1577
      %v2161 = vsel %vm2131, %v2128, %v1579
      %v2162 = vsel %vm2131, %v2129, %v1581
      %v2163 = vsel %vm2131, %v2130, %v1583
      %vm2164 = vcmask 48128
      %v2165 = vsel %vm2164, %v2132, %v1649
      %v2166 = vsel %vm2164, %v2133, %v1651
      %v2167 = vsel %vm2164, %v2134, %v1653
      %v2168 = vsel %vm2164, %v2135, %v1655
      %v2169 = vsel %vm2164, %v2136, %v1657
      %v2170 = vsel %vm2164, %v2137, %v1659
      %v2171 = vsel %vm2164, %v2138, %v1661
      %v2172 = vsel %vm2164, %v2139, %v1663
      %v2173 = vsel %vm2164, %v2140, %v1665
      %v2174 = vsel %vm2164, %v2141, %v1667
      %v2175 = vsel %vm2164, %v2142, %v1669
      %v2176 = vsel %vm2164, %v2143, %v1671
      %v2177 = vsel %vm2164, %v2144, %v1673
      %v2178 = vsel %vm2164, %v2145, %v1675
      %v2179 = vsel %vm2164, %v2146, %v1677
      %v2180 = vsel %vm2164, %v2147, %v1679
      %v2181 = vsel %vm2164, %v2148, %v1681
      %v2182 = vsel %vm2164, %v2149, %v1683
      %v2183 = vsel %vm2164, %v2150, %v1685
      %v2184 = vsel %vm2164, %v2151, %v1687
      %v2185 = vsel %vm2164, %v2152, %v1689
      %v2186 = vsel %vm2164, %v2153, %v1691
      %v2187 = vsel %vm2164, %v2154, %v1693
      %v2188 = vsel %vm2164, %v2155, %v1695
      %v2189 = vsel %vm2164, %v2156, %v1697
      %v2190 = vsel %vm2164, %v2157, %v1699
      %v2191 = vsel %vm2164, %v2158, %v1701
      %v2192 = vsel %vm2164, %v2159, %v1703
      %v2193 = vsel %vm2164, %v2160, %v1705
      %v2194 = vsel %vm2164, %v2161, %v1707
      %v2195 = vsel %vm2164, %v2162, %v1709
      %v2196 = vsel %vm2164, %v2163, %v1711
      %vm2197 = vcmask 56320
      %v2198 = vsel %vm2197, %v2165, %v1777
      %v2199 = vsel %vm2197, %v2166, %v1779
      %v2200 = vsel %vm2197, %v2167, %v1781
      %v2201 = vsel %vm2197, %v2168, %v1783
      %v2202 = vsel %vm2197, %v2169, %v1785
      %v2203 = vsel %vm2197, %v2170, %v1787
      %v2204 = vsel %vm2197, %v2171, %v1789
      %v2205 = vsel %vm2197, %v2172, %v1791
      %v2206 = vsel %vm2197, %v2173, %v1793
      %v2207 = vsel %vm2197, %v2174, %v1795
      %v2208 = vsel %vm2197, %v2175, %v1797
      %v2209 = vsel %vm2197, %v2176, %v1799
      %v2210 = vsel %vm2197, %v2177, %v1801
      %v2211 = vsel %vm2197, %v2178, %v1803
      %v2212 = vsel %vm2197, %v2179, %v1805
      %v2213 = vsel %vm2197, %v2180, %v1807
      %v2214 = vsel %vm2197, %v2181, %v1809
      %v2215 = vsel %vm2197, %v2182, %v1811
      %v2216 = vsel %vm2197, %v2183, %v1813
      %v2217 = vsel %vm2197, %v2184, %v1815
      %v2218 = vsel %vm2197, %v2185, %v1817
      %v2219 = vsel %vm2197, %v2186, %v1819
      %v2220 = vsel %vm2197, %v2187, %v1821
      %v2221 = vsel %vm2197, %v2188, %v1823
      %v2222 = vsel %vm2197, %v2189, %v1825
      %v2223 = vsel %vm2197, %v2190, %v1827
      %v2224 = vsel %vm2197, %v2191, %v1829
      %v2225 = vsel %vm2197, %v2192, %v1831
      %v2226 = vsel %vm2197, %v2193, %v1833
      %v2227 = vsel %vm2197, %v2194, %v1835
      %v2228 = vsel %vm2197, %v2195, %v1837
      %v2229 = vsel %vm2197, %v2196, %v1839
      %vm2230 = vcmask 64512
      %v2231 = vsel %vm2230, %v2198, %v1905
      %v2232 = vsel %vm2230, %v2199, %v1907
      %v2233 = vsel %vm2230, %v2200, %v1909
      %v2234 = vsel %vm2230, %v2201, %v1911
      %v2235 = vsel %vm2230, %v2202, %v1913
      %v2236 = vsel %vm2230, %v2203, %v1915
      %v2237 = vsel %vm2230, %v2204, %v1917
      %v2238 = vsel %vm2230, %v2205, %v1919
      %v2239 = vsel %vm2230, %v2206, %v1921
      %v2240 = vsel %vm2230, %v2207, %v1923
      %v2241 = vsel %vm2230, %v2208, %v1925
      %v2242 = vsel %vm2230, %v2209, %v1927
      %v2243 = vsel %vm2230, %v2210, %v1929
      %v2244 = vsel %vm2230, %v2211, %v1931
      %v2245 = vsel %vm2230, %v2212, %v1933
      %v2246 = vsel %vm2230, %v2213, %v1935
      %v2247 = vsel %vm2230, %v2214, %v1937
      %v2248 = vsel %vm2230, %v2215, %v1939
      %v2249 = vsel %vm2230, %v2216, %v1941
      %v2250 = vsel %vm2230, %v2217, %v1943
      %v2251 = vsel %vm2230, %v2218, %v1945
      %v2252 = vsel %vm2230, %v2219, %v1947
      %v2253 = vsel %vm2230, %v2220, %v1949
      %v2254 = vsel %vm2230, %v2221, %v1951
      %v2255 = vsel %vm2230, %v2222, %v1953
      %v2256 = vsel %vm2230, %v2223, %v1955
      %v2257 = vsel %vm2230, %v2224, %v1957
      %v2258 = vsel %vm2230, %v2225, %v1959
      %v2259 = vsel %vm2230, %v2226, %v1961
      %v2260 = vsel %vm2230, %v2227, %v1963
      %v2261 = vsel %vm2230, %v2228, %v1965
      %v2262 = vsel %vm2230, %v2229, %v1967
      %v2263 = vld [vmem:[%s1] sm:$0xff]
      %v2264 = vld [vmem:[%s1 + $0x8] sm:$0x1]
      %vm2265 = vcmask 72704
      %v2267 = vsel %vm2265, %v2231, 0
      %v2270 = vsel %vm2265, %v2232, 0
      %v2273 = vsel %vm2265, %v2233, 0
      %v2276 = vsel %vm2265, %v2234, 0
      %v2279 = vsel %vm2265, %v2235, 0
      %v2282 = vsel %vm2265, %v2236, 0
      %v2285 = vsel %vm2265, %v2237, 0
      %v2288 = vsel %vm2265, %v2238, 0
      %v2291 = vsel %vm2265, %v2239, 0
      %v2294 = vsel %vm2265, %v2240, 0
      %v2297 = vsel %vm2265, %v2241, 0
      %v2300 = vsel %vm2265, %v2242, 0
      %v2303 = vsel %vm2265, %v2243, 0
      %v2306 = vsel %vm2265, %v2244, 0
      %v2309 = vsel %vm2265, %v2245, 0
      %v2312 = vsel %vm2265, %v2246, 0
      %v2315 = vsel %vm2265, %v2247, 0
      %v2318 = vsel %vm2265, %v2248, 0
      %v2321 = vsel %vm2265, %v2249, 0
      %v2324 = vsel %vm2265, %v2250, 0
      %v2327 = vsel %vm2265, %v2251, 0
      %v2330 = vsel %vm2265, %v2252, 0
      %v2333 = vsel %vm2265, %v2253, 0
      %v2336 = vsel %vm2265, %v2254, 0
      %v2339 = vsel %vm2265, %v2255, 0
      %v2342 = vsel %vm2265, %v2256, 0
      %v2345 = vsel %vm2265, %v2257, 0
      %v2348 = vsel %vm2265, %v2258, 0
      %v2351 = vsel %vm2265, %v2259, 0
      %v2354 = vsel %vm2265, %v2260, 0
      %v2357 = vsel %vm2265, %v2261, 0
      %v2360 = vsel %vm2265, %v2262, 0
      %vm2362 = vcmask 1040384
      %v2364 = vsel %vm2362, %v2264, 0
      %2366 = vmatprep.subr.mxu0 0.0
      %2367 = vmatpush1.msra.mxu0 %v2263
      %2368 = vmatprep.subr.mxu0 0.0
      %2369 = vmatpush1.msra.mxu0 %v2364
      %2370 = vmatprep.subr.mxu0 0.0
      %2371 = vmatpush1.msra.mxu0 0.0
      %2372 = vmatprep.subr.mxu0 0.0
      %2373 = vmatpush1.msra.mxu0 0.0
      %2374 = vmatprep.subr.mxu0 0.0
      %2375 = vmatpush1.msra.mxu0 0.0
      %2376 = vmatprep.subr.mxu0 0.0
      %2377 = vmatpush1.msra.mxu0 0.0
      %2378 = vmatprep.subr.mxu0 0.0
      %2379 = vmatpush1.msra.mxu0 0.0
      %2380 = vmatprep.subr.mxu0 0.0
      %2381 = vmatpush1.msra.mxu0 0.0
      %2382 = vmatprep.subr.mxu0 0.0
      %2383 = vmatpush1.msra.mxu0 0.0
      %2384 = vmatprep.subr.mxu0 0.0
      %2385 = vmatpush1.msra.mxu0 0.0
      %2386 = vmatprep.subr.mxu0 0.0
      %2387 = vmatpush1.msra.mxu0 0.0
      %2388 = vmatprep.subr.mxu0 0.0
      %2389 = vmatpush1.msra.mxu0 0.0
      %2390 = vmatprep.subr.mxu0 0.0
      %2391 = vmatpush1.msra.mxu0 0.0
      %2392 = vmatprep.subr.mxu0 0.0
      %2393 = vmatpush1.msra.mxu0 0.0
      %2394 = vmatprep.subr.mxu0 0.0
      %2395 = vmatpush1.msra.mxu0 0.0
      %2396 = vmatprep.subr.mxu0 0.0
      %2397 = vmatpush1.msra.mxu0 0.0
      %2398 = vmatprep.subr.mxu0 0.0
      %2399 = vmatpush1.msra.mxu0 0.0
      %2400 = vmatprep.subr.mxu0 0.0
      %2401 = vmatpush1.msra.mxu0 0.0
      %2402 = vmatprep.subr.mxu0 0.0
      %2403 = vmatpush1.msra.mxu0 0.0
      %2404 = vmatprep.subr.mxu0 0.0
      %2405 = vmatpush1.msra.mxu0 0.0
      %2406 = vmatprep.subr.mxu0 0.0
      %2407 = vmatpush1.msra.mxu0 0.0
      %2408 = vmatprep.subr.mxu0 0.0
      %2409 = vmatpush1.msra.mxu0 0.0
      %2410 = vmatprep.subr.mxu0 0.0
      %2411 = vmatpush1.msra.mxu0 0.0
      %2412 = vmatprep.subr.mxu0 0.0
      %2413 = vmatpush1.msra.mxu0 0.0
      %2414 = vmatprep.subr.mxu0 0.0
      %2415 = vmatpush1.msra.mxu0 0.0
      %2416 = vmatprep.subr.mxu0 0.0
      %2417 = vmatpush1.msra.mxu0 0.0
      %2418 = vmatprep.subr.mxu0 0.0
      %2419 = vmatpush1.msra.mxu0 0.0
      %2420 = vmatprep.subr.mxu0 0.0
      %2421 = vmatpush1.msra.mxu0 0.0
      %2422 = vmatprep.subr.mxu0 0.0
      %2423 = vmatpush1.msra.mxu0 0.0
      %2424 = vmatprep.subr.mxu0 0.0
      %2425 = vmatpush1.msra.mxu0 0.0
      %2426 = vmatprep.subr.mxu0 0.0
      %2427 = vmatpush1.msra.mxu0 0.0
      %2428 = vmatprep.subr.mxu0 0.0
      %2429 = vmatpush1.msra.mxu0 0.0
      %2430 = vmatprep.mubr.f32.mxu0 0.0
      %2431 = vmatmul.mubr.f32.gmra.mrb[0].mxu0 %v2267
      %v2432 = vpop.f32.mrb[0].mxu0
      %v2433 = vadd.f32 0.0, %v2432
      %v2434 = vpop.f32.mrb[0].mxu0
      %2435 = vmatprep.mubr.f32.mxu0 0.0
      %2436 = vmatmul.mubr.f32.gmra.mrb[0].mxu0 %v2270
      %v2437 = vpop.f32.mrb[0].mxu0
      %v2438 = vadd.f32 0.0, %v2437
      %v2439 = vpop.f32.mrb[0].mxu0
      %2440 = vmatprep.mubr.f32.mxu0 0.0
      %2441 = vmatmul.mubr.f32.gmra.mrb[0].mxu0 %v2273
      %v2442 = vpop.f32.mrb[0].mxu0
      %v2443 = vadd.f32 0.0, %v2442
      %v2444 = vpop.f32.mrb[0].mxu0
      %2445 = vmatprep.mubr.f32.mxu0 0.0
      %2446 = vmatmul.mubr.f32.gmra.mrb[0].mxu0 %v2276
      %v2447 = vpop.f32.mrb[0].mxu0
      %v2448 = vadd.f32 0.0, %v2447
      %v2449 = vpop.f32.mrb[0].mxu0
      %2450 = vmatprep.mubr.f32.mxu0 0.0
      %2451 = vmatmul.mubr.f32.gmra.mrb[0].mxu0 %v2279
      %v2452 = vpop.f32.mrb[0].mxu0
      %v2453 = vadd.f32 0.0, %v2452
      %v2454 = vpop.f32.mrb[0].mxu0
      %2455 = vmatprep.mubr.f32.mxu0 0.0
      %2456 = vmatmul.mubr.f32.gmra.mrb[0].mxu0 %v2282
      %v2457 = vpop.f32.mrb[0].mxu0
      %v2458 = vadd.f32 0.0, %v2457
      %v2459 = vpop.f32.mrb[0].mxu0
      %2460 = vmatprep.mubr.f32.mxu0 0.0
      %2461 = vmatmul.mubr.f32.gmra.mrb[0].mxu0 %v2285
      %v2462 = vpop.f32.mrb[0].mxu0
      %v2463 = vadd.f32 0.0, %v2462
      %v2464 = vpop.f32.mrb[0].mxu0
      %2465 = vmatprep.mubr.f32.mxu0 0.0
      %2466 = vmatmul.mubr.f32.gmra.mrb[0].mxu0 %v2288
      %v2467 = vpop.f32.mrb[0].mxu0
      %v2468 = vadd.f32 0.0, %v2467
      %v2469 = vpop.f32.mrb[0].mxu0
      %2470 = vmatprep.mubr.f32.mxu0 0.0
      %2471 = vmatmul.mubr.f32.gmra.mrb[0].mxu0 %v2291
      %v2472 = vpop.f32.mrb[0].mxu0
      %v2473 = vadd.f32 0.0, %v2472
      %v2474 = vpop.f32.mrb[0].mxu0
      %2475 = vmatprep.mubr.f32.mxu0 0.0
      %2476 = vmatmul.mubr.f32.gmra.mrb[0].mxu0 %v2294
      %v2477 = vpop.f32.mrb[0].mxu0
      %v2478 = vadd.f32 0.0, %v2477
      %v2479 = vpop.f32.mrb[0].mxu0
      %2480 = vmatprep.mubr.f32.mxu0 0.0
      %2481 = vmatmul.mubr.f32.gmra.mrb[0].mxu0 %v2297
      %v2482 = vpop.f32.mrb[0].mxu0
      %v2483 = vadd.f32 0.0, %v2482
      %v2484 = vpop.f32.mrb[0].mxu0
      %2485 = vmatprep.mubr.f32.mxu0 0.0
      %2486 = vmatmul.mubr.f32.gmra.mrb[0].mxu0 %v2300
      %v2487 = vpop.f32.mrb[0].mxu0
      %v2488 = vadd.f32 0.0, %v2487
      %v2489 = vpop.f32.mrb[0].mxu0
      %2490 = vmatprep.mubr.f32.mxu0 0.0
      %2491 = vmatmul.mubr.f32.gmra.mrb[0].mxu0 %v2303
      %v2492 = vpop.f32.mrb[0].mxu0
      %v2493 = vadd.f32 0.0, %v2492
      %v2494 = vpop.f32.mrb[0].mxu0
      %2495 = vmatprep.mubr.f32.mxu0 0.0
      %2496 = vmatmul.mubr.f32.gmra.mrb[0].mxu0 %v2306
      %v2497 = vpop.f32.mrb[0].mxu0
      %v2498 = vadd.f32 0.0, %v2497
      %v2499 = vpop.f32.mrb[0].mxu0
      %2500 = vmatprep.mubr.f32.mxu0 0.0
      %2501 = vmatmul.mubr.f32.gmra.mrb[0].mxu0 %v2309
      %v2502 = vpop.f32.mrb[0].mxu0
      %v2503 = vadd.f32 0.0, %v2502
      %v2504 = vpop.f32.mrb[0].mxu0
      %2505 = vmatprep.mubr.f32.mxu0 0.0
      %2506 = vmatmul.mubr.f32.gmra.mrb[0].mxu0 %v2312
      %v2507 = vpop.f32.mrb[0].mxu0
      %v2508 = vadd.f32 0.0, %v2507
      %v2509 = vpop.f32.mrb[0].mxu0
      %2510 = vmatprep.mubr.f32.mxu0 0.0
      %2511 = vmatmul.mubr.f32.gmra.mrb[0].mxu0 %v2315
      %v2512 = vpop.f32.mrb[0].mxu0
      %v2513 = vadd.f32 0.0, %v2512
      %v2514 = vpop.f32.mrb[0].mxu0
      %2515 = vmatprep.mubr.f32.mxu0 0.0
      %2516 = vmatmul.mubr.f32.gmra.mrb[0].mxu0 %v2318
      %v2517 = vpop.f32.mrb[0].mxu0
      %v2518 = vadd.f32 0.0, %v2517
      %v2519 = vpop.f32.mrb[0].mxu0
      %2520 = vmatprep.mubr.f32.mxu0 0.0
      %2521 = vmatmul.mubr.f32.gmra.mrb[0].mxu0 %v2321
      %v2522 = vpop.f32.mrb[0].mxu0
      %v2523 = vadd.f32 0.0, %v2522
      %v2524 = vpop.f32.mrb[0].mxu0
      %2525 = vmatprep.mubr.f32.mxu0 0.0
      %2526 = vmatmul.mubr.f32.gmra.mrb[0].mxu0 %v2324
      %v2527 = vpop.f32.mrb[0].mxu0
      %v2528 = vadd.f32 0.0, %v2527
      %v2529 = vpop.f32.mrb[0].mxu0
      %2530 = vmatprep.mubr.f32.mxu0 0.0
      %2531 = vmatmul.mubr.f32.gmra.mrb[0].mxu0 %v2327
      %v2532 = vpop.f32.mrb[0].mxu0
      %v2533 = vadd.f32 0.0, %v2532
      %v2534 = vpop.f32.mrb[0].mxu0
      %2535 = vmatprep.mubr.f32.mxu0 0.0
      %2536 = vmatmul.mubr.f32.gmra.mrb[0].mxu0 %v2330
      %v2537 = vpop.f32.mrb[0].mxu0
      %v2538 = vadd.f32 0.0, %v2537
      %v2539 = vpop.f32.mrb[0].mxu0
      %2540 = vmatprep.mubr.f32.mxu0 0.0
      %2541 = vmatmul.mubr.f32.gmra.mrb[0].mxu0 %v2333
      %v2542 = vpop.f32.mrb[0].mxu0
      %v2543 = vadd.f32 0.0, %v2542
      %v2544 = vpop.f32.mrb[0].mxu0
      %2545 = vmatprep.mubr.f32.mxu0 0.0
      %2546 = vmatmul.mubr.f32.gmra.mrb[0].mxu0 %v2336
      %v2547 = vpop.f32.mrb[0].mxu0
      %v2548 = vadd.f32 0.0, %v2547
      %v2549 = vpop.f32.mrb[0].mxu0
      %2550 = vmatprep.mubr.f32.mxu0 0.0
      %2551 = vmatmul.mubr.f32.gmra.mrb[0].mxu0 %v2339
      %v2552 = vpop.f32.mrb[0].mxu0
      %v2553 = vadd.f32 0.0, %v2552
      %v2554 = vpop.f32.mrb[0].mxu0
      %2555 = vmatprep.mubr.f32.mxu0 0.0
      %2556 = vmatmul.mubr.f32.gmra.mrb[0].mxu0 %v2342
      %v2557 = vpop.f32.mrb[0].mxu0
      %v2558 = vadd.f32 0.0, %v2557
      %v2559 = vpop.f32.mrb[0].mxu0
      %2560 = vmatprep.mubr.f32.mxu0 0.0
      %2561 = vmatmul.mubr.f32.gmra.mrb[0].mxu0 %v2345
      %v2562 = vpop.f32.mrb[0].mxu0
      %v2563 = vadd.f32 0.0, %v2562
      %v2564 = vpop.f32.mrb[0].mxu0
      %2565 = vmatprep.mubr.f32.mxu0 0.0
      %2566 = vmatmul.mubr.f32.gmra.mrb[0].mxu0 %v2348
      %v2567 = vpop.f32.mrb[0].mxu0
      %v2568 = vadd.f32 0.0, %v2567
      %v2569 = vpop.f32.mrb[0].mxu0
      %2570 = vmatprep.mubr.f32.mxu0 0.0
      %2571 = vmatmul.mubr.f32.gmra.mrb[0].mxu0 %v2351
      %v2572 = vpop.f32.mrb[0].mxu0
      %v2573 = vadd.f32 0.0, %v2572
      %v2574 = vpop.f32.mrb[0].mxu0
      %2575 = vmatprep.mubr.f32.mxu0 0.0
      %2576 = vmatmul.mubr.f32.gmra.mrb[0].mxu0 %v2354
      %v2577 = vpop.f32.mrb[0].mxu0
      %v2578 = vadd.f32 0.0, %v2577
      %v2579 = vpop.f32.mrb[0].mxu0
      %2580 = vmatprep.mubr.f32.mxu0 0.0
      %2581 = vmatmul.mubr.f32.gmra.mrb[0].mxu0 %v2357
      %v2582 = vpop.f32.mrb[0].mxu0
      %v2583 = vadd.f32 0.0, %v2582
      %v2584 = vpop.f32.mrb[0].mxu0
      %2585 = vmatprep.mubr.f32.mxu0 0.0
      %2586 = vmatmul.mubr.f32.gmra.mrb[0].mxu0 %v2360
      %v2587 = vpop.f32.mrb[0].mxu0
      %v2588 = vadd.f32 0.0, %v2587
      %v2589 = vpop.f32.mrb[0].mxu0
      %2590 = vdwg.mxu0
      %v2591 = vld [vmem:[%s5] sm:$0x1]
      %v2593 = vlaneseq
      %v2594 = vshrl.u32 %v2593, 7
      %v2595 = vsub.s32 0, %v2594
      %v2596 = vrot.slane %v2591, %v2595
      %v2598 = vmul.f32 %v2433, %v2596
      %v2599 = vmul.f32 %v2438, %v2596
      %v2600 = vmul.f32 %v2443, %v2596
      %v2601 = vmul.f32 %v2448, %v2596
      %v2602 = vmul.f32 %v2453, %v2596
      %v2603 = vmul.f32 %v2458, %v2596
      %v2604 = vmul.f32 %v2463, %v2596
      %v2605 = vmul.f32 %v2468, %v2596
      %v2606 = vmul.f32 %v2473, %v2596
      %v2607 = vmul.f32 %v2478, %v2596
      %v2608 = vmul.f32 %v2483, %v2596
      %v2609 = vmul.f32 %v2488, %v2596
      %v2610 = vmul.f32 %v2493, %v2596
      %v2611 = vmul.f32 %v2498, %v2596
      %v2612 = vmul.f32 %v2503, %v2596
      %v2613 = vmul.f32 %v2508, %v2596
      %v2614 = vmul.f32 %v2513, %v2596
      %v2615 = vmul.f32 %v2518, %v2596
      %v2616 = vmul.f32 %v2523, %v2596
      %v2617 = vmul.f32 %v2528, %v2596
      %v2618 = vmul.f32 %v2533, %v2596
      %v2619 = vmul.f32 %v2538, %v2596
      %v2620 = vmul.f32 %v2543, %v2596
      %v2621 = vmul.f32 %v2548, %v2596
      %v2622 = vmul.f32 %v2553, %v2596
      %v2623 = vmul.f32 %v2558, %v2596
      %v2624 = vmul.f32 %v2563, %v2596
      %v2625 = vmul.f32 %v2568, %v2596
      %v2626 = vmul.f32 %v2573, %v2596
      %v2627 = vmul.f32 %v2578, %v2596
      %v2628 = vmul.f32 %v2583, %v2596
      %v2629 = vmul.f32 %v2588, %v2596
      %v2630 = vld [vmem:[%s6] sm:$0x1]
      %v2632 = vlaneseq
      %v2633 = vshrl.u32 %v2632, 7
      %v2634 = vsub.s32 0, %v2633
      %v2635 = vrot.slane %v2630, %v2634
      %v2637 = vadd.f32 %v2598, %v2635
      %v2638 = vadd.f32 %v2599, %v2635
      %v2639 = vadd.f32 %v2600, %v2635
      %v2640 = vadd.f32 %v2601, %v2635
      %v2641 = vadd.f32 %v2602, %v2635
      %v2642 = vadd.f32 %v2603, %v2635
      %v2643 = vadd.f32 %v2604, %v2635
      %v2644 = vadd.f32 %v2605, %v2635
      %v2645 = vadd.f32 %v2606, %v2635
      %v2646 = vadd.f32 %v2607, %v2635
      %v2647 = vadd.f32 %v2608, %v2635
      %v2648 = vadd.f32 %v2609, %v2635
      %v2649 = vadd.f32 %v2610, %v2635
      %v2650 = vadd.f32 %v2611, %v2635
      %v2651 = vadd.f32 %v2612, %v2635
      %v2652 = vadd.f32 %v2613, %v2635
      %v2653 = vadd.f32 %v2614, %v2635
      %v2654 = vadd.f32 %v2615, %v2635
      %v2655 = vadd.f32 %v2616, %v2635
      %v2656 = vadd.f32 %v2617, %v2635
      %v2657 = vadd.f32 %v2618, %v2635
      %v2658 = vadd.f32 %v2619, %v2635
      %v2659 = vadd.f32 %v2620, %v2635
      %v2660 = vadd.f32 %v2621, %v2635
      %v2661 = vadd.f32 %v2622, %v2635
      %v2662 = vadd.f32 %v2623, %v2635
      %v2663 = vadd.f32 %v2624, %v2635
      %v2664 = vadd.f32 %v2625, %v2635
      %v2665 = vadd.f32 %v2626, %v2635
      %v2666 = vadd.f32 %v2627, %v2635
      %v2667 = vadd.f32 %v2628, %v2635
      %v2668 = vadd.f32 %v2629, %v2635
      %vm2669 = vcmp.ge.f32.partialorder %v2637, 0.0
      %vm2670 = vcmp.ge.f32.partialorder %v2638, 0.0
      %vm2671 = vcmp.ge.f32.partialorder %v2639, 0.0
      %vm2672 = vcmp.ge.f32.partialorder %v2640, 0.0
      %vm2673 = vcmp.ge.f32.partialorder %v2641, 0.0
      %vm2674 = vcmp.ge.f32.partialorder %v2642, 0.0
      %vm2675 = vcmp.ge.f32.partialorder %v2643, 0.0
      %vm2676 = vcmp.ge.f32.partialorder %v2644, 0.0
      %vm2677 = vcmp.ge.f32.partialorder %v2645, 0.0
      %vm2678 = vcmp.ge.f32.partialorder %v2646, 0.0
      %vm2679 = vcmp.ge.f32.partialorder %v2647, 0.0
      %vm2680 = vcmp.ge.f32.partialorder %v2648, 0.0
      %vm2681 = vcmp.ge.f32.partialorder %v2649, 0.0
      %vm2682 = vcmp.ge.f32.partialorder %v2650, 0.0
      %vm2683 = vcmp.ge.f32.partialorder %v2651, 0.0
      %vm2684 = vcmp.ge.f32.partialorder %v2652, 0.0
      %vm2685 = vcmp.ge.f32.partialorder %v2653, 0.0
      %vm2686 = vcmp.ge.f32.partialorder %v2654, 0.0
      %vm2687 = vcmp.ge.f32.partialorder %v2655, 0.0
      %vm2688 = vcmp.ge.f32.partialorder %v2656, 0.0
      %vm2689 = vcmp.ge.f32.partialorder %v2657, 0.0
      %vm2690 = vcmp.ge.f32.partialorder %v2658, 0.0
      %vm2691 = vcmp.ge.f32.partialorder %v2659, 0.0
      %vm2692 = vcmp.ge.f32.partialorder %v2660, 0.0
      %vm2693 = vcmp.ge.f32.partialorder %v2661, 0.0
      %vm2694 = vcmp.ge.f32.partialorder %v2662, 0.0
      %vm2695 = vcmp.ge.f32.partialorder %v2663, 0.0
      %vm2696 = vcmp.ge.f32.partialorder %v2664, 0.0
      %vm2697 = vcmp.ge.f32.partialorder %v2665, 0.0
      %vm2698 = vcmp.ge.f32.partialorder %v2666, 0.0
      %vm2699 = vcmp.ge.f32.partialorder %v2667, 0.0
      %vm2700 = vcmp.ge.f32.partialorder %v2668, 0.0
      %v2701 = vmul.f32 %v2637, 0.01
      %v2702 = vmul.f32 %v2638, 0.01
      %v2703 = vmul.f32 %v2639, 0.01
      %v2704 = vmul.f32 %v2640, 0.01
      %v2705 = vmul.f32 %v2641, 0.01
      %v2706 = vmul.f32 %v2642, 0.01
      %v2707 = vmul.f32 %v2643, 0.01
      %v2708 = vmul.f32 %v2644, 0.01
      %v2709 = vmul.f32 %v2645, 0.01
      %v2710 = vmul.f32 %v2646, 0.01
      %v2711 = vmul.f32 %v2647, 0.01
      %v2712 = vmul.f32 %v2648, 0.01
      %v2713 = vmul.f32 %v2649, 0.01
      %v2714 = vmul.f32 %v2650, 0.01
      %v2715 = vmul.f32 %v2651, 0.01
      %v2716 = vmul.f32 %v2652, 0.01
      %v2717 = vmul.f32 %v2653, 0.01
      %v2718 = vmul.f32 %v2654, 0.01
      %v2719 = vmul.f32 %v2655, 0.01
      %v2720 = vmul.f32 %v2656, 0.01
      %v2721 = vmul.f32 %v2657, 0.01
      %v2722 = vmul.f32 %v2658, 0.01
      %v2723 = vmul.f32 %v2659, 0.01
      %v2724 = vmul.f32 %v2660, 0.01
      %v2725 = vmul.f32 %v2661, 0.01
      %v2726 = vmul.f32 %v2662, 0.01
      %v2727 = vmul.f32 %v2663, 0.01
      %v2728 = vmul.f32 %v2664, 0.01
      %v2729 = vmul.f32 %v2665, 0.01
      %v2730 = vmul.f32 %v2666, 0.01
      %v2731 = vmul.f32 %v2667, 0.01
      %v2732 = vmul.f32 %v2668, 0.01
      %v2733 = vsel %vm2669, %v2637, %v2701
      %v2734 = vsel %vm2670, %v2638, %v2702
      %v2735 = vsel %vm2671, %v2639, %v2703
      %v2736 = vsel %vm2672, %v2640, %v2704
      %v2737 = vsel %vm2673, %v2641, %v2705
      %v2738 = vsel %vm2674, %v2642, %v2706
      %v2739 = vsel %vm2675, %v2643, %v2707
      %v2740 = vsel %vm2676, %v2644, %v2708
      %v2741 = vsel %vm2677, %v2645, %v2709
      %v2742 = vsel %vm2678, %v2646, %v2710
      %v2743 = vsel %vm2679, %v2647, %v2711
      %v2744 = vsel %vm2680, %v2648, %v2712
      %v2745 = vsel %vm2681, %v2649, %v2713
      %v2746 = vsel %vm2682, %v2650, %v2714
      %v2747 = vsel %vm2683, %v2651, %v2715
      %v2748 = vsel %vm2684, %v2652, %v2716
      %v2749 = vsel %vm2685, %v2653, %v2717
      %v2750 = vsel %vm2686, %v2654, %v2718
      %v2751 = vsel %vm2687, %v2655, %v2719
      %v2752 = vsel %vm2688, %v2656, %v2720
      %v2753 = vsel %vm2689, %v2657, %v2721
      %v2754 = vsel %vm2690, %v2658, %v2722
      %v2755 = vsel %vm2691, %v2659, %v2723
      %v2756 = vsel %vm2692, %v2660, %v2724
      %v2757 = vsel %vm2693, %v2661, %v2725
      %v2758 = vsel %vm2694, %v2662, %v2726
      %v2759 = vsel %vm2695, %v2663, %v2727
      %v2760 = vsel %vm2696, %v2664, %v2728
      %v2761 = vsel %vm2697, %v2665, %v2729
      %v2762 = vsel %vm2698, %v2666, %v2730
      %v2763 = vsel %vm2699, %v2667, %v2731
      %v2764 = vsel %vm2700, %v2668, %v2732
      %s2765 = scalar_lea.vmem [#allocation3], 24
      %2766 = vst.msk [vmem:[%s2765 + $0x1] sm:$0xff] %vm524, %v2733
      %2767 = vst.msk [vmem:[%s2765 + $0x9] sm:$0xff] %vm524, %v2734
      %2768 = vst.msk [vmem:[%s2765 + $0x19] sm:$0xff] %vm524, %v2735
      %2769 = vst.msk [vmem:[%s2765 + $0x21] sm:$0xff] %vm524, %v2736
      %2770 = vst.msk [vmem:[%s2765 + $0x31] sm:$0xff] %vm524, %v2737
      %2771 = vst.msk [vmem:[%s2765 + $0x39] sm:$0xff] %vm524, %v2738
      %2772 = vst.msk [vmem:[%s2765 + $0x49] sm:$0xff] %vm524, %v2739
      %2773 = vst.msk [vmem:[%s2765 + $0x51] sm:$0xff] %vm524, %v2740
      %2774 = vst.msk [vmem:[%s2765 + $0x61] sm:$0xff] %vm524, %v2741
      %2775 = vst.msk [vmem:[%s2765 + $0x69] sm:$0xff] %vm524, %v2742
      %2776 = vst.msk [vmem:[%s2765 + $0x79] sm:$0xff] %vm524, %v2743
      %2777 = vst.msk [vmem:[%s2765 + $0x81] sm:$0xff] %vm524, %v2744
      %2778 = vst.msk [vmem:[%s2765 + $0x91] sm:$0xff] %vm524, %v2745
      %2779 = vst.msk [vmem:[%s2765 + $0x99] sm:$0xff] %vm524, %v2746
      %2780 = vst.msk [vmem:[%s2765 + $0xa9] sm:$0xff] %vm524, %v2747
      %2781 = vst.msk [vmem:[%s2765 + $0xb1] sm:$0xff] %vm524, %v2748
      %2782 = vst.msk [vmem:[%s2765 + $0xc1] sm:$0xff] %vm524, %v2749
      %2783 = vst.msk [vmem:[%s2765 + $0xc9] sm:$0xff] %vm524, %v2750
      %2784 = vst.msk [vmem:[%s2765 + $0xd9] sm:$0xff] %vm524, %v2751
      %2785 = vst.msk [vmem:[%s2765 + $0xe1] sm:$0xff] %vm524, %v2752
      %2786 = vst.msk [vmem:[%s2765 + $0xf1] sm:$0xff] %vm524, %v2753
      %2787 = vst.msk [vmem:[%s2765 + $0xf9] sm:$0xff] %vm524, %v2754
      %2788 = vst.msk [vmem:[%s2765 + $0x109] sm:$0xff] %vm524, %v2755
      %2789 = vst.msk [vmem:[%s2765 + $0x111] sm:$0xff] %vm524, %v2756
      %2790 = vst.msk [vmem:[%s2765 + $0x121] sm:$0xff] %vm524, %v2757
      %2791 = vst.msk [vmem:[%s2765 + $0x129] sm:$0xff] %vm524, %v2758
      %2792 = vst.msk [vmem:[%s2765 + $0x139] sm:$0xff] %vm524, %v2759
      %2793 = vst.msk [vmem:[%s2765 + $0x141] sm:$0xff] %vm524, %v2760
      %2794 = vst.msk [vmem:[%s2765 + $0x151] sm:$0xff] %vm524, %v2761
      %2795 = vst.msk [vmem:[%s2765 + $0x159] sm:$0xff] %vm524, %v2762
      %2796 = vst.msk [vmem:[%s2765 + $0x169] sm:$0xff] %vm524, %v2763
      %2797 = vst.msk [vmem:[%s2765 + $0x171] sm:$0xff] %vm524, %v2764
      %v2798 = vld [vmem:[#allocation3] sm:$0xff]
      %v2799 = vld [vmem:[#allocation3 + $0x8] sm:$0xff]
      %v2800 = vld [vmem:[#allocation3 + $0x18] sm:$0xff]
      %v2801 = vld [vmem:[#allocation3 + $0x20] sm:$0xff]
      %v2802 = vld [vmem:[#allocation3 + $0x30] sm:$0xff]
      %v2803 = vld [vmem:[#allocation3 + $0x38] sm:$0xff]
      %v2804 = vld [vmem:[#allocation3 + $0x48] sm:$0xff]
      %v2805 = vld [vmem:[#allocation3 + $0x50] sm:$0xff]
      %v2806 = vld [vmem:[#allocation3 + $0x60] sm:$0xff]
      %v2807 = vld [vmem:[#allocation3 + $0x68] sm:$0xff]
      %v2808 = vld [vmem:[#allocation3 + $0x78] sm:$0xff]
      %v2809 = vld [vmem:[#allocation3 + $0x80] sm:$0xff]
      %v2810 = vld [vmem:[#allocation3 + $0x90] sm:$0xff]
      %v2811 = vld [vmem:[#allocation3 + $0x98] sm:$0xff]
      %v2812 = vld [vmem:[#allocation3 + $0xa8] sm:$0xff]
      %v2813 = vld [vmem:[#allocation3 + $0xb0] sm:$0xff]
      %v2814 = vld [vmem:[#allocation3 + $0xc0] sm:$0xff]
      %v2815 = vld [vmem:[#allocation3 + $0xc8] sm:$0xff]
      %v2816 = vld [vmem:[#allocation3 + $0xd8] sm:$0xff]
      %v2817 = vld [vmem:[#allocation3 + $0xe0] sm:$0xff]
      %v2818 = vld [vmem:[#allocation3 + $0xf0] sm:$0xff]
      %v2819 = vld [vmem:[#allocation3 + $0xf8] sm:$0xff]
      %v2820 = vld [vmem:[#allocation3 + $0x108] sm:$0xff]
      %v2821 = vld [vmem:[#allocation3 + $0x110] sm:$0xff]
      %v2822 = vld [vmem:[#allocation3 + $0x120] sm:$0xff]
      %v2823 = vld [vmem:[#allocation3 + $0x128] sm:$0xff]
      %v2824 = vld [vmem:[#allocation3 + $0x138] sm:$0xff]
      %v2825 = vld [vmem:[#allocation3 + $0x140] sm:$0xff]
      %v2826 = vld [vmem:[#allocation3 + $0x150] sm:$0xff]
      %v2827 = vld [vmem:[#allocation3 + $0x158] sm:$0xff]
      %v2828 = vld [vmem:[#allocation3 + $0x168] sm:$0xff]
      %v2829 = vld [vmem:[#allocation3 + $0x170] sm:$0xff]
      %v2830 = vld [vmem:[#allocation3 + $0x1] sm:$0xff]
      %v2831 = vld [vmem:[#allocation3 + $0x9] sm:$0xff]
      %v2832 = vld [vmem:[#allocation3 + $0x19] sm:$0xff]
      %v2833 = vld [vmem:[#allocation3 + $0x21] sm:$0xff]
      %v2834 = vld [vmem:[#allocation3 + $0x31] sm:$0xff]
      %v2835 = vld [vmem:[#allocation3 + $0x39] sm:$0xff]
      %v2836 = vld [vmem:[#allocation3 + $0x49] sm:$0xff]
      %v2837 = vld [vmem:[#allocation3 + $0x51] sm:$0xff]
      %v2838 = vld [vmem:[#allocation3 + $0x61] sm:$0xff]
      %v2839 = vld [vmem:[#allocation3 + $0x69] sm:$0xff]
      %v2840 = vld [vmem:[#allocation3 + $0x79] sm:$0xff]
      %v2841 = vld [vmem:[#allocation3 + $0x81] sm:$0xff]
      %v2842 = vld [vmem:[#allocation3 + $0x91] sm:$0xff]
      %v2843 = vld [vmem:[#allocation3 + $0x99] sm:$0xff]
      %v2844 = vld [vmem:[#allocation3 + $0xa9] sm:$0xff]
      %v2845 = vld [vmem:[#allocation3 + $0xb1] sm:$0xff]
      %v2846 = vld [vmem:[#allocation3 + $0xc1] sm:$0xff]
      %v2847 = vld [vmem:[#allocation3 + $0xc9] sm:$0xff]
      %v2848 = vld [vmem:[#allocation3 + $0xd9] sm:$0xff]
      %v2849 = vld [vmem:[#allocation3 + $0xe1] sm:$0xff]
      %v2850 = vld [vmem:[#allocation3 + $0xf1] sm:$0xff]
      %v2851 = vld [vmem:[#allocation3 + $0xf9] sm:$0xff]
      %v2852 = vld [vmem:[#allocation3 + $0x109] sm:$0xff]
      %v2853 = vld [vmem:[#allocation3 + $0x111] sm:$0xff]
      %v2854 = vld [vmem:[#allocation3 + $0x121] sm:$0xff]
      %v2855 = vld [vmem:[#allocation3 + $0x129] sm:$0xff]
      %v2856 = vld [vmem:[#allocation3 + $0x139] sm:$0xff]
      %v2857 = vld [vmem:[#allocation3 + $0x141] sm:$0xff]
      %v2858 = vld [vmem:[#allocation3 + $0x151] sm:$0xff]
      %v2859 = vld [vmem:[#allocation3 + $0x159] sm:$0xff]
      %v2860 = vld [vmem:[#allocation3 + $0x169] sm:$0xff]
      %v2861 = vld [vmem:[#allocation3 + $0x171] sm:$0xff]
      %v2862 = vld [vmem:[#allocation3 + $0x2] sm:$0xff]
      %v2863 = vld [vmem:[#allocation3 + $0xa] sm:$0xff]
      %v2864 = vld [vmem:[#allocation3 + $0x1a] sm:$0xff]
      %v2865 = vld [vmem:[#allocation3 + $0x22] sm:$0xff]
      %v2866 = vld [vmem:[#allocation3 + $0x32] sm:$0xff]
      %v2867 = vld [vmem:[#allocation3 + $0x3a] sm:$0xff]
      %v2868 = vld [vmem:[#allocation3 + $0x4a] sm:$0xff]
      %v2869 = vld [vmem:[#allocation3 + $0x52] sm:$0xff]
      %v2870 = vld [vmem:[#allocation3 + $0x62] sm:$0xff]
      %v2871 = vld [vmem:[#allocation3 + $0x6a] sm:$0xff]
      %v2872 = vld [vmem:[#allocation3 + $0x7a] sm:$0xff]
      %v2873 = vld [vmem:[#allocation3 + $0x82] sm:$0xff]
      %v2874 = vld [vmem:[#allocation3 + $0x92] sm:$0xff]
      %v2875 = vld [vmem:[#allocation3 + $0x9a] sm:$0xff]
      %v2876 = vld [vmem:[#allocation3 + $0xaa] sm:$0xff]
      %v2877 = vld [vmem:[#allocation3 + $0xb2] sm:$0xff]
      %v2878 = vld [vmem:[#allocation3 + $0xc2] sm:$0xff]
      %v2879 = vld [vmem:[#allocation3 + $0xca] sm:$0xff]
      %v2880 = vld [vmem:[#allocation3 + $0xda] sm:$0xff]
      %v2881 = vld [vmem:[#allocation3 + $0xe2] sm:$0xff]
      %v2882 = vld [vmem:[#allocation3 + $0xf2] sm:$0xff]
      %v2883 = vld [vmem:[#allocation3 + $0xfa] sm:$0xff]
      %v2884 = vld [vmem:[#allocation3 + $0x10a] sm:$0xff]
      %v2885 = vld [vmem:[#allocation3 + $0x112] sm:$0xff]
      %v2886 = vld [vmem:[#allocation3 + $0x122] sm:$0xff]
      %v2887 = vld [vmem:[#allocation3 + $0x12a] sm:$0xff]
      %v2888 = vld [vmem:[#allocation3 + $0x13a] sm:$0xff]
      %v2889 = vld [vmem:[#allocation3 + $0x142] sm:$0xff]
      %v2890 = vld [vmem:[#allocation3 + $0x152] sm:$0xff]
      %v2891 = vld [vmem:[#allocation3 + $0x15a] sm:$0xff]
      %v2892 = vld [vmem:[#allocation3 + $0x16a] sm:$0xff]
      %v2893 = vld [vmem:[#allocation3 + $0x172] sm:$0xff]
      %v2894 = vld [vmem:[%s2765] sm:$0xff]
      %v2895 = vld [vmem:[%s2765 + $0x8] sm:$0xff]
      %v2896 = vld [vmem:[%s2765 + $0x18] sm:$0xff]
      %v2897 = vld [vmem:[%s2765 + $0x20] sm:$0xff]
      %v2898 = vld [vmem:[%s2765 + $0x30] sm:$0xff]
      %v2899 = vld [vmem:[%s2765 + $0x38] sm:$0xff]
      %v2900 = vld [vmem:[%s2765 + $0x48] sm:$0xff]
      %v2901 = vld [vmem:[%s2765 + $0x50] sm:$0xff]
      %v2902 = vld [vmem:[%s2765 + $0x60] sm:$0xff]
      %v2903 = vld [vmem:[%s2765 + $0x68] sm:$0xff]
      %v2904 = vld [vmem:[%s2765 + $0x78] sm:$0xff]
      %v2905 = vld [vmem:[%s2765 + $0x80] sm:$0xff]
      %v2906 = vld [vmem:[%s2765 + $0x90] sm:$0xff]
      %v2907 = vld [vmem:[%s2765 + $0x98] sm:$0xff]
      %v2908 = vld [vmem:[%s2765 + $0xa8] sm:$0xff]
      %v2909 = vld [vmem:[%s2765 + $0xb0] sm:$0xff]
      %v2910 = vld [vmem:[%s2765 + $0xc0] sm:$0xff]
      %v2911 = vld [vmem:[%s2765 + $0xc8] sm:$0xff]
      %v2912 = vld [vmem:[%s2765 + $0xd8] sm:$0xff]
      %v2913 = vld [vmem:[%s2765 + $0xe0] sm:$0xff]
      %v2914 = vld [vmem:[%s2765 + $0xf0] sm:$0xff]
      %v2915 = vld [vmem:[%s2765 + $0xf8] sm:$0xff]
      %v2916 = vld [vmem:[%s2765 + $0x108] sm:$0xff]
      %v2917 = vld [vmem:[%s2765 + $0x110] sm:$0xff]
      %v2918 = vld [vmem:[%s2765 + $0x120] sm:$0xff]
      %v2919 = vld [vmem:[%s2765 + $0x128] sm:$0xff]
      %v2920 = vld [vmem:[%s2765 + $0x138] sm:$0xff]
      %v2921 = vld [vmem:[%s2765 + $0x140] sm:$0xff]
      %v2922 = vld [vmem:[%s2765 + $0x150] sm:$0xff]
      %v2923 = vld [vmem:[%s2765 + $0x158] sm:$0xff]
      %v2924 = vld [vmem:[%s2765 + $0x168] sm:$0xff]
      %v2925 = vld [vmem:[%s2765 + $0x170] sm:$0xff]
      %v2926 = vld [vmem:[%s2765 + $0x1] sm:$0xff]
      %v2927 = vld [vmem:[%s2765 + $0x9] sm:$0xff]
      %v2928 = vld [vmem:[%s2765 + $0x19] sm:$0xff]
      %v2929 = vld [vmem:[%s2765 + $0x21] sm:$0xff]
      %v2930 = vld [vmem:[%s2765 + $0x31] sm:$0xff]
      %v2931 = vld [vmem:[%s2765 + $0x39] sm:$0xff]
      %v2932 = vld [vmem:[%s2765 + $0x49] sm:$0xff]
      %v2933 = vld [vmem:[%s2765 + $0x51] sm:$0xff]
      %v2934 = vld [vmem:[%s2765 + $0x61] sm:$0xff]
      %v2935 = vld [vmem:[%s2765 + $0x69] sm:$0xff]
      %v2936 = vld [vmem:[%s2765 + $0x79] sm:$0xff]
      %v2937 = vld [vmem:[%s2765 + $0x81] sm:$0xff]
      %v2938 = vld [vmem:[%s2765 + $0x91] sm:$0xff]
      %v2939 = vld [vmem:[%s2765 + $0x99] sm:$0xff]
      %v2940 = vld [vmem:[%s2765 + $0xa9] sm:$0xff]
      %v2941 = vld [vmem:[%s2765 + $0xb1] sm:$0xff]
      %v2942 = vld [vmem:[%s2765 + $0xc1] sm:$0xff]
      %v2943 = vld [vmem:[%s2765 + $0xc9] sm:$0xff]
      %v2944 = vld [vmem:[%s2765 + $0xd9] sm:$0xff]
      %v2945 = vld [vmem:[%s2765 + $0xe1] sm:$0xff]
      %v2946 = vld [vmem:[%s2765 + $0xf1] sm:$0xff]
      %v2947 = vld [vmem:[%s2765 + $0xf9] sm:$0xff]
      %v2948 = vld [vmem:[%s2765 + $0x109] sm:$0xff]
      %v2949 = vld [vmem:[%s2765 + $0x111] sm:$0xff]
      %v2950 = vld [vmem:[%s2765 + $0x121] sm:$0xff]
      %v2951 = vld [vmem:[%s2765 + $0x129] sm:$0xff]
      %v2952 = vld [vmem:[%s2765 + $0x139] sm:$0xff]
      %v2953 = vld [vmem:[%s2765 + $0x141] sm:$0xff]
      %v2954 = vld [vmem:[%s2765 + $0x151] sm:$0xff]
      %v2955 = vld [vmem:[%s2765 + $0x159] sm:$0xff]
      %v2956 = vld [vmem:[%s2765 + $0x169] sm:$0xff]
      %v2957 = vld [vmem:[%s2765 + $0x171] sm:$0xff]
      %v2958 = vld [vmem:[%s2765 + $0x2] sm:$0xff]
      %v2959 = vld [vmem:[%s2765 + $0xa] sm:$0xff]
      %v2960 = vld [vmem:[%s2765 + $0x1a] sm:$0xff]
      %v2961 = vld [vmem:[%s2765 + $0x22] sm:$0xff]
      %v2962 = vld [vmem:[%s2765 + $0x32] sm:$0xff]
      %v2963 = vld [vmem:[%s2765 + $0x3a] sm:$0xff]
      %v2964 = vld [vmem:[%s2765 + $0x4a] sm:$0xff]
      %v2965 = vld [vmem:[%s2765 + $0x52] sm:$0xff]
      %v2966 = vld [vmem:[%s2765 + $0x62] sm:$0xff]
      %v2967 = vld [vmem:[%s2765 + $0x6a] sm:$0xff]
      %v2968 = vld [vmem:[%s2765 + $0x7a] sm:$0xff]
      %v2969 = vld [vmem:[%s2765 + $0x82] sm:$0xff]
      %v2970 = vld [vmem:[%s2765 + $0x92] sm:$0xff]
      %v2971 = vld [vmem:[%s2765 + $0x9a] sm:$0xff]
      %v2972 = vld [vmem:[%s2765 + $0xaa] sm:$0xff]
      %v2973 = vld [vmem:[%s2765 + $0xb2] sm:$0xff]
      %v2974 = vld [vmem:[%s2765 + $0xc2] sm:$0xff]
      %v2975 = vld [vmem:[%s2765 + $0xca] sm:$0xff]
      %v2976 = vld [vmem:[%s2765 + $0xda] sm:$0xff]
      %v2977 = vld [vmem:[%s2765 + $0xe2] sm:$0xff]
      %v2978 = vld [vmem:[%s2765 + $0xf2] sm:$0xff]
      %v2979 = vld [vmem:[%s2765 + $0xfa] sm:$0xff]
      %v2980 = vld [vmem:[%s2765 + $0x10a] sm:$0xff]
      %v2981 = vld [vmem:[%s2765 + $0x112] sm:$0xff]
      %v2982 = vld [vmem:[%s2765 + $0x122] sm:$0xff]
      %v2983 = vld [vmem:[%s2765 + $0x12a] sm:$0xff]
      %v2984 = vld [vmem:[%s2765 + $0x13a] sm:$0xff]
      %v2985 = vld [vmem:[%s2765 + $0x142] sm:$0xff]
      %v2986 = vld [vmem:[%s2765 + $0x152] sm:$0xff]
      %v2987 = vld [vmem:[%s2765 + $0x15a] sm:$0xff]
      %v2988 = vld [vmem:[%s2765 + $0x16a] sm:$0xff]
      %v2989 = vld [vmem:[%s2765 + $0x172] sm:$0xff]
      %s2990 = scalar_lea.vmem [#allocation3], 48
      %v2991 = vld [vmem:[%s2990] sm:$0xff]
      %v2992 = vld [vmem:[%s2990 + $0x8] sm:$0xff]
      %v2993 = vld [vmem:[%s2990 + $0x18] sm:$0xff]
      %v2994 = vld [vmem:[%s2990 + $0x20] sm:$0xff]
      %v2995 = vld [vmem:[%s2990 + $0x30] sm:$0xff]
      %v2996 = vld [vmem:[%s2990 + $0x38] sm:$0xff]
      %v2997 = vld [vmem:[%s2990 + $0x48] sm:$0xff]
      %v2998 = vld [vmem:[%s2990 + $0x50] sm:$0xff]
      %v2999 = vld [vmem:[%s2990 + $0x60] sm:$0xff]
      %v3000 = vld [vmem:[%s2990 + $0x68] sm:$0xff]
      %v3001 = vld [vmem:[%s2990 + $0x78] sm:$0xff]
      %v3002 = vld [vmem:[%s2990 + $0x80] sm:$0xff]
      %v3003 = vld [vmem:[%s2990 + $0x90] sm:$0xff]
      %v3004 = vld [vmem:[%s2990 + $0x98] sm:$0xff]
      %v3005 = vld [vmem:[%s2990 + $0xa8] sm:$0xff]
      %v3006 = vld [vmem:[%s2990 + $0xb0] sm:$0xff]
      %v3007 = vld [vmem:[%s2990 + $0xc0] sm:$0xff]
      %v3008 = vld [vmem:[%s2990 + $0xc8] sm:$0xff]
      %v3009 = vld [vmem:[%s2990 + $0xd8] sm:$0xff]
      %v3010 = vld [vmem:[%s2990 + $0xe0] sm:$0xff]
      %v3011 = vld [vmem:[%s2990 + $0xf0] sm:$0xff]
      %v3012 = vld [vmem:[%s2990 + $0xf8] sm:$0xff]
      %v3013 = vld [vmem:[%s2990 + $0x108] sm:$0xff]
      %v3014 = vld [vmem:[%s2990 + $0x110] sm:$0xff]
      %v3015 = vld [vmem:[%s2990 + $0x120] sm:$0xff]
      %v3016 = vld [vmem:[%s2990 + $0x128] sm:$0xff]
      %v3017 = vld [vmem:[%s2990 + $0x138] sm:$0xff]
      %v3018 = vld [vmem:[%s2990 + $0x140] sm:$0xff]
      %v3019 = vld [vmem:[%s2990 + $0x150] sm:$0xff]
      %v3020 = vld [vmem:[%s2990 + $0x158] sm:$0xff]
      %v3021 = vld [vmem:[%s2990 + $0x168] sm:$0xff]
      %v3022 = vld [vmem:[%s2990 + $0x170] sm:$0xff]
      %v3023 = vld [vmem:[%s2990 + $0x1] sm:$0xff]
      %v3024 = vld [vmem:[%s2990 + $0x9] sm:$0xff]
      %v3025 = vld [vmem:[%s2990 + $0x19] sm:$0xff]
      %v3026 = vld [vmem:[%s2990 + $0x21] sm:$0xff]
      %v3027 = vld [vmem:[%s2990 + $0x31] sm:$0xff]
      %v3028 = vld [vmem:[%s2990 + $0x39] sm:$0xff]
      %v3029 = vld [vmem:[%s2990 + $0x49] sm:$0xff]
      %v3030 = vld [vmem:[%s2990 + $0x51] sm:$0xff]
      %v3031 = vld [vmem:[%s2990 + $0x61] sm:$0xff]
      %v3032 = vld [vmem:[%s2990 + $0x69] sm:$0xff]
      %v3033 = vld [vmem:[%s2990 + $0x79] sm:$0xff]
      %v3034 = vld [vmem:[%s2990 + $0x81] sm:$0xff]
      %v3035 = vld [vmem:[%s2990 + $0x91] sm:$0xff]
      %v3036 = vld [vmem:[%s2990 + $0x99] sm:$0xff]
      %v3037 = vld [vmem:[%s2990 + $0xa9] sm:$0xff]
      %v3038 = vld [vmem:[%s2990 + $0xb1] sm:$0xff]
      %v3039 = vld [vmem:[%s2990 + $0xc1] sm:$0xff]
      %v3040 = vld [vmem:[%s2990 + $0xc9] sm:$0xff]
      %v3041 = vld [vmem:[%s2990 + $0xd9] sm:$0xff]
      %v3042 = vld [vmem:[%s2990 + $0xe1] sm:$0xff]
      %v3043 = vld [vmem:[%s2990 + $0xf1] sm:$0xff]
      %v3044 = vld [vmem:[%s2990 + $0xf9] sm:$0xff]
      %v3045 = vld [vmem:[%s2990 + $0x109] sm:$0xff]
      %v3046 = vld [vmem:[%s2990 + $0x111] sm:$0xff]
      %v3047 = vld [vmem:[%s2990 + $0x121] sm:$0xff]
      %v3048 = vld [vmem:[%s2990 + $0x129] sm:$0xff]
      %v3049 = vld [vmem:[%s2990 + $0x139] sm:$0xff]
      %v3050 = vld [vmem:[%s2990 + $0x141] sm:$0xff]
      %v3051 = vld [vmem:[%s2990 + $0x151] sm:$0xff]
      %v3052 = vld [vmem:[%s2990 + $0x159] sm:$0xff]
      %v3053 = vld [vmem:[%s2990 + $0x169] sm:$0xff]
      %v3054 = vld [vmem:[%s2990 + $0x171] sm:$0xff]
      %v3055 = vld [vmem:[%s2990 + $0x2] sm:$0xff]
      %v3056 = vld [vmem:[%s2990 + $0xa] sm:$0xff]
      %v3057 = vld [vmem:[%s2990 + $0x1a] sm:$0xff]
      %v3058 = vld [vmem:[%s2990 + $0x22] sm:$0xff]
      %v3059 = vld [vmem:[%s2990 + $0x32] sm:$0xff]
      %v3060 = vld [vmem:[%s2990 + $0x3a] sm:$0xff]
      %v3061 = vld [vmem:[%s2990 + $0x4a] sm:$0xff]
      %v3062 = vld [vmem:[%s2990 + $0x52] sm:$0xff]
      %v3063 = vld [vmem:[%s2990 + $0x62] sm:$0xff]
      %v3064 = vld [vmem:[%s2990 + $0x6a] sm:$0xff]
      %v3065 = vld [vmem:[%s2990 + $0x7a] sm:$0xff]
      %v3066 = vld [vmem:[%s2990 + $0x82] sm:$0xff]
      %v3067 = vld [vmem:[%s2990 + $0x92] sm:$0xff]
      %v3068 = vld [vmem:[%s2990 + $0x9a] sm:$0xff]
      %v3069 = vld [vmem:[%s2990 + $0xaa] sm:$0xff]
      %v3070 = vld [vmem:[%s2990 + $0xb2] sm:$0xff]
      %v3071 = vld [vmem:[%s2990 + $0xc2] sm:$0xff]
      %v3072 = vld [vmem:[%s2990 + $0xca] sm:$0xff]
      %v3073 = vld [vmem:[%s2990 + $0xda] sm:$0xff]
      %v3074 = vld [vmem:[%s2990 + $0xe2] sm:$0xff]
      %v3075 = vld [vmem:[%s2990 + $0xf2] sm:$0xff]
      %v3076 = vld [vmem:[%s2990 + $0xfa] sm:$0xff]
      %v3077 = vld [vmem:[%s2990 + $0x10a] sm:$0xff]
      %v3078 = vld [vmem:[%s2990 + $0x112] sm:$0xff]
      %v3079 = vld [vmem:[%s2990 + $0x122] sm:$0xff]
      %v3080 = vld [vmem:[%s2990 + $0x12a] sm:$0xff]
      %v3081 = vld [vmem:[%s2990 + $0x13a] sm:$0xff]
      %v3082 = vld [vmem:[%s2990 + $0x142] sm:$0xff]
      %v3083 = vld [vmem:[%s2990 + $0x152] sm:$0xff]
      %v3084 = vld [vmem:[%s2990 + $0x15a] sm:$0xff]
      %v3085 = vld [vmem:[%s2990 + $0x16a] sm:$0xff]
      %v3086 = vld [vmem:[%s2990 + $0x172] sm:$0xff]
      %3119 = vrot.lane.b32.xlu0 %v2830, 32
      %v3120 = vpop.permute.xlu0 %3119
      %3121 = vrot.lane.b32.xlu0 %v2831, 32
      %v3122 = vpop.permute.xlu0 %3121
      %3123 = vrot.lane.b32.xlu0 %v2832, 32
      %v3124 = vpop.permute.xlu0 %3123
      %3125 = vrot.lane.b32.xlu0 %v2833, 32
      %v3126 = vpop.permute.xlu0 %3125
      %3127 = vrot.lane.b32.xlu0 %v2834, 32
      %v3128 = vpop.permute.xlu0 %3127
      %3129 = vrot.lane.b32.xlu0 %v2835, 32
      %v3130 = vpop.permute.xlu0 %3129
      %3131 = vrot.lane.b32.xlu0 %v2836, 32
      %v3132 = vpop.permute.xlu0 %3131
      %3133 = vrot.lane.b32.xlu0 %v2837, 32
      %v3134 = vpop.permute.xlu0 %3133
      %3135 = vrot.lane.b32.xlu0 %v2838, 32
      %v3136 = vpop.permute.xlu0 %3135
      %3137 = vrot.lane.b32.xlu0 %v2839, 32
      %v3138 = vpop.permute.xlu0 %3137
      %3139 = vrot.lane.b32.xlu0 %v2840, 32
      %v3140 = vpop.permute.xlu0 %3139
      %3141 = vrot.lane.b32.xlu0 %v2841, 32
      %v3142 = vpop.permute.xlu0 %3141
      %3143 = vrot.lane.b32.xlu0 %v2842, 32
      %v3144 = vpop.permute.xlu0 %3143
      %3145 = vrot.lane.b32.xlu0 %v2843, 32
      %v3146 = vpop.permute.xlu0 %3145
      %3147 = vrot.lane.b32.xlu0 %v2844, 32
      %v3148 = vpop.permute.xlu0 %3147
      %3149 = vrot.lane.b32.xlu0 %v2845, 32
      %v3150 = vpop.permute.xlu0 %3149
      %3151 = vrot.lane.b32.xlu0 %v2846, 32
      %v3152 = vpop.permute.xlu0 %3151
      %3153 = vrot.lane.b32.xlu0 %v2847, 32
      %v3154 = vpop.permute.xlu0 %3153
      %3155 = vrot.lane.b32.xlu0 %v2848, 32
      %v3156 = vpop.permute.xlu0 %3155
      %3157 = vrot.lane.b32.xlu0 %v2849, 32
      %v3158 = vpop.permute.xlu0 %3157
      %3159 = vrot.lane.b32.xlu0 %v2850, 32
      %v3160 = vpop.permute.xlu0 %3159
      %3161 = vrot.lane.b32.xlu0 %v2851, 32
      %v3162 = vpop.permute.xlu0 %3161
      %3163 = vrot.lane.b32.xlu0 %v2852, 32
      %v3164 = vpop.permute.xlu0 %3163
      %3165 = vrot.lane.b32.xlu0 %v2853, 32
      %v3166 = vpop.permute.xlu0 %3165
      %3167 = vrot.lane.b32.xlu0 %v2854, 32
      %v3168 = vpop.permute.xlu0 %3167
      %3169 = vrot.lane.b32.xlu0 %v2855, 32
      %v3170 = vpop.permute.xlu0 %3169
      %3171 = vrot.lane.b32.xlu0 %v2856, 32
      %v3172 = vpop.permute.xlu0 %3171
      %3173 = vrot.lane.b32.xlu0 %v2857, 32
      %v3174 = vpop.permute.xlu0 %3173
      %3175 = vrot.lane.b32.xlu0 %v2858, 32
      %v3176 = vpop.permute.xlu0 %3175
      %3177 = vrot.lane.b32.xlu0 %v2859, 32
      %v3178 = vpop.permute.xlu0 %3177
      %3179 = vrot.lane.b32.xlu0 %v2860, 32
      %v3180 = vpop.permute.xlu0 %3179
      %3181 = vrot.lane.b32.xlu0 %v2861, 32
      %v3182 = vpop.permute.xlu0 %3181
      %3247 = vrot.lane.b32.xlu0 %v2862, 64
      %v3248 = vpop.permute.xlu0 %3247
      %3249 = vrot.lane.b32.xlu0 %v2863, 64
      %v3250 = vpop.permute.xlu0 %3249
      %3251 = vrot.lane.b32.xlu0 %v2864, 64
      %v3252 = vpop.permute.xlu0 %3251
      %3253 = vrot.lane.b32.xlu0 %v2865, 64
      %v3254 = vpop.permute.xlu0 %3253
      %3255 = vrot.lane.b32.xlu0 %v2866, 64
      %v3256 = vpop.permute.xlu0 %3255
      %3257 = vrot.lane.b32.xlu0 %v2867, 64
      %v3258 = vpop.permute.xlu0 %3257
      %3259 = vrot.lane.b32.xlu0 %v2868, 64
      %v3260 = vpop.permute.xlu0 %3259
      %3261 = vrot.lane.b32.xlu0 %v2869, 64
      %v3262 = vpop.permute.xlu0 %3261
      %3263 = vrot.lane.b32.xlu0 %v2870, 64
      %v3264 = vpop.permute.xlu0 %3263
      %3265 = vrot.lane.b32.xlu0 %v2871, 64
      %v3266 = vpop.permute.xlu0 %3265
      %3267 = vrot.lane.b32.xlu0 %v2872, 64
      %v3268 = vpop.permute.xlu0 %3267
      %3269 = vrot.lane.b32.xlu0 %v2873, 64
      %v3270 = vpop.permute.xlu0 %3269
      %3271 = vrot.lane.b32.xlu0 %v2874, 64
      %v3272 = vpop.permute.xlu0 %3271
      %3273 = vrot.lane.b32.xlu0 %v2875, 64
      %v3274 = vpop.permute.xlu0 %3273
      %3275 = vrot.lane.b32.xlu0 %v2876, 64
      %v3276 = vpop.permute.xlu0 %3275
      %3277 = vrot.lane.b32.xlu0 %v2877, 64
      %v3278 = vpop.permute.xlu0 %3277
      %3279 = vrot.lane.b32.xlu0 %v2878, 64
      %v3280 = vpop.permute.xlu0 %3279
      %3281 = vrot.lane.b32.xlu0 %v2879, 64
      %v3282 = vpop.permute.xlu0 %3281
      %3283 = vrot.lane.b32.xlu0 %v2880, 64
      %v3284 = vpop.permute.xlu0 %3283
      %3285 = vrot.lane.b32.xlu0 %v2881, 64
      %v3286 = vpop.permute.xlu0 %3285
      %3287 = vrot.lane.b32.xlu0 %v2882, 64
      %v3288 = vpop.permute.xlu0 %3287
      %3289 = vrot.lane.b32.xlu0 %v2883, 64
      %v3290 = vpop.permute.xlu0 %3289
      %3291 = vrot.lane.b32.xlu0 %v2884, 64
      %v3292 = vpop.permute.xlu0 %3291
      %3293 = vrot.lane.b32.xlu0 %v2885, 64
      %v3294 = vpop.permute.xlu0 %3293
      %3295 = vrot.lane.b32.xlu0 %v2886, 64
      %v3296 = vpop.permute.xlu0 %3295
      %3297 = vrot.lane.b32.xlu0 %v2887, 64
      %v3298 = vpop.permute.xlu0 %3297
      %3299 = vrot.lane.b32.xlu0 %v2888, 64
      %v3300 = vpop.permute.xlu0 %3299
      %3301 = vrot.lane.b32.xlu0 %v2889, 64
      %v3302 = vpop.permute.xlu0 %3301
      %3303 = vrot.lane.b32.xlu0 %v2890, 64
      %v3304 = vpop.permute.xlu0 %3303
      %3305 = vrot.lane.b32.xlu0 %v2891, 64
      %v3306 = vpop.permute.xlu0 %3305
      %3307 = vrot.lane.b32.xlu0 %v2892, 64
      %v3308 = vpop.permute.xlu0 %3307
      %3309 = vrot.lane.b32.xlu0 %v2893, 64
      %v3310 = vpop.permute.xlu0 %3309
      %3375 = vrot.lane.b32.xlu0 %v2894, 96
      %v3376 = vpop.permute.xlu0 %3375
      %3377 = vrot.lane.b32.xlu0 %v2895, 96
      %v3378 = vpop.permute.xlu0 %3377
      %3379 = vrot.lane.b32.xlu0 %v2896, 96
      %v3380 = vpop.permute.xlu0 %3379
      %3381 = vrot.lane.b32.xlu0 %v2897, 96
      %v3382 = vpop.permute.xlu0 %3381
      %3383 = vrot.lane.b32.xlu0 %v2898, 96
      %v3384 = vpop.permute.xlu0 %3383
      %3385 = vrot.lane.b32.xlu0 %v2899, 96
      %v3386 = vpop.permute.xlu0 %3385
      %3387 = vrot.lane.b32.xlu0 %v2900, 96
      %v3388 = vpop.permute.xlu0 %3387
      %3389 = vrot.lane.b32.xlu0 %v2901, 96
      %v3390 = vpop.permute.xlu0 %3389
      %3391 = vrot.lane.b32.xlu0 %v2902, 96
      %v3392 = vpop.permute.xlu0 %3391
      %3393 = vrot.lane.b32.xlu0 %v2903, 96
      %v3394 = vpop.permute.xlu0 %3393
      %3395 = vrot.lane.b32.xlu0 %v2904, 96
      %v3396 = vpop.permute.xlu0 %3395
      %3397 = vrot.lane.b32.xlu0 %v2905, 96
      %v3398 = vpop.permute.xlu0 %3397
      %3399 = vrot.lane.b32.xlu0 %v2906, 96
      %v3400 = vpop.permute.xlu0 %3399
      %3401 = vrot.lane.b32.xlu0 %v2907, 96
      %v3402 = vpop.permute.xlu0 %3401
      %3403 = vrot.lane.b32.xlu0 %v2908, 96
      %v3404 = vpop.permute.xlu0 %3403
      %3405 = vrot.lane.b32.xlu0 %v2909, 96
      %v3406 = vpop.permute.xlu0 %3405
      %3407 = vrot.lane.b32.xlu0 %v2910, 96
      %v3408 = vpop.permute.xlu0 %3407
      %3409 = vrot.lane.b32.xlu0 %v2911, 96
      %v3410 = vpop.permute.xlu0 %3409
      %3411 = vrot.lane.b32.xlu0 %v2912, 96
      %v3412 = vpop.permute.xlu0 %3411
      %3413 = vrot.lane.b32.xlu0 %v2913, 96
      %v3414 = vpop.permute.xlu0 %3413
      %3415 = vrot.lane.b32.xlu0 %v2914, 96
      %v3416 = vpop.permute.xlu0 %3415
      %3417 = vrot.lane.b32.xlu0 %v2915, 96
      %v3418 = vpop.permute.xlu0 %3417
      %3419 = vrot.lane.b32.xlu0 %v2916, 96
      %v3420 = vpop.permute.xlu0 %3419
      %3421 = vrot.lane.b32.xlu0 %v2917, 96
      %v3422 = vpop.permute.xlu0 %3421
      %3423 = vrot.lane.b32.xlu0 %v2918, 96
      %v3424 = vpop.permute.xlu0 %3423
      %3425 = vrot.lane.b32.xlu0 %v2919, 96
      %v3426 = vpop.permute.xlu0 %3425
      %3427 = vrot.lane.b32.xlu0 %v2920, 96
      %v3428 = vpop.permute.xlu0 %3427
      %3429 = vrot.lane.b32.xlu0 %v2921, 96
      %v3430 = vpop.permute.xlu0 %3429
      %3431 = vrot.lane.b32.xlu0 %v2922, 96
      %v3432 = vpop.permute.xlu0 %3431
      %3433 = vrot.lane.b32.xlu0 %v2923, 96
      %v3434 = vpop.permute.xlu0 %3433
      %3435 = vrot.lane.b32.xlu0 %v2924, 96
      %v3436 = vpop.permute.xlu0 %3435
      %3437 = vrot.lane.b32.xlu0 %v2925, 96
      %v3438 = vpop.permute.xlu0 %3437
      %3503 = vrot.lane.b32.xlu0 %v2958, 32
      %v3504 = vpop.permute.xlu0 %3503
      %3505 = vrot.lane.b32.xlu0 %v2959, 32
      %v3506 = vpop.permute.xlu0 %3505
      %3507 = vrot.lane.b32.xlu0 %v2960, 32
      %v3508 = vpop.permute.xlu0 %3507
      %3509 = vrot.lane.b32.xlu0 %v2961, 32
      %v3510 = vpop.permute.xlu0 %3509
      %3511 = vrot.lane.b32.xlu0 %v2962, 32
      %v3512 = vpop.permute.xlu0 %3511
      %3513 = vrot.lane.b32.xlu0 %v2963, 32
      %v3514 = vpop.permute.xlu0 %3513
      %3515 = vrot.lane.b32.xlu0 %v2964, 32
      %v3516 = vpop.permute.xlu0 %3515
      %3517 = vrot.lane.b32.xlu0 %v2965, 32
      %v3518 = vpop.permute.xlu0 %3517
      %3519 = vrot.lane.b32.xlu0 %v2966, 32
      %v3520 = vpop.permute.xlu0 %3519
      %3521 = vrot.lane.b32.xlu0 %v2967, 32
      %v3522 = vpop.permute.xlu0 %3521
      %3523 = vrot.lane.b32.xlu0 %v2968, 32
      %v3524 = vpop.permute.xlu0 %3523
      %3525 = vrot.lane.b32.xlu0 %v2969, 32
      %v3526 = vpop.permute.xlu0 %3525
      %3527 = vrot.lane.b32.xlu0 %v2970, 32
      %v3528 = vpop.permute.xlu0 %3527
      %3529 = vrot.lane.b32.xlu0 %v2971, 32
      %v3530 = vpop.permute.xlu0 %3529
      %3531 = vrot.lane.b32.xlu0 %v2972, 32
      %v3532 = vpop.permute.xlu0 %3531
      %3533 = vrot.lane.b32.xlu0 %v2973, 32
      %v3534 = vpop.permute.xlu0 %3533
      %3535 = vrot.lane.b32.xlu0 %v2974, 32
      %v3536 = vpop.permute.xlu0 %3535
      %3537 = vrot.lane.b32.xlu0 %v2975, 32
      %v3538 = vpop.permute.xlu0 %3537
      %3539 = vrot.lane.b32.xlu0 %v2976, 32
      %v3540 = vpop.permute.xlu0 %3539
      %3541 = vrot.lane.b32.xlu0 %v2977, 32
      %v3542 = vpop.permute.xlu0 %3541
      %3543 = vrot.lane.b32.xlu0 %v2978, 32
      %v3544 = vpop.permute.xlu0 %3543
      %3545 = vrot.lane.b32.xlu0 %v2979, 32
      %v3546 = vpop.permute.xlu0 %3545
      %3547 = vrot.lane.b32.xlu0 %v2980, 32
      %v3548 = vpop.permute.xlu0 %3547
      %3549 = vrot.lane.b32.xlu0 %v2981, 32
      %v3550 = vpop.permute.xlu0 %3549
      %3551 = vrot.lane.b32.xlu0 %v2982, 32
      %v3552 = vpop.permute.xlu0 %3551
      %3553 = vrot.lane.b32.xlu0 %v2983, 32
      %v3554 = vpop.permute.xlu0 %3553
      %3555 = vrot.lane.b32.xlu0 %v2984, 32
      %v3556 = vpop.permute.xlu0 %3555
      %3557 = vrot.lane.b32.xlu0 %v2985, 32
      %v3558 = vpop.permute.xlu0 %3557
      %3559 = vrot.lane.b32.xlu0 %v2986, 32
      %v3560 = vpop.permute.xlu0 %3559
      %3561 = vrot.lane.b32.xlu0 %v2987, 32
      %v3562 = vpop.permute.xlu0 %3561
      %3563 = vrot.lane.b32.xlu0 %v2988, 32
      %v3564 = vpop.permute.xlu0 %3563
      %3565 = vrot.lane.b32.xlu0 %v2989, 32
      %v3566 = vpop.permute.xlu0 %3565
      %3631 = vrot.lane.b32.xlu0 %v2991, 64
      %v3632 = vpop.permute.xlu0 %3631
      %3633 = vrot.lane.b32.xlu0 %v2992, 64
      %v3634 = vpop.permute.xlu0 %3633
      %3635 = vrot.lane.b32.xlu0 %v2993, 64
      %v3636 = vpop.permute.xlu0 %3635
      %3637 = vrot.lane.b32.xlu0 %v2994, 64
      %v3638 = vpop.permute.xlu0 %3637
      %3639 = vrot.lane.b32.xlu0 %v2995, 64
      %v3640 = vpop.permute.xlu0 %3639
      %3641 = vrot.lane.b32.xlu0 %v2996, 64
      %v3642 = vpop.permute.xlu0 %3641
      %3643 = vrot.lane.b32.xlu0 %v2997, 64
      %v3644 = vpop.permute.xlu0 %3643
      %3645 = vrot.lane.b32.xlu0 %v2998, 64
      %v3646 = vpop.permute.xlu0 %3645
      %3647 = vrot.lane.b32.xlu0 %v2999, 64
      %v3648 = vpop.permute.xlu0 %3647
      %3649 = vrot.lane.b32.xlu0 %v3000, 64
      %v3650 = vpop.permute.xlu0 %3649
      %3651 = vrot.lane.b32.xlu0 %v3001, 64
      %v3652 = vpop.permute.xlu0 %3651
      %3653 = vrot.lane.b32.xlu0 %v3002, 64
      %v3654 = vpop.permute.xlu0 %3653
      %3655 = vrot.lane.b32.xlu0 %v3003, 64
      %v3656 = vpop.permute.xlu0 %3655
      %3657 = vrot.lane.b32.xlu0 %v3004, 64
      %v3658 = vpop.permute.xlu0 %3657
      %3659 = vrot.lane.b32.xlu0 %v3005, 64
      %v3660 = vpop.permute.xlu0 %3659
      %3661 = vrot.lane.b32.xlu0 %v3006, 64
      %v3662 = vpop.permute.xlu0 %3661
      %3663 = vrot.lane.b32.xlu0 %v3007, 64
      %v3664 = vpop.permute.xlu0 %3663
      %3665 = vrot.lane.b32.xlu0 %v3008, 64
      %v3666 = vpop.permute.xlu0 %3665
      %3667 = vrot.lane.b32.xlu0 %v3009, 64
      %v3668 = vpop.permute.xlu0 %3667
      %3669 = vrot.lane.b32.xlu0 %v3010, 64
      %v3670 = vpop.permute.xlu0 %3669
      %3671 = vrot.lane.b32.xlu0 %v3011, 64
      %v3672 = vpop.permute.xlu0 %3671
      %3673 = vrot.lane.b32.xlu0 %v3012, 64
      %v3674 = vpop.permute.xlu0 %3673
      %3675 = vrot.lane.b32.xlu0 %v3013, 64
      %v3676 = vpop.permute.xlu0 %3675
      %3677 = vrot.lane.b32.xlu0 %v3014, 64
      %v3678 = vpop.permute.xlu0 %3677
      %3679 = vrot.lane.b32.xlu0 %v3015, 64
      %v3680 = vpop.permute.xlu0 %3679
      %3681 = vrot.lane.b32.xlu0 %v3016, 64
      %v3682 = vpop.permute.xlu0 %3681
      %3683 = vrot.lane.b32.xlu0 %v3017, 64
      %v3684 = vpop.permute.xlu0 %3683
      %3685 = vrot.lane.b32.xlu0 %v3018, 64
      %v3686 = vpop.permute.xlu0 %3685
      %3687 = vrot.lane.b32.xlu0 %v3019, 64
      %v3688 = vpop.permute.xlu0 %3687
      %3689 = vrot.lane.b32.xlu0 %v3020, 64
      %v3690 = vpop.permute.xlu0 %3689
      %3691 = vrot.lane.b32.xlu0 %v3021, 64
      %v3692 = vpop.permute.xlu0 %3691
      %3693 = vrot.lane.b32.xlu0 %v3022, 64
      %v3694 = vpop.permute.xlu0 %3693
      %3759 = vrot.lane.b32.xlu0 %v3023, 96
      %v3760 = vpop.permute.xlu0 %3759
      %3761 = vrot.lane.b32.xlu0 %v3024, 96
      %v3762 = vpop.permute.xlu0 %3761
      %3763 = vrot.lane.b32.xlu0 %v3025, 96
      %v3764 = vpop.permute.xlu0 %3763
      %3765 = vrot.lane.b32.xlu0 %v3026, 96
      %v3766 = vpop.permute.xlu0 %3765
      %3767 = vrot.lane.b32.xlu0 %v3027, 96
      %v3768 = vpop.permute.xlu0 %3767
      %3769 = vrot.lane.b32.xlu0 %v3028, 96
      %v3770 = vpop.permute.xlu0 %3769
      %3771 = vrot.lane.b32.xlu0 %v3029, 96
      %v3772 = vpop.permute.xlu0 %3771
      %3773 = vrot.lane.b32.xlu0 %v3030, 96
      %v3774 = vpop.permute.xlu0 %3773
      %3775 = vrot.lane.b32.xlu0 %v3031, 96
      %v3776 = vpop.permute.xlu0 %3775
      %3777 = vrot.lane.b32.xlu0 %v3032, 96
      %v3778 = vpop.permute.xlu0 %3777
      %3779 = vrot.lane.b32.xlu0 %v3033, 96
      %v3780 = vpop.permute.xlu0 %3779
      %3781 = vrot.lane.b32.xlu0 %v3034, 96
      %v3782 = vpop.permute.xlu0 %3781
      %3783 = vrot.lane.b32.xlu0 %v3035, 96
      %v3784 = vpop.permute.xlu0 %3783
      %3785 = vrot.lane.b32.xlu0 %v3036, 96
      %v3786 = vpop.permute.xlu0 %3785
      %3787 = vrot.lane.b32.xlu0 %v3037, 96
      %v3788 = vpop.permute.xlu0 %3787
      %3789 = vrot.lane.b32.xlu0 %v3038, 96
      %v3790 = vpop.permute.xlu0 %3789
      %3791 = vrot.lane.b32.xlu0 %v3039, 96
      %v3792 = vpop.permute.xlu0 %3791
      %3793 = vrot.lane.b32.xlu0 %v3040, 96
      %v3794 = vpop.permute.xlu0 %3793
      %3795 = vrot.lane.b32.xlu0 %v3041, 96
      %v3796 = vpop.permute.xlu0 %3795
      %3797 = vrot.lane.b32.xlu0 %v3042, 96
      %v3798 = vpop.permute.xlu0 %3797
      %3799 = vrot.lane.b32.xlu0 %v3043, 96
      %v3800 = vpop.permute.xlu0 %3799
      %3801 = vrot.lane.b32.xlu0 %v3044, 96
      %v3802 = vpop.permute.xlu0 %3801
      %3803 = vrot.lane.b32.xlu0 %v3045, 96
      %v3804 = vpop.permute.xlu0 %3803
      %3805 = vrot.lane.b32.xlu0 %v3046, 96
      %v3806 = vpop.permute.xlu0 %3805
      %3807 = vrot.lane.b32.xlu0 %v3047, 96
      %v3808 = vpop.permute.xlu0 %3807
      %3809 = vrot.lane.b32.xlu0 %v3048, 96
      %v3810 = vpop.permute.xlu0 %3809
      %3811 = vrot.lane.b32.xlu0 %v3049, 96
      %v3812 = vpop.permute.xlu0 %3811
      %3813 = vrot.lane.b32.xlu0 %v3050, 96
      %v3814 = vpop.permute.xlu0 %3813
      %3815 = vrot.lane.b32.xlu0 %v3051, 96
      %v3816 = vpop.permute.xlu0 %3815
      %3817 = vrot.lane.b32.xlu0 %v3052, 96
      %v3818 = vpop.permute.xlu0 %3817
      %3819 = vrot.lane.b32.xlu0 %v3053, 96
      %v3820 = vpop.permute.xlu0 %3819
      %3821 = vrot.lane.b32.xlu0 %v3054, 96
      %v3822 = vpop.permute.xlu0 %3821
      %v3855 = vsel %vm524, %v2798, %v3120
      %v3856 = vsel %vm524, %v2799, %v3122
      %v3857 = vsel %vm524, %v2800, %v3124
      %v3858 = vsel %vm524, %v2801, %v3126
      %v3859 = vsel %vm524, %v2802, %v3128
      %v3860 = vsel %vm524, %v2803, %v3130
      %v3861 = vsel %vm524, %v2804, %v3132
      %v3862 = vsel %vm524, %v2805, %v3134
      %v3863 = vsel %vm524, %v2806, %v3136
      %v3864 = vsel %vm524, %v2807, %v3138
      %v3865 = vsel %vm524, %v2808, %v3140
      %v3866 = vsel %vm524, %v2809, %v3142
      %v3867 = vsel %vm524, %v2810, %v3144
      %v3868 = vsel %vm524, %v2811, %v3146
      %v3869 = vsel %vm524, %v2812, %v3148
      %v3870 = vsel %vm524, %v2813, %v3150
      %v3871 = vsel %vm524, %v2814, %v3152
      %v3872 = vsel %vm524, %v2815, %v3154
      %v3873 = vsel %vm524, %v2816, %v3156
      %v3874 = vsel %vm524, %v2817, %v3158
      %v3875 = vsel %vm524, %v2818, %v3160
      %v3876 = vsel %vm524, %v2819, %v3162
      %v3877 = vsel %vm524, %v2820, %v3164
      %v3878 = vsel %vm524, %v2821, %v3166
      %v3879 = vsel %vm524, %v2822, %v3168
      %v3880 = vsel %vm524, %v2823, %v3170
      %v3881 = vsel %vm524, %v2824, %v3172
      %v3882 = vsel %vm524, %v2825, %v3174
      %v3883 = vsel %vm524, %v2826, %v3176
      %v3884 = vsel %vm524, %v2827, %v3178
      %v3885 = vsel %vm524, %v2828, %v3180
      %v3886 = vsel %vm524, %v2829, %v3182
      %v3887 = vsel %vm580, %v3855, %v3248
      %v3888 = vsel %vm580, %v3856, %v3250
      %v3889 = vsel %vm580, %v3857, %v3252
      %v3890 = vsel %vm580, %v3858, %v3254
      %v3891 = vsel %vm580, %v3859, %v3256
      %v3892 = vsel %vm580, %v3860, %v3258
      %v3893 = vsel %vm580, %v3861, %v3260
      %v3894 = vsel %vm580, %v3862, %v3262
      %v3895 = vsel %vm580, %v3863, %v3264
      %v3896 = vsel %vm580, %v3864, %v3266
      %v3897 = vsel %vm580, %v3865, %v3268
      %v3898 = vsel %vm580, %v3866, %v3270
      %v3899 = vsel %vm580, %v3867, %v3272
      %v3900 = vsel %vm580, %v3868, %v3274
      %v3901 = vsel %vm580, %v3869, %v3276
      %v3902 = vsel %vm580, %v3870, %v3278
      %v3903 = vsel %vm580, %v3871, %v3280
      %v3904 = vsel %vm580, %v3872, %v3282
      %v3905 = vsel %vm580, %v3873, %v3284
      %v3906 = vsel %vm580, %v3874, %v3286
      %v3907 = vsel %vm580, %v3875, %v3288
      %v3908 = vsel %vm580, %v3876, %v3290
      %v3909 = vsel %vm580, %v3877, %v3292
      %v3910 = vsel %vm580, %v3878, %v3294
      %v3911 = vsel %vm580, %v3879, %v3296
      %v3912 = vsel %vm580, %v3880, %v3298
      %v3913 = vsel %vm580, %v3881, %v3300
      %v3914 = vsel %vm580, %v3882, %v3302
      %v3915 = vsel %vm580, %v3883, %v3304
      %v3916 = vsel %vm580, %v3884, %v3306
      %v3917 = vsel %vm580, %v3885, %v3308
      %v3918 = vsel %vm580, %v3886, %v3310
      %vm3919 = vcmask 785408
      %v3920 = vsel %vm3919, %v3887, %v3376
      %v3921 = vsel %vm3919, %v3888, %v3378
      %v3922 = vsel %vm3919, %v3889, %v3380
      %v3923 = vsel %vm3919, %v3890, %v3382
      %v3924 = vsel %vm3919, %v3891, %v3384
      %v3925 = vsel %vm3919, %v3892, %v3386
      %v3926 = vsel %vm3919, %v3893, %v3388
      %v3927 = vsel %vm3919, %v3894, %v3390
      %v3928 = vsel %vm3919, %v3895, %v3392
      %v3929 = vsel %vm3919, %v3896, %v3394
      %v3930 = vsel %vm3919, %v3897, %v3396
      %v3931 = vsel %vm3919, %v3898, %v3398
      %v3932 = vsel %vm3919, %v3899, %v3400
      %v3933 = vsel %vm3919, %v3900, %v3402
      %v3934 = vsel %vm3919, %v3901, %v3404
      %v3935 = vsel %vm3919, %v3902, %v3406
      %v3936 = vsel %vm3919, %v3903, %v3408
      %v3937 = vsel %vm3919, %v3904, %v3410
      %v3938 = vsel %vm3919, %v3905, %v3412
      %v3939 = vsel %vm3919, %v3906, %v3414
      %v3940 = vsel %vm3919, %v3907, %v3416
      %v3941 = vsel %vm3919, %v3908, %v3418
      %v3942 = vsel %vm3919, %v3909, %v3420
      %v3943 = vsel %vm3919, %v3910, %v3422
      %v3944 = vsel %vm3919, %v3911, %v3424
      %v3945 = vsel %vm3919, %v3912, %v3426
      %v3946 = vsel %vm3919, %v3913, %v3428
      %v3947 = vsel %vm3919, %v3914, %v3430
      %v3948 = vsel %vm3919, %v3915, %v3432
      %v3949 = vsel %vm3919, %v3916, %v3434
      %v3950 = vsel %vm3919, %v3917, %v3436
      %v3951 = vsel %vm3919, %v3918, %v3438
      %v3952 = vsel %vm524, %v2926, %v3504
      %v3953 = vsel %vm524, %v2927, %v3506
      %v3954 = vsel %vm524, %v2928, %v3508
      %v3955 = vsel %vm524, %v2929, %v3510
      %v3956 = vsel %vm524, %v2930, %v3512
      %v3957 = vsel %vm524, %v2931, %v3514
      %v3958 = vsel %vm524, %v2932, %v3516
      %v3959 = vsel %vm524, %v2933, %v3518
      %v3960 = vsel %vm524, %v2934, %v3520
      %v3961 = vsel %vm524, %v2935, %v3522
      %v3962 = vsel %vm524, %v2936, %v3524
      %v3963 = vsel %vm524, %v2937, %v3526
      %v3964 = vsel %vm524, %v2938, %v3528
      %v3965 = vsel %vm524, %v2939, %v3530
      %v3966 = vsel %vm524, %v2940, %v3532
      %v3967 = vsel %vm524, %v2941, %v3534
      %v3968 = vsel %vm524, %v2942, %v3536
      %v3969 = vsel %vm524, %v2943, %v3538
      %v3970 = vsel %vm524, %v2944, %v3540
      %v3971 = vsel %vm524, %v2945, %v3542
      %v3972 = vsel %vm524, %v2946, %v3544
      %v3973 = vsel %vm524, %v2947, %v3546
      %v3974 = vsel %vm524, %v2948, %v3548
      %v3975 = vsel %vm524, %v2949, %v3550
      %v3976 = vsel %vm524, %v2950, %v3552
      %v3977 = vsel %vm524, %v2951, %v3554
      %v3978 = vsel %vm524, %v2952, %v3556
      %v3979 = vsel %vm524, %v2953, %v3558
      %v3980 = vsel %vm524, %v2954, %v3560
      %v3981 = vsel %vm524, %v2955, %v3562
      %v3982 = vsel %vm524, %v2956, %v3564
      %v3983 = vsel %vm524, %v2957, %v3566
      %v3984 = vsel %vm580, %v3952, %v3632
      %v3985 = vsel %vm580, %v3953, %v3634
      %v3986 = vsel %vm580, %v3954, %v3636
      %v3987 = vsel %vm580, %v3955, %v3638
      %v3988 = vsel %vm580, %v3956, %v3640
      %v3989 = vsel %vm580, %v3957, %v3642
      %v3990 = vsel %vm580, %v3958, %v3644
      %v3991 = vsel %vm580, %v3959, %v3646
      %v3992 = vsel %vm580, %v3960, %v3648
      %v3993 = vsel %vm580, %v3961, %v3650
      %v3994 = vsel %vm580, %v3962, %v3652
      %v3995 = vsel %vm580, %v3963, %v3654
      %v3996 = vsel %vm580, %v3964, %v3656
      %v3997 = vsel %vm580, %v3965, %v3658
      %v3998 = vsel %vm580, %v3966, %v3660
      %v3999 = vsel %vm580, %v3967, %v3662
      %v4000 = vsel %vm580, %v3968, %v3664
      %v4001 = vsel %vm580, %v3969, %v3666
      %v4002 = vsel %vm580, %v3970, %v3668
      %v4003 = vsel %vm580, %v3971, %v3670
      %v4004 = vsel %vm580, %v3972, %v3672
      %v4005 = vsel %vm580, %v3973, %v3674
      %v4006 = vsel %vm580, %v3974, %v3676
      %v4007 = vsel %vm580, %v3975, %v3678
      %v4008 = vsel %vm580, %v3976, %v3680
      %v4009 = vsel %vm580, %v3977, %v3682
      %v4010 = vsel %vm580, %v3978, %v3684
      %v4011 = vsel %vm580, %v3979, %v3686
      %v4012 = vsel %vm580, %v3980, %v3688
      %v4013 = vsel %vm580, %v3981, %v3690
      %v4014 = vsel %vm580, %v3982, %v3692
      %v4015 = vsel %vm580, %v3983, %v3694
      %v4016 = vsel %vm3919, %v3984, %v3760
      %v4017 = vsel %vm3919, %v3985, %v3762
      %v4018 = vsel %vm3919, %v3986, %v3764
      %v4019 = vsel %vm3919, %v3987, %v3766
      %v4020 = vsel %vm3919, %v3988, %v3768
      %v4021 = vsel %vm3919, %v3989, %v3770
      %v4022 = vsel %vm3919, %v3990, %v3772
      %v4023 = vsel %vm3919, %v3991, %v3774
      %v4024 = vsel %vm3919, %v3992, %v3776
      %v4025 = vsel %vm3919, %v3993, %v3778
      %v4026 = vsel %vm3919, %v3994, %v3780
      %v4027 = vsel %vm3919, %v3995, %v3782
      %v4028 = vsel %vm3919, %v3996, %v3784
      %v4029 = vsel %vm3919, %v3997, %v3786
      %v4030 = vsel %vm3919, %v3998, %v3788
      %v4031 = vsel %vm3919, %v3999, %v3790
      %v4032 = vsel %vm3919, %v4000, %v3792
      %v4033 = vsel %vm3919, %v4001, %v3794
      %v4034 = vsel %vm3919, %v4002, %v3796
      %v4035 = vsel %vm3919, %v4003, %v3798
      %v4036 = vsel %vm3919, %v4004, %v3800
      %v4037 = vsel %vm3919, %v4005, %v3802
      %v4038 = vsel %vm3919, %v4006, %v3804
      %v4039 = vsel %vm3919, %v4007, %v3806
      %v4040 = vsel %vm3919, %v4008, %v3808
      %v4041 = vsel %vm3919, %v4009, %v3810
      %v4042 = vsel %vm3919, %v4010, %v3812
      %v4043 = vsel %vm3919, %v4011, %v3814
      %v4044 = vsel %vm3919, %v4012, %v3816
      %v4045 = vsel %vm3919, %v4013, %v3818
      %v4046 = vsel %vm3919, %v4014, %v3820
      %v4047 = vsel %vm3919, %v4015, %v3822
      %v4048 = vld [vmem:[%s2] sm:$0xff]
      %v4049 = vld [vmem:[%s2 + $0x8] sm:$0xff]
      %v4050 = vld [vmem:[%s2 + $0x10] sm:$0xff]
      %v4051 = vld [vmem:[%s2 + $0x18] sm:$0xff]
      %v4052 = vld [vmem:[%s2 + $0x20] sm:$0xff]
      %v4053 = vld [vmem:[%s2 + $0x28] sm:$0xff]
      %v4054 = vld [vmem:[%s2 + $0x30] sm:$0xff]
      %v4055 = vld [vmem:[%s2 + $0x38] sm:$0xff]
      %v4056 = vld [vmem:[%s2 + $0x40] sm:$0xff]
      %v4057 = vld [vmem:[%s2 + $0x48] sm:$0xff]
      %v4058 = vld [vmem:[%s2 + $0x50] sm:$0xff]
      %v4059 = vld [vmem:[%s2 + $0x58] sm:$0xff]
      %v4060 = vld [vmem:[%s2 + $0x60] sm:$0xff]
      %v4061 = vld [vmem:[%s2 + $0x68] sm:$0xff]
      %v4062 = vld [vmem:[%s2 + $0x70] sm:$0xff]
      %v4063 = vld [vmem:[%s2 + $0x78] sm:$0xff]
      %v4064 = vld [vmem:[%s2 + $0x80] sm:$0xff]
      %v4065 = vld [vmem:[%s2 + $0x88] sm:$0xff]
      %v4066 = vld [vmem:[%s2 + $0x90] sm:$0xff]
      %v4067 = vld [vmem:[%s2 + $0x98] sm:$0xff]
      %v4068 = vld [vmem:[%s2 + $0xa0] sm:$0xff]
      %v4069 = vld [vmem:[%s2 + $0xa8] sm:$0xff]
      %v4070 = vld [vmem:[%s2 + $0xb0] sm:$0xff]
      %v4071 = vld [vmem:[%s2 + $0xb8] sm:$0xff]
      %v4072 = vld [vmem:[%s2 + $0xc0] sm:$0xff]
      %v4073 = vld [vmem:[%s2 + $0xc8] sm:$0xff]
      %v4074 = vld [vmem:[%s2 + $0xd0] sm:$0xff]
      %v4075 = vld [vmem:[%s2 + $0xd8] sm:$0xff]
      %v4076 = vld [vmem:[%s2 + $0xe0] sm:$0xff]
      %v4077 = vld [vmem:[%s2 + $0xe8] sm:$0xff]
      %v4078 = vld [vmem:[%s2 + $0xf0] sm:$0xff]
      %v4079 = vld [vmem:[%s2 + $0xf8] sm:$0xff]
      %v4080 = vld [vmem:[%s2 + $0x100] sm:$0xff]
      %v4081 = vld [vmem:[%s2 + $0x108] sm:$0xff]
      %v4082 = vld [vmem:[%s2 + $0x110] sm:$0xff]
      %v4083 = vld [vmem:[%s2 + $0x118] sm:$0xff]
      %v4085 = vsel %vm524, %v3055, 0
      %v4088 = vsel %vm524, %v3056, 0
      %v4091 = vsel %vm524, %v3057, 0
      %v4094 = vsel %vm524, %v3058, 0
      %v4097 = vsel %vm524, %v3059, 0
      %v4100 = vsel %vm524, %v3060, 0
      %v4103 = vsel %vm524, %v3061, 0
      %v4106 = vsel %vm524, %v3062, 0
      %v4109 = vsel %vm524, %v3063, 0
      %v4112 = vsel %vm524, %v3064, 0
      %v4115 = vsel %vm524, %v3065, 0
      %v4118 = vsel %vm524, %v3066, 0
      %v4121 = vsel %vm524, %v3067, 0
      %v4124 = vsel %vm524, %v3068, 0
      %v4127 = vsel %vm524, %v3069, 0
      %v4130 = vsel %vm524, %v3070, 0
      %v4133 = vsel %vm524, %v3071, 0
      %v4136 = vsel %vm524, %v3072, 0
      %v4139 = vsel %vm524, %v3073, 0
      %v4142 = vsel %vm524, %v3074, 0
      %v4145 = vsel %vm524, %v3075, 0
      %v4148 = vsel %vm524, %v3076, 0
      %v4151 = vsel %vm524, %v3077, 0
      %v4154 = vsel %vm524, %v3078, 0
      %v4157 = vsel %vm524, %v3079, 0
      %v4160 = vsel %vm524, %v3080, 0
      %v4163 = vsel %vm524, %v3081, 0
      %v4166 = vsel %vm524, %v3082, 0
      %v4169 = vsel %vm524, %v3083, 0
      %v4172 = vsel %vm524, %v3084, 0
      %v4175 = vsel %vm524, %v3085, 0
      %v4178 = vsel %vm524, %v3086, 0
      %4180 = vmatprep.subr.mxu0 0.0
      %4181 = vmatpush1.msra.mxu0 %v4048
      %4182 = vmatprep.subr.mxu0 0.0
      %4183 = vmatpush1.msra.mxu0 %v4049
      %4184 = vmatprep.subr.mxu0 0.0
      %4185 = vmatpush1.msra.mxu0 %v4050
      %4186 = vmatprep.subr.mxu0 0.0
      %4187 = vmatpush1.msra.mxu0 %v4051
      %4188 = vmatprep.subr.mxu0 0.0
      %4189 = vmatpush1.msra.mxu0 %v4052
      %4190 = vmatprep.subr.mxu0 0.0
      %4191 = vmatpush1.msra.mxu0 %v4053
      %4192 = vmatprep.subr.mxu0 0.0
      %4193 = vmatpush1.msra.mxu0 %v4054
      %4194 = vmatprep.subr.mxu0 0.0
      %4195 = vmatpush1.msra.mxu0 %v4055
      %4196 = vmatprep.subr.mxu0 0.0
      %4197 = vmatpush1.msra.mxu0 %v4056
      %4198 = vmatprep.subr.mxu0 0.0
      %4199 = vmatpush1.msra.mxu0 %v4057
      %4200 = vmatprep.subr.mxu0 0.0
      %4201 = vmatpush1.msra.mxu0 %v4058
      %4202 = vmatprep.subr.mxu0 0.0
      %4203 = vmatpush1.msra.mxu0 %v4059
      %4204 = vmatprep.subr.mxu0 0.0
      %4205 = vmatpush1.msra.mxu0 %v4060
      %4206 = vmatprep.subr.mxu0 0.0
      %4207 = vmatpush1.msra.mxu0 %v4061
      %4208 = vmatprep.subr.mxu0 0.0
      %4209 = vmatpush1.msra.mxu0 %v4062
      %4210 = vmatprep.subr.mxu0 0.0
      %4211 = vmatpush1.msra.mxu0 %v4063
      %4212 = vmatprep.subr.mxu0 0.0
      %4213 = vmatpush1.msra.mxu0 %v4064
      %4214 = vmatprep.subr.mxu0 0.0
      %4215 = vmatpush1.msra.mxu0 %v4065
      %4216 = vmatprep.subr.mxu0 0.0
      %4217 = vmatpush1.msra.mxu0 %v4066
      %4218 = vmatprep.subr.mxu0 0.0
      %4219 = vmatpush1.msra.mxu0 %v4067
      %4220 = vmatprep.subr.mxu0 0.0
      %4221 = vmatpush1.msra.mxu0 %v4068
      %4222 = vmatprep.subr.mxu0 0.0
      %4223 = vmatpush1.msra.mxu0 %v4069
      %4224 = vmatprep.subr.mxu0 0.0
      %4225 = vmatpush1.msra.mxu0 %v4070
      %4226 = vmatprep.subr.mxu0 0.0
      %4227 = vmatpush1.msra.mxu0 %v4071
      %4228 = vmatprep.subr.mxu0 0.0
      %4229 = vmatpush1.msra.mxu0 %v4072
      %4230 = vmatprep.subr.mxu0 0.0
      %4231 = vmatpush1.msra.mxu0 %v4073
      %4232 = vmatprep.subr.mxu0 0.0
      %4233 = vmatpush1.msra.mxu0 %v4074
      %4234 = vmatprep.subr.mxu0 0.0
      %4235 = vmatpush1.msra.mxu0 %v4075
      %4236 = vmatprep.subr.mxu0 0.0
      %4237 = vmatpush1.msra.mxu0 %v4076
      %4238 = vmatprep.subr.mxu0 0.0
      %4239 = vmatpush1.msra.mxu0 %v4077
      %4240 = vmatprep.subr.mxu0 0.0
      %4241 = vmatpush1.msra.mxu0 %v4078
      %4242 = vmatprep.subr.mxu0 0.0
      %4243 = vmatpush1.msra.mxu0 %v4079
      %4244 = vmatprep.mubr.f32.mxu0 %v4016
      %4245 = vmatmul.mubr.f32.gmra.mrb[0].mxu0 %v3920
      %v4246 = vpop.f32.mrb[0].mxu0
      %v4247 = vadd.f32 0.0, %v4246
      %v4248 = vpop.f32.mrb[0].mxu0
      %4249 = vmatprep.mubr.f32.mxu0 %v4017
      %4250 = vmatmul.mubr.f32.gmra.mrb[0].mxu0 %v3921
      %v4251 = vpop.f32.mrb[0].mxu0
      %v4252 = vadd.f32 0.0, %v4251
      %v4253 = vpop.f32.mrb[0].mxu0
      %4254 = vmatprep.mubr.f32.mxu0 %v4018
      %4255 = vmatmul.mubr.f32.gmra.mrb[0].mxu0 %v3922
      %v4256 = vpop.f32.mrb[0].mxu0
      %v4257 = vadd.f32 0.0, %v4256
      %v4258 = vpop.f32.mrb[0].mxu0
      %4259 = vmatprep.mubr.f32.mxu0 %v4019
      %4260 = vmatmul.mubr.f32.gmra.mrb[0].mxu0 %v3923
      %v4261 = vpop.f32.mrb[0].mxu0
      %v4262 = vadd.f32 0.0, %v4261
      %v4263 = vpop.f32.mrb[0].mxu0
      %4264 = vmatprep.mubr.f32.mxu0 %v4020
      %4265 = vmatmul.mubr.f32.gmra.mrb[0].mxu0 %v3924
      %v4266 = vpop.f32.mrb[0].mxu0
      %v4267 = vadd.f32 0.0, %v4266
      %v4268 = vpop.f32.mrb[0].mxu0
      %4269 = vmatprep.mubr.f32.mxu0 %v4021
      %4270 = vmatmul.mubr.f32.gmra.mrb[0].mxu0 %v3925
      %v4271 = vpop.f32.mrb[0].mxu0
      %v4272 = vadd.f32 0.0, %v4271
      %v4273 = vpop.f32.mrb[0].mxu0
      %4274 = vmatprep.mubr.f32.mxu0 %v4022
      %4275 = vmatmul.mubr.f32.gmra.mrb[0].mxu0 %v3926
      %v4276 = vpop.f32.mrb[0].mxu0
      %v4277 = vadd.f32 0.0, %v4276
      %v4278 = vpop.f32.mrb[0].mxu0
      %4279 = vmatprep.mubr.f32.mxu0 %v4023
      %4280 = vmatmul.mubr.f32.gmra.mrb[0].mxu0 %v3927
      %v4281 = vpop.f32.mrb[0].mxu0
      %v4282 = vadd.f32 0.0, %v4281
      %v4283 = vpop.f32.mrb[0].mxu0
      %4284 = vmatprep.mubr.f32.mxu0 %v4024
      %4285 = vmatmul.mubr.f32.gmra.mrb[0].mxu0 %v3928
      %v4286 = vpop.f32.mrb[0].mxu0
      %v4287 = vadd.f32 0.0, %v4286
      %v4288 = vpop.f32.mrb[0].mxu0
      %4289 = vmatprep.mubr.f32.mxu0 %v4025
      %4290 = vmatmul.mubr.f32.gmra.mrb[0].mxu0 %v3929
      %v4291 = vpop.f32.mrb[0].mxu0
      %v4292 = vadd.f32 0.0, %v4291
      %v4293 = vpop.f32.mrb[0].mxu0
      %4294 = vmatprep.mubr.f32.mxu0 %v4026
      %4295 = vmatmul.mubr.f32.gmra.mrb[0].mxu0 %v3930
      %v4296 = vpop.f32.mrb[0].mxu0
      %v4297 = vadd.f32 0.0, %v4296
      %v4298 = vpop.f32.mrb[0].mxu0
      %4299 = vmatprep.mubr.f32.mxu0 %v4027
      %4300 = vmatmul.mubr.f32.gmra.mrb[0].mxu0 %v3931
      %v4301 = vpop.f32.mrb[0].mxu0
      %v4302 = vadd.f32 0.0, %v4301
      %v4303 = vpop.f32.mrb[0].mxu0
      %4304 = vmatprep.mubr.f32.mxu0 %v4028
      %4305 = vmatmul.mubr.f32.gmra.mrb[0].mxu0 %v3932
      %v4306 = vpop.f32.mrb[0].mxu0
      %v4307 = vadd.f32 0.0, %v4306
      %v4308 = vpop.f32.mrb[0].mxu0
      %4309 = vmatprep.mubr.f32.mxu0 %v4029
      %4310 = vmatmul.mubr.f32.gmra.mrb[0].mxu0 %v3933
      %v4311 = vpop.f32.mrb[0].mxu0
      %v4312 = vadd.f32 0.0, %v4311
      %v4313 = vpop.f32.mrb[0].mxu0
      %4314 = vmatprep.mubr.f32.mxu0 %v4030
      %4315 = vmatmul.mubr.f32.gmra.mrb[0].mxu0 %v3934
      %v4316 = vpop.f32.mrb[0].mxu0
      %v4317 = vadd.f32 0.0, %v4316
      %v4318 = vpop.f32.mrb[0].mxu0
      %4319 = vmatprep.mubr.f32.mxu0 %v4031
      %4320 = vmatmul.mubr.f32.gmra.mrb[0].mxu0 %v3935
      %v4321 = vpop.f32.mrb[0].mxu0
      %v4322 = vadd.f32 0.0, %v4321
      %v4323 = vpop.f32.mrb[0].mxu0
      %4324 = vmatprep.mubr.f32.mxu0 %v4032
      %4325 = vmatmul.mubr.f32.gmra.mrb[0].mxu0 %v3936
      %v4326 = vpop.f32.mrb[0].mxu0
      %v4327 = vadd.f32 0.0, %v4326
      %v4328 = vpop.f32.mrb[0].mxu0
      %4329 = vmatprep.mubr.f32.mxu0 %v4033
      %4330 = vmatmul.mubr.f32.gmra.mrb[0].mxu0 %v3937
      %v4331 = vpop.f32.mrb[0].mxu0
      %v4332 = vadd.f32 0.0, %v4331
      %v4333 = vpop.f32.mrb[0].mxu0
      %4334 = vmatprep.mubr.f32.mxu0 %v4034
      %4335 = vmatmul.mubr.f32.gmra.mrb[0].mxu0 %v3938
      %v4336 = vpop.f32.mrb[0].mxu0
      %v4337 = vadd.f32 0.0, %v4336
      %v4338 = vpop.f32.mrb[0].mxu0
      %4339 = vmatprep.mubr.f32.mxu0 %v4035
      %4340 = vmatmul.mubr.f32.gmra.mrb[0].mxu0 %v3939
      %v4341 = vpop.f32.mrb[0].mxu0
      %v4342 = vadd.f32 0.0, %v4341
      %v4343 = vpop.f32.mrb[0].mxu0
      %4344 = vmatprep.mubr.f32.mxu0 %v4036
      %4345 = vmatmul.mubr.f32.gmra.mrb[0].mxu0 %v3940
      %v4346 = vpop.f32.mrb[0].mxu0
      %v4347 = vadd.f32 0.0, %v4346
      %v4348 = vpop.f32.mrb[0].mxu0
      %4349 = vmatprep.mubr.f32.mxu0 %v4037
      %4350 = vmatmul.mubr.f32.gmra.mrb[0].mxu0 %v3941
      %v4351 = vpop.f32.mrb[0].mxu0
      %v4352 = vadd.f32 0.0, %v4351
      %v4353 = vpop.f32.mrb[0].mxu0
      %4354 = vmatprep.mubr.f32.mxu0 %v4038
      %4355 = vmatmul.mubr.f32.gmra.mrb[0].mxu0 %v3942
      %v4356 = vpop.f32.mrb[0].mxu0
      %v4357 = vadd.f32 0.0, %v4356
      %v4358 = vpop.f32.mrb[0].mxu0
      %4359 = vmatprep.mubr.f32.mxu0 %v4039
      %4360 = vmatmul.mubr.f32.gmra.mrb[0].mxu0 %v3943
      %v4361 = vpop.f32.mrb[0].mxu0
      %v4362 = vadd.f32 0.0, %v4361
      %v4363 = vpop.f32.mrb[0].mxu0
      %4364 = vmatprep.mubr.f32.mxu0 %v4040
      %4365 = vmatmul.mubr.f32.gmra.mrb[0].mxu0 %v3944
      %v4366 = vpop.f32.mrb[0].mxu0
      %v4367 = vadd.f32 0.0, %v4366
      %v4368 = vpop.f32.mrb[0].mxu0
      %4369 = vmatprep.mubr.f32.mxu0 %v4041
      %4370 = vmatmul.mubr.f32.gmra.mrb[0].mxu0 %v3945
      %v4371 = vpop.f32.mrb[0].mxu0
      %v4372 = vadd.f32 0.0, %v4371
      %v4373 = vpop.f32.mrb[0].mxu0
      %4374 = vmatprep.mubr.f32.mxu0 %v4042
      %4375 = vmatmul.mubr.f32.gmra.mrb[0].mxu0 %v3946
      %v4376 = vpop.f32.mrb[0].mxu0
      %v4377 = vadd.f32 0.0, %v4376
      %v4378 = vpop.f32.mrb[0].mxu0
      %4379 = vmatprep.mubr.f32.mxu0 %v4043
      %4380 = vmatmul.mubr.f32.gmra.mrb[0].mxu0 %v3947
      %v4381 = vpop.f32.mrb[0].mxu0
      %v4382 = vadd.f32 0.0, %v4381
      %v4383 = vpop.f32.mrb[0].mxu0
      %4384 = vmatprep.mubr.f32.mxu0 %v4044
      %4385 = vmatmul.mubr.f32.gmra.mrb[0].mxu0 %v3948
      %v4386 = vpop.f32.mrb[0].mxu0
      %v4387 = vadd.f32 0.0, %v4386
      %v4388 = vpop.f32.mrb[0].mxu0
      %4389 = vmatprep.mubr.f32.mxu0 %v4045
      %4390 = vmatmul.mubr.f32.gmra.mrb[0].mxu0 %v3949
      %v4391 = vpop.f32.mrb[0].mxu0
      %v4392 = vadd.f32 0.0, %v4391
      %v4393 = vpop.f32.mrb[0].mxu0
      %4394 = vmatprep.mubr.f32.mxu0 %v4046
      %4395 = vmatmul.mubr.f32.gmra.mrb[0].mxu0 %v3950
      %v4396 = vpop.f32.mrb[0].mxu0
      %v4397 = vadd.f32 0.0, %v4396
      %v4398 = vpop.f32.mrb[0].mxu0
      %4399 = vmatprep.mubr.f32.mxu0 %v4047
      %4400 = vmatmul.mubr.f32.gmra.mrb[0].mxu0 %v3951
      %v4401 = vpop.f32.mrb[0].mxu0
      %v4402 = vadd.f32 0.0, %v4401
      %v4403 = vpop.f32.mrb[0].mxu0
      %4404 = vdwg.mxu0
      %4405 = vmatprep.subr.mxu0 0.0
      %4406 = vmatpush1.msra.mxu0 %v4080
      %4407 = vmatprep.subr.mxu0 0.0
      %4408 = vmatpush1.msra.mxu0 %v4081
      %4409 = vmatprep.subr.mxu0 0.0
      %4410 = vmatpush1.msra.mxu0 %v4082
      %4411 = vmatprep.subr.mxu0 0.0
      %4412 = vmatpush1.msra.mxu0 %v4083
      %4413 = vmatprep.subr.mxu0 0.0
      %4414 = vmatpush1.msra.mxu0 0.0
      %4415 = vmatprep.subr.mxu0 0.0
      %4416 = vmatpush1.msra.mxu0 0.0
      %4417 = vmatprep.subr.mxu0 0.0
      %4418 = vmatpush1.msra.mxu0 0.0
      %4419 = vmatprep.subr.mxu0 0.0
      %4420 = vmatpush1.msra.mxu0 0.0
      %4421 = vmatprep.subr.mxu0 0.0
      %4422 = vmatpush1.msra.mxu0 0.0
      %4423 = vmatprep.subr.mxu0 0.0
      %4424 = vmatpush1.msra.mxu0 0.0
      %4425 = vmatprep.subr.mxu0 0.0
      %4426 = vmatpush1.msra.mxu0 0.0
      %4427 = vmatprep.subr.mxu0 0.0
      %4428 = vmatpush1.msra.mxu0 0.0
      %4429 = vmatprep.subr.mxu0 0.0
      %4430 = vmatpush1.msra.mxu0 0.0
      %4431 = vmatprep.subr.mxu0 0.0
      %4432 = vmatpush1.msra.mxu0 0.0
      %4433 = vmatprep.subr.mxu0 0.0
      %4434 = vmatpush1.msra.mxu0 0.0
      %4435 = vmatprep.subr.mxu0 0.0
      %4436 = vmatpush1.msra.mxu0 0.0
      %4437 = vmatprep.subr.mxu0 0.0
      %4438 = vmatpush1.msra.mxu0 0.0
      %4439 = vmatprep.subr.mxu0 0.0
      %4440 = vmatpush1.msra.mxu0 0.0
      %4441 = vmatprep.subr.mxu0 0.0
      %4442 = vmatpush1.msra.mxu0 0.0
      %4443 = vmatprep.subr.mxu0 0.0
      %4444 = vmatpush1.msra.mxu0 0.0
      %4445 = vmatprep.subr.mxu0 0.0
      %4446 = vmatpush1.msra.mxu0 0.0
      %4447 = vmatprep.subr.mxu0 0.0
      %4448 = vmatpush1.msra.mxu0 0.0
      %4449 = vmatprep.subr.mxu0 0.0
      %4450 = vmatpush1.msra.mxu0 0.0
      %4451 = vmatprep.subr.mxu0 0.0
      %4452 = vmatpush1.msra.mxu0 0.0
      %4453 = vmatprep.subr.mxu0 0.0
      %4454 = vmatpush1.msra.mxu0 0.0
      %4455 = vmatprep.subr.mxu0 0.0
      %4456 = vmatpush1.msra.mxu0 0.0
      %4457 = vmatprep.subr.mxu0 0.0
      %4458 = vmatpush1.msra.mxu0 0.0
      %4459 = vmatprep.subr.mxu0 0.0
      %4460 = vmatpush1.msra.mxu0 0.0
      %4461 = vmatprep.subr.mxu0 0.0
      %4462 = vmatpush1.msra.mxu0 0.0
      %4463 = vmatprep.subr.mxu0 0.0
      %4464 = vmatpush1.msra.mxu0 0.0
      %4465 = vmatprep.subr.mxu0 0.0
      %4466 = vmatpush1.msra.mxu0 0.0
      %4467 = vmatprep.subr.mxu0 0.0
      %4468 = vmatpush1.msra.mxu0 0.0
      %4469 = vmatprep.mubr.f32.mxu0 0.0
      %4470 = vmatmul.mubr.f32.gmra.mrb[0].mxu0 %v4085
      %v4471 = vpop.f32.mrb[0].mxu0
      %v4472 = vadd.f32 %v4247, %v4471
      %v4473 = vpop.f32.mrb[0].mxu0
      %4474 = vmatprep.mubr.f32.mxu0 0.0
      %4475 = vmatmul.mubr.f32.gmra.mrb[0].mxu0 %v4088
      %v4476 = vpop.f32.mrb[0].mxu0
      %v4477 = vadd.f32 %v4252, %v4476
      %v4478 = vpop.f32.mrb[0].mxu0
      %4479 = vmatprep.mubr.f32.mxu0 0.0
      %4480 = vmatmul.mubr.f32.gmra.mrb[0].mxu0 %v4091
      %v4481 = vpop.f32.mrb[0].mxu0
      %v4482 = vadd.f32 %v4257, %v4481
      %v4483 = vpop.f32.mrb[0].mxu0
      %4484 = vmatprep.mubr.f32.mxu0 0.0
      %4485 = vmatmul.mubr.f32.gmra.mrb[0].mxu0 %v4094
      %v4486 = vpop.f32.mrb[0].mxu0
      %v4487 = vadd.f32 %v4262, %v4486
      %v4488 = vpop.f32.mrb[0].mxu0
      %4489 = vmatprep.mubr.f32.mxu0 0.0
      %4490 = vmatmul.mubr.f32.gmra.mrb[0].mxu0 %v4097
      %v4491 = vpop.f32.mrb[0].mxu0
      %v4492 = vadd.f32 %v4267, %v4491
      %v4493 = vpop.f32.mrb[0].mxu0
      %4494 = vmatprep.mubr.f32.mxu0 0.0
      %4495 = vmatmul.mubr.f32.gmra.mrb[0].mxu0 %v4100
      %v4496 = vpop.f32.mrb[0].mxu0
      %v4497 = vadd.f32 %v4272, %v4496
      %v4498 = vpop.f32.mrb[0].mxu0
      %4499 = vmatprep.mubr.f32.mxu0 0.0
      %4500 = vmatmul.mubr.f32.gmra.mrb[0].mxu0 %v4103
      %v4501 = vpop.f32.mrb[0].mxu0
      %v4502 = vadd.f32 %v4277, %v4501
      %v4503 = vpop.f32.mrb[0].mxu0
      %4504 = vmatprep.mubr.f32.mxu0 0.0
      %4505 = vmatmul.mubr.f32.gmra.mrb[0].mxu0 %v4106
      %v4506 = vpop.f32.mrb[0].mxu0
      %v4507 = vadd.f32 %v4282, %v4506
      %v4508 = vpop.f32.mrb[0].mxu0
      %4509 = vmatprep.mubr.f32.mxu0 0.0
      %4510 = vmatmul.mubr.f32.gmra.mrb[0].mxu0 %v4109
      %v4511 = vpop.f32.mrb[0].mxu0
      %v4512 = vadd.f32 %v4287, %v4511
      %v4513 = vpop.f32.mrb[0].mxu0
      %4514 = vmatprep.mubr.f32.mxu0 0.0
      %4515 = vmatmul.mubr.f32.gmra.mrb[0].mxu0 %v4112
      %v4516 = vpop.f32.mrb[0].mxu0
      %v4517 = vadd.f32 %v4292, %v4516
      %v4518 = vpop.f32.mrb[0].mxu0
      %4519 = vmatprep.mubr.f32.mxu0 0.0
      %4520 = vmatmul.mubr.f32.gmra.mrb[0].mxu0 %v4115
      %v4521 = vpop.f32.mrb[0].mxu0
      %v4522 = vadd.f32 %v4297, %v4521
      %v4523 = vpop.f32.mrb[0].mxu0
      %4524 = vmatprep.mubr.f32.mxu0 0.0
      %4525 = vmatmul.mubr.f32.gmra.mrb[0].mxu0 %v4118
      %v4526 = vpop.f32.mrb[0].mxu0
      %v4527 = vadd.f32 %v4302, %v4526
      %v4528 = vpop.f32.mrb[0].mxu0
      %4529 = vmatprep.mubr.f32.mxu0 0.0
      %4530 = vmatmul.mubr.f32.gmra.mrb[0].mxu0 %v4121
      %v4531 = vpop.f32.mrb[0].mxu0
      %v4532 = vadd.f32 %v4307, %v4531
      %v4533 = vpop.f32.mrb[0].mxu0
      %4534 = vmatprep.mubr.f32.mxu0 0.0
      %4535 = vmatmul.mubr.f32.gmra.mrb[0].mxu0 %v4124
      %v4536 = vpop.f32.mrb[0].mxu0
      %v4537 = vadd.f32 %v4312, %v4536
      %v4538 = vpop.f32.mrb[0].mxu0
      %4539 = vmatprep.mubr.f32.mxu0 0.0
      %4540 = vmatmul.mubr.f32.gmra.mrb[0].mxu0 %v4127
      %v4541 = vpop.f32.mrb[0].mxu0
      %v4542 = vadd.f32 %v4317, %v4541
      %v4543 = vpop.f32.mrb[0].mxu0
      %4544 = vmatprep.mubr.f32.mxu0 0.0
      %4545 = vmatmul.mubr.f32.gmra.mrb[0].mxu0 %v4130
      %v4546 = vpop.f32.mrb[0].mxu0
      %v4547 = vadd.f32 %v4322, %v4546
      %v4548 = vpop.f32.mrb[0].mxu0
      %4549 = vmatprep.mubr.f32.mxu0 0.0
      %4550 = vmatmul.mubr.f32.gmra.mrb[0].mxu0 %v4133
      %v4551 = vpop.f32.mrb[0].mxu0
      %v4552 = vadd.f32 %v4327, %v4551
      %v4553 = vpop.f32.mrb[0].mxu0
      %4554 = vmatprep.mubr.f32.mxu0 0.0
      %4555 = vmatmul.mubr.f32.gmra.mrb[0].mxu0 %v4136
      %v4556 = vpop.f32.mrb[0].mxu0
      %v4557 = vadd.f32 %v4332, %v4556
      %v4558 = vpop.f32.mrb[0].mxu0
      %4559 = vmatprep.mubr.f32.mxu0 0.0
      %4560 = vmatmul.mubr.f32.gmra.mrb[0].mxu0 %v4139
      %v4561 = vpop.f32.mrb[0].mxu0
      %v4562 = vadd.f32 %v4337, %v4561
      %v4563 = vpop.f32.mrb[0].mxu0
      %4564 = vmatprep.mubr.f32.mxu0 0.0
      %4565 = vmatmul.mubr.f32.gmra.mrb[0].mxu0 %v4142
      %v4566 = vpop.f32.mrb[0].mxu0
      %v4567 = vadd.f32 %v4342, %v4566
      %v4568 = vpop.f32.mrb[0].mxu0
      %4569 = vmatprep.mubr.f32.mxu0 0.0
      %4570 = vmatmul.mubr.f32.gmra.mrb[0].mxu0 %v4145
      %v4571 = vpop.f32.mrb[0].mxu0
      %v4572 = vadd.f32 %v4347, %v4571
      %v4573 = vpop.f32.mrb[0].mxu0
      %4574 = vmatprep.mubr.f32.mxu0 0.0
      %4575 = vmatmul.mubr.f32.gmra.mrb[0].mxu0 %v4148
      %v4576 = vpop.f32.mrb[0].mxu0
      %v4577 = vadd.f32 %v4352, %v4576
      %v4578 = vpop.f32.mrb[0].mxu0
      %4579 = vmatprep.mubr.f32.mxu0 0.0
      %4580 = vmatmul.mubr.f32.gmra.mrb[0].mxu0 %v4151
      %v4581 = vpop.f32.mrb[0].mxu0
      %v4582 = vadd.f32 %v4357, %v4581
      %v4583 = vpop.f32.mrb[0].mxu0
      %4584 = vmatprep.mubr.f32.mxu0 0.0
      %4585 = vmatmul.mubr.f32.gmra.mrb[0].mxu0 %v4154
      %v4586 = vpop.f32.mrb[0].mxu0
      %v4587 = vadd.f32 %v4362, %v4586
      %v4588 = vpop.f32.mrb[0].mxu0
      %4589 = vmatprep.mubr.f32.mxu0 0.0
      %4590 = vmatmul.mubr.f32.gmra.mrb[0].mxu0 %v4157
      %v4591 = vpop.f32.mrb[0].mxu0
      %v4592 = vadd.f32 %v4367, %v4591
      %v4593 = vpop.f32.mrb[0].mxu0
      %4594 = vmatprep.mubr.f32.mxu0 0.0
      %4595 = vmatmul.mubr.f32.gmra.mrb[0].mxu0 %v4160
      %v4596 = vpop.f32.mrb[0].mxu0
      %v4597 = vadd.f32 %v4372, %v4596
      %v4598 = vpop.f32.mrb[0].mxu0
      %4599 = vmatprep.mubr.f32.mxu0 0.0
      %4600 = vmatmul.mubr.f32.gmra.mrb[0].mxu0 %v4163
      %v4601 = vpop.f32.mrb[0].mxu0
      %v4602 = vadd.f32 %v4377, %v4601
      %v4603 = vpop.f32.mrb[0].mxu0
      %4604 = vmatprep.mubr.f32.mxu0 0.0
      %4605 = vmatmul.mubr.f32.gmra.mrb[0].mxu0 %v4166
      %v4606 = vpop.f32.mrb[0].mxu0
      %v4607 = vadd.f32 %v4382, %v4606
      %v4608 = vpop.f32.mrb[0].mxu0
      %4609 = vmatprep.mubr.f32.mxu0 0.0
      %4610 = vmatmul.mubr.f32.gmra.mrb[0].mxu0 %v4169
      %v4611 = vpop.f32.mrb[0].mxu0
      %v4612 = vadd.f32 %v4387, %v4611
      %v4613 = vpop.f32.mrb[0].mxu0
      %4614 = vmatprep.mubr.f32.mxu0 0.0
      %4615 = vmatmul.mubr.f32.gmra.mrb[0].mxu0 %v4172
      %v4616 = vpop.f32.mrb[0].mxu0
      %v4617 = vadd.f32 %v4392, %v4616
      %v4618 = vpop.f32.mrb[0].mxu0
      %4619 = vmatprep.mubr.f32.mxu0 0.0
      %4620 = vmatmul.mubr.f32.gmra.mrb[0].mxu0 %v4175
      %v4621 = vpop.f32.mrb[0].mxu0
      %v4622 = vadd.f32 %v4397, %v4621
      %v4623 = vpop.f32.mrb[0].mxu0
      %4624 = vmatprep.mubr.f32.mxu0 0.0
      %4625 = vmatmul.mubr.f32.gmra.mrb[0].mxu0 %v4178
      %v4626 = vpop.f32.mrb[0].mxu0
      %v4627 = vadd.f32 %v4402, %v4626
      %v4628 = vpop.f32.mrb[0].mxu0
      %4629 = vdwg.mxu0
      %v4630 = vld [vmem:[%s7] sm:$0x1]
      %v4632 = vlaneseq
      %v4633 = vshrl.u32 %v4632, 7
      %v4634 = vsub.s32 0, %v4633
      %v4635 = vrot.slane %v4630, %v4634
      %v4637 = vmul.f32 %v4472, %v4635
      %v4638 = vmul.f32 %v4477, %v4635
      %v4639 = vmul.f32 %v4482, %v4635
      %v4640 = vmul.f32 %v4487, %v4635
      %v4641 = vmul.f32 %v4492, %v4635
      %v4642 = vmul.f32 %v4497, %v4635
      %v4643 = vmul.f32 %v4502, %v4635
      %v4644 = vmul.f32 %v4507, %v4635
      %v4645 = vmul.f32 %v4512, %v4635
      %v4646 = vmul.f32 %v4517, %v4635
      %v4647 = vmul.f32 %v4522, %v4635
      %v4648 = vmul.f32 %v4527, %v4635
      %v4649 = vmul.f32 %v4532, %v4635
      %v4650 = vmul.f32 %v4537, %v4635
      %v4651 = vmul.f32 %v4542, %v4635
      %v4652 = vmul.f32 %v4547, %v4635
      %v4653 = vmul.f32 %v4552, %v4635
      %v4654 = vmul.f32 %v4557, %v4635
      %v4655 = vmul.f32 %v4562, %v4635
      %v4656 = vmul.f32 %v4567, %v4635
      %v4657 = vmul.f32 %v4572, %v4635
      %v4658 = vmul.f32 %v4577, %v4635
      %v4659 = vmul.f32 %v4582, %v4635
      %v4660 = vmul.f32 %v4587, %v4635
      %v4661 = vmul.f32 %v4592, %v4635
      %v4662 = vmul.f32 %v4597, %v4635
      %v4663 = vmul.f32 %v4602, %v4635
      %v4664 = vmul.f32 %v4607, %v4635
      %v4665 = vmul.f32 %v4612, %v4635
      %v4666 = vmul.f32 %v4617, %v4635
      %v4667 = vmul.f32 %v4622, %v4635
      %v4668 = vmul.f32 %v4627, %v4635
      %v4669 = vld [vmem:[%s8] sm:$0x1]
      %v4671 = vlaneseq
      %v4672 = vshrl.u32 %v4671, 7
      %v4673 = vsub.s32 0, %v4672
      %v4674 = vrot.slane %v4669, %v4673
      %v4676 = vadd.f32 %v4637, %v4674
      %v4677 = vadd.f32 %v4638, %v4674
      %v4678 = vadd.f32 %v4639, %v4674
      %v4679 = vadd.f32 %v4640, %v4674
      %v4680 = vadd.f32 %v4641, %v4674
      %v4681 = vadd.f32 %v4642, %v4674
      %v4682 = vadd.f32 %v4643, %v4674
      %v4683 = vadd.f32 %v4644, %v4674
      %v4684 = vadd.f32 %v4645, %v4674
      %v4685 = vadd.f32 %v4646, %v4674
      %v4686 = vadd.f32 %v4647, %v4674
      %v4687 = vadd.f32 %v4648, %v4674
      %v4688 = vadd.f32 %v4649, %v4674
      %v4689 = vadd.f32 %v4650, %v4674
      %v4690 = vadd.f32 %v4651, %v4674
      %v4691 = vadd.f32 %v4652, %v4674
      %v4692 = vadd.f32 %v4653, %v4674
      %v4693 = vadd.f32 %v4654, %v4674
      %v4694 = vadd.f32 %v4655, %v4674
      %v4695 = vadd.f32 %v4656, %v4674
      %v4696 = vadd.f32 %v4657, %v4674
      %v4697 = vadd.f32 %v4658, %v4674
      %v4698 = vadd.f32 %v4659, %v4674
      %v4699 = vadd.f32 %v4660, %v4674
      %v4700 = vadd.f32 %v4661, %v4674
      %v4701 = vadd.f32 %v4662, %v4674
      %v4702 = vadd.f32 %v4663, %v4674
      %v4703 = vadd.f32 %v4664, %v4674
      %v4704 = vadd.f32 %v4665, %v4674
      %v4705 = vadd.f32 %v4666, %v4674
      %v4706 = vadd.f32 %v4667, %v4674
      %v4707 = vadd.f32 %v4668, %v4674
      %vm4708 = vcmp.ge.f32.partialorder %v4676, 0.0
      %vm4709 = vcmp.ge.f32.partialorder %v4677, 0.0
      %vm4710 = vcmp.ge.f32.partialorder %v4678, 0.0
      %vm4711 = vcmp.ge.f32.partialorder %v4679, 0.0
      %vm4712 = vcmp.ge.f32.partialorder %v4680, 0.0
      %vm4713 = vcmp.ge.f32.partialorder %v4681, 0.0
      %vm4714 = vcmp.ge.f32.partialorder %v4682, 0.0
      %vm4715 = vcmp.ge.f32.partialorder %v4683, 0.0
      %vm4716 = vcmp.ge.f32.partialorder %v4684, 0.0
      %vm4717 = vcmp.ge.f32.partialorder %v4685, 0.0
      %vm4718 = vcmp.ge.f32.partialorder %v4686, 0.0
      %vm4719 = vcmp.ge.f32.partialorder %v4687, 0.0
      %vm4720 = vcmp.ge.f32.partialorder %v4688, 0.0
      %vm4721 = vcmp.ge.f32.partialorder %v4689, 0.0
      %vm4722 = vcmp.ge.f32.partialorder %v4690, 0.0
      %vm4723 = vcmp.ge.f32.partialorder %v4691, 0.0
      %vm4724 = vcmp.ge.f32.partialorder %v4692, 0.0
      %vm4725 = vcmp.ge.f32.partialorder %v4693, 0.0
      %vm4726 = vcmp.ge.f32.partialorder %v4694, 0.0
      %vm4727 = vcmp.ge.f32.partialorder %v4695, 0.0
      %vm4728 = vcmp.ge.f32.partialorder %v4696, 0.0
      %vm4729 = vcmp.ge.f32.partialorder %v4697, 0.0
      %vm4730 = vcmp.ge.f32.partialorder %v4698, 0.0
      %vm4731 = vcmp.ge.f32.partialorder %v4699, 0.0
      %vm4732 = vcmp.ge.f32.partialorder %v4700, 0.0
      %vm4733 = vcmp.ge.f32.partialorder %v4701, 0.0
      %vm4734 = vcmp.ge.f32.partialorder %v4702, 0.0
      %vm4735 = vcmp.ge.f32.partialorder %v4703, 0.0
      %vm4736 = vcmp.ge.f32.partialorder %v4704, 0.0
      %vm4737 = vcmp.ge.f32.partialorder %v4705, 0.0
      %vm4738 = vcmp.ge.f32.partialorder %v4706, 0.0
      %vm4739 = vcmp.ge.f32.partialorder %v4707, 0.0
      %v4740 = vmul.f32 %v4676, 0.01
      %v4741 = vmul.f32 %v4677, 0.01
      %v4742 = vmul.f32 %v4678, 0.01
      %v4743 = vmul.f32 %v4679, 0.01
      %v4744 = vmul.f32 %v4680, 0.01
      %v4745 = vmul.f32 %v4681, 0.01
      %v4746 = vmul.f32 %v4682, 0.01
      %v4747 = vmul.f32 %v4683, 0.01
      %v4748 = vmul.f32 %v4684, 0.01
      %v4749 = vmul.f32 %v4685, 0.01
      %v4750 = vmul.f32 %v4686, 0.01
      %v4751 = vmul.f32 %v4687, 0.01
      %v4752 = vmul.f32 %v4688, 0.01
      %v4753 = vmul.f32 %v4689, 0.01
      %v4754 = vmul.f32 %v4690, 0.01
      %v4755 = vmul.f32 %v4691, 0.01
      %v4756 = vmul.f32 %v4692, 0.01
      %v4757 = vmul.f32 %v4693, 0.01
      %v4758 = vmul.f32 %v4694, 0.01
      %v4759 = vmul.f32 %v4695, 0.01
      %v4760 = vmul.f32 %v4696, 0.01
      %v4761 = vmul.f32 %v4697, 0.01
      %v4762 = vmul.f32 %v4698, 0.01
      %v4763 = vmul.f32 %v4699, 0.01
      %v4764 = vmul.f32 %v4700, 0.01
      %v4765 = vmul.f32 %v4701, 0.01
      %v4766 = vmul.f32 %v4702, 0.01
      %v4767 = vmul.f32 %v4703, 0.01
      %v4768 = vmul.f32 %v4704, 0.01
      %v4769 = vmul.f32 %v4705, 0.01
      %v4770 = vmul.f32 %v4706, 0.01
      %v4771 = vmul.f32 %v4707, 0.01
      %v4772 = vsel %vm4708, %v4676, %v4740
      %v4773 = vsel %vm4709, %v4677, %v4741
      %v4774 = vsel %vm4710, %v4678, %v4742
      %v4775 = vsel %vm4711, %v4679, %v4743
      %v4776 = vsel %vm4712, %v4680, %v4744
      %v4777 = vsel %vm4713, %v4681, %v4745
      %v4778 = vsel %vm4714, %v4682, %v4746
      %v4779 = vsel %vm4715, %v4683, %v4747
      %v4780 = vsel %vm4716, %v4684, %v4748
      %v4781 = vsel %vm4717, %v4685, %v4749
      %v4782 = vsel %vm4718, %v4686, %v4750
      %v4783 = vsel %vm4719, %v4687, %v4751
      %v4784 = vsel %vm4720, %v4688, %v4752
      %v4785 = vsel %vm4721, %v4689, %v4753
      %v4786 = vsel %vm4722, %v4690, %v4754
      %v4787 = vsel %vm4723, %v4691, %v4755
      %v4788 = vsel %vm4724, %v4692, %v4756
      %v4789 = vsel %vm4725, %v4693, %v4757
      %v4790 = vsel %vm4726, %v4694, %v4758
      %v4791 = vsel %vm4727, %v4695, %v4759
      %v4792 = vsel %vm4728, %v4696, %v4760
      %v4793 = vsel %vm4729, %v4697, %v4761
      %v4794 = vsel %vm4730, %v4698, %v4762
      %v4795 = vsel %vm4731, %v4699, %v4763
      %v4796 = vsel %vm4732, %v4700, %v4764
      %v4797 = vsel %vm4733, %v4701, %v4765
      %v4798 = vsel %vm4734, %v4702, %v4766
      %v4799 = vsel %vm4735, %v4703, %v4767
      %v4800 = vsel %vm4736, %v4704, %v4768
      %v4801 = vsel %vm4737, %v4705, %v4769
      %v4802 = vsel %vm4738, %v4706, %v4770
      %v4803 = vsel %vm4739, %v4707, %v4771
      %v4804 = vld [vmem:[%s13] sm:$0xff]
      %v4805 = vld [vmem:[%s13 + $0x8] sm:$0xff]
      %v4806 = vld [vmem:[%s13 + $0x10] sm:$0xff]
      %v4807 = vld [vmem:[%s13 + $0x18] sm:$0xff]
      %v4808 = vld [vmem:[%s13 + $0x20] sm:$0xff]
      %v4809 = vld [vmem:[%s13 + $0x28] sm:$0xff]
      %v4810 = vld [vmem:[%s13 + $0x30] sm:$0xff]
      %v4811 = vld [vmem:[%s13 + $0x38] sm:$0xff]
      %v4812 = vld [vmem:[%s13 + $0x40] sm:$0xff]
      %v4813 = vld [vmem:[%s13 + $0x48] sm:$0xff]
      %v4814 = vld [vmem:[%s13 + $0x50] sm:$0xff]
      %v4815 = vld [vmem:[%s13 + $0x58] sm:$0xff]
      %v4816 = vld [vmem:[%s13 + $0x60] sm:$0xff]
      %v4817 = vld [vmem:[%s13 + $0x68] sm:$0xff]
      %v4818 = vld [vmem:[%s13 + $0x70] sm:$0xff]
      %v4819 = vld [vmem:[%s13 + $0x78] sm:$0xff]
      %4820 = vmatprep.subr.mxu0 0.0
      %4821 = vmatpush1.msra.mxu0 %v4772
      %4822 = vmatprep.subr.mxu0 0.0
      %4823 = vmatpush1.msra.mxu0 %v4773
      %4824 = vmatprep.subr.mxu0 0.0
      %4825 = vmatpush1.msra.mxu0 %v4774
      %4826 = vmatprep.subr.mxu0 0.0
      %4827 = vmatpush1.msra.mxu0 %v4775
      %4828 = vmatprep.subr.mxu0 0.0
      %4829 = vmatpush1.msra.mxu0 %v4776
      %4830 = vmatprep.subr.mxu0 0.0
      %4831 = vmatpush1.msra.mxu0 %v4777
      %4832 = vmatprep.subr.mxu0 0.0
      %4833 = vmatpush1.msra.mxu0 %v4778
      %4834 = vmatprep.subr.mxu0 0.0
      %4835 = vmatpush1.msra.mxu0 %v4779
      %4836 = vmatprep.subr.mxu0 0.0
      %4837 = vmatpush1.msra.mxu0 %v4780
      %4838 = vmatprep.subr.mxu0 0.0
      %4839 = vmatpush1.msra.mxu0 %v4781
      %4840 = vmatprep.subr.mxu0 0.0
      %4841 = vmatpush1.msra.mxu0 %v4782
      %4842 = vmatprep.subr.mxu0 0.0
      %4843 = vmatpush1.msra.mxu0 %v4783
      %4844 = vmatprep.subr.mxu0 0.0
      %4845 = vmatpush1.msra.mxu0 %v4784
      %4846 = vmatprep.subr.mxu0 0.0
      %4847 = vmatpush1.msra.mxu0 %v4785
      %4848 = vmatprep.subr.mxu0 0.0
      %4849 = vmatpush1.msra.mxu0 %v4786
      %4850 = vmatprep.subr.mxu0 0.0
      %4851 = vmatpush1.msra.mxu0 %v4787
      %4852 = vmatprep.subr.mxu0 0.0
      %4853 = vmatpush1.msra.mxu0 %v4788
      %4854 = vmatprep.subr.mxu0 0.0
      %4855 = vmatpush1.msra.mxu0 %v4789
      %4856 = vmatprep.subr.mxu0 0.0
      %4857 = vmatpush1.msra.mxu0 %v4790
      %4858 = vmatprep.subr.mxu0 0.0
      %4859 = vmatpush1.msra.mxu0 %v4791
      %4860 = vmatprep.subr.mxu0 0.0
      %4861 = vmatpush1.msra.mxu0 %v4792
      %4862 = vmatprep.subr.mxu0 0.0
      %4863 = vmatpush1.msra.mxu0 %v4793
      %4864 = vmatprep.subr.mxu0 0.0
      %4865 = vmatpush1.msra.mxu0 %v4794
      %4866 = vmatprep.subr.mxu0 0.0
      %4867 = vmatpush1.msra.mxu0 %v4795
      %4868 = vmatprep.subr.mxu0 0.0
      %4869 = vmatpush1.msra.mxu0 %v4796
      %4870 = vmatprep.subr.mxu0 0.0
      %4871 = vmatpush1.msra.mxu0 %v4797
      %4872 = vmatprep.subr.mxu0 0.0
      %4873 = vmatpush1.msra.mxu0 %v4798
      %4874 = vmatprep.subr.mxu0 0.0
      %4875 = vmatpush1.msra.mxu0 %v4799
      %4876 = vmatprep.subr.mxu0 0.0
      %4877 = vmatpush1.msra.mxu0 %v4800
      %4878 = vmatprep.subr.mxu0 0.0
      %4879 = vmatpush1.msra.mxu0 %v4801
      %4880 = vmatprep.subr.mxu0 0.0
      %4881 = vmatpush1.msra.mxu0 %v4802
      %4882 = vmatprep.subr.mxu0 0.0
      %4883 = vmatpush1.msra.mxu0 %v4803
      %4884 = vmatprep.mubr.f32.mxu0 %v4805
      %4885 = vmatmul.mubr.f32.gmra.mrb[0].mxu0 %v4804
      %v4886 = vpop.f32.mrb[0].mxu0
      %v4887 = vadd.f32 0.0, %v4886
      %v4888 = vpop.f32.mrb[0].mxu0
      %4889 = vmatprep.mubr.f32.mxu0 %v4807
      %4890 = vmatmul.mubr.f32.gmra.mrb[0].mxu0 %v4806
      %v4891 = vpop.f32.mrb[0].mxu0
      %v4892 = vadd.f32 0.0, %v4891
      %v4893 = vpop.f32.mrb[0].mxu0
      %4894 = vmatprep.mubr.f32.mxu0 %v4809
      %4895 = vmatmul.mubr.f32.gmra.mrb[0].mxu0 %v4808
      %v4896 = vpop.f32.mrb[0].mxu0
      %v4897 = vadd.f32 0.0, %v4896
      %v4898 = vpop.f32.mrb[0].mxu0
      %4899 = vmatprep.mubr.f32.mxu0 %v4811
      %4900 = vmatmul.mubr.f32.gmra.mrb[0].mxu0 %v4810
      %v4901 = vpop.f32.mrb[0].mxu0
      %v4902 = vadd.f32 0.0, %v4901
      %v4903 = vpop.f32.mrb[0].mxu0
      %4904 = vmatprep.mubr.f32.mxu0 %v4813
      %4905 = vmatmul.mubr.f32.gmra.mrb[0].mxu0 %v4812
      %v4906 = vpop.f32.mrb[0].mxu0
      %v4907 = vadd.f32 0.0, %v4906
      %v4908 = vpop.f32.mrb[0].mxu0
      %4909 = vmatprep.mubr.f32.mxu0 %v4815
      %4910 = vmatmul.mubr.f32.gmra.mrb[0].mxu0 %v4814
      %v4911 = vpop.f32.mrb[0].mxu0
      %v4912 = vadd.f32 0.0, %v4911
      %v4913 = vpop.f32.mrb[0].mxu0
      %4914 = vmatprep.mubr.f32.mxu0 %v4817
      %4915 = vmatmul.mubr.f32.gmra.mrb[0].mxu0 %v4816
      %v4916 = vpop.f32.mrb[0].mxu0
      %v4917 = vadd.f32 0.0, %v4916
      %v4918 = vpop.f32.mrb[0].mxu0
      %4919 = vmatprep.mubr.f32.mxu0 %v4819
      %4920 = vmatmul.mubr.f32.gmra.mrb[0].mxu0 %v4818
      %v4921 = vpop.f32.mrb[0].mxu0
      %v4922 = vadd.f32 0.0, %v4921
      %v4923 = vpop.f32.mrb[0].mxu0
      %4924 = vdwg.mxu0
      %s4925 = scalar_lea.vmem [#allocation4], 16
      %4926 = vst.msk [vmem:[%s4925 + $0x1] sm:$0xff] %vm580, %v4887
      %4927 = vst.msk [vmem:[%s4925 + $0x11] sm:$0xff] %vm580, %v4892
      %4928 = vst.msk [vmem:[%s4925 + $0x21] sm:$0xff] %vm580, %v4897
      %4929 = vst.msk [vmem:[%s4925 + $0x31] sm:$0xff] %vm580, %v4902
      %4930 = vst.msk [vmem:[%s4925 + $0x41] sm:$0xff] %vm580, %v4907
      %4931 = vst.msk [vmem:[%s4925 + $0x51] sm:$0xff] %vm580, %v4912
      %4932 = vst.msk [vmem:[%s4925 + $0x61] sm:$0xff] %vm580, %v4917
      %4933 = vst.msk [vmem:[%s4925 + $0x71] sm:$0xff] %vm580, %v4922
      %v4934 = vld [vmem:[#allocation4] sm:$0xff]
      %v4935 = vld [vmem:[#allocation4 + $0x10] sm:$0xff]
      %v4936 = vld [vmem:[#allocation4 + $0x20] sm:$0xff]
      %v4937 = vld [vmem:[#allocation4 + $0x30] sm:$0xff]
      %v4938 = vld [vmem:[#allocation4 + $0x40] sm:$0xff]
      %v4939 = vld [vmem:[#allocation4 + $0x50] sm:$0xff]
      %v4940 = vld [vmem:[#allocation4 + $0x60] sm:$0xff]
      %v4941 = vld [vmem:[#allocation4 + $0x70] sm:$0xff]
      %v4942 = vld [vmem:[#allocation4 + $0x1] sm:$0xff]
      %v4943 = vld [vmem:[#allocation4 + $0x11] sm:$0xff]
      %v4944 = vld [vmem:[#allocation4 + $0x21] sm:$0xff]
      %v4945 = vld [vmem:[#allocation4 + $0x31] sm:$0xff]
      %v4946 = vld [vmem:[#allocation4 + $0x41] sm:$0xff]
      %v4947 = vld [vmem:[#allocation4 + $0x51] sm:$0xff]
      %v4948 = vld [vmem:[#allocation4 + $0x61] sm:$0xff]
      %v4949 = vld [vmem:[#allocation4 + $0x71] sm:$0xff]
      %v4950 = vld [vmem:[#allocation4 + $0x2] sm:$0xff]
      %v4951 = vld [vmem:[#allocation4 + $0x12] sm:$0xff]
      %v4952 = vld [vmem:[#allocation4 + $0x22] sm:$0xff]
      %v4953 = vld [vmem:[#allocation4 + $0x32] sm:$0xff]
      %v4954 = vld [vmem:[#allocation4 + $0x42] sm:$0xff]
      %v4955 = vld [vmem:[#allocation4 + $0x52] sm:$0xff]
      %v4956 = vld [vmem:[#allocation4 + $0x62] sm:$0xff]
      %v4957 = vld [vmem:[#allocation4 + $0x72] sm:$0xff]
      %v4958 = vld [vmem:[%s4925] sm:$0xff]
      %v4959 = vld [vmem:[%s4925 + $0x10] sm:$0xff]
      %v4960 = vld [vmem:[%s4925 + $0x20] sm:$0xff]
      %v4961 = vld [vmem:[%s4925 + $0x30] sm:$0xff]
      %v4962 = vld [vmem:[%s4925 + $0x40] sm:$0xff]
      %v4963 = vld [vmem:[%s4925 + $0x50] sm:$0xff]
      %v4964 = vld [vmem:[%s4925 + $0x60] sm:$0xff]
      %v4965 = vld [vmem:[%s4925 + $0x70] sm:$0xff]
      %v4966 = vld [vmem:[%s4925 + $0x1] sm:$0xff]
      %v4967 = vld [vmem:[%s4925 + $0x11] sm:$0xff]
      %v4968 = vld [vmem:[%s4925 + $0x21] sm:$0xff]
      %v4969 = vld [vmem:[%s4925 + $0x31] sm:$0xff]
      %v4970 = vld [vmem:[%s4925 + $0x41] sm:$0xff]
      %v4971 = vld [vmem:[%s4925 + $0x51] sm:$0xff]
      %v4972 = vld [vmem:[%s4925 + $0x61] sm:$0xff]
      %v4973 = vld [vmem:[%s4925 + $0x71] sm:$0xff]
      %v4974 = vld [vmem:[%s4925 + $0x2] sm:$0xff]
      %v4975 = vld [vmem:[%s4925 + $0x12] sm:$0xff]
      %v4976 = vld [vmem:[%s4925 + $0x22] sm:$0xff]
      %v4977 = vld [vmem:[%s4925 + $0x32] sm:$0xff]
      %v4978 = vld [vmem:[%s4925 + $0x42] sm:$0xff]
      %v4979 = vld [vmem:[%s4925 + $0x52] sm:$0xff]
      %v4980 = vld [vmem:[%s4925 + $0x62] sm:$0xff]
      %v4981 = vld [vmem:[%s4925 + $0x72] sm:$0xff]
      %s4982 = scalar_lea.vmem [#allocation4], 32
      %v4983 = vld [vmem:[%s4982] sm:$0xff]
      %v4984 = vld [vmem:[%s4982 + $0x10] sm:$0xff]
      %v4985 = vld [vmem:[%s4982 + $0x20] sm:$0xff]
      %v4986 = vld [vmem:[%s4982 + $0x30] sm:$0xff]
      %v4987 = vld [vmem:[%s4982 + $0x40] sm:$0xff]
      %v4988 = vld [vmem:[%s4982 + $0x50] sm:$0xff]
      %v4989 = vld [vmem:[%s4982 + $0x60] sm:$0xff]
      %v4990 = vld [vmem:[%s4982 + $0x70] sm:$0xff]
      %v4991 = vld [vmem:[%s4982 + $0x1] sm:$0xff]
      %v4992 = vld [vmem:[%s4982 + $0x11] sm:$0xff]
      %v4993 = vld [vmem:[%s4982 + $0x21] sm:$0xff]
      %v4994 = vld [vmem:[%s4982 + $0x31] sm:$0xff]
      %v4995 = vld [vmem:[%s4982 + $0x41] sm:$0xff]
      %v4996 = vld [vmem:[%s4982 + $0x51] sm:$0xff]
      %v4997 = vld [vmem:[%s4982 + $0x61] sm:$0xff]
      %v4998 = vld [vmem:[%s4982 + $0x71] sm:$0xff]
      %v4999 = vld [vmem:[%s4982 + $0x2] sm:$0xff]
      %v5000 = vld [vmem:[%s4982 + $0x12] sm:$0xff]
      %v5001 = vld [vmem:[%s4982 + $0x22] sm:$0xff]
      %v5002 = vld [vmem:[%s4982 + $0x32] sm:$0xff]
      %v5003 = vld [vmem:[%s4982 + $0x42] sm:$0xff]
      %v5004 = vld [vmem:[%s4982 + $0x52] sm:$0xff]
      %v5005 = vld [vmem:[%s4982 + $0x62] sm:$0xff]
      %v5006 = vld [vmem:[%s4982 + $0x72] sm:$0xff]
      %5015 = vrot.lane.b32.xlu0 %v4942, 64
      %v5016 = vpop.permute.xlu0 %5015
      %5017 = vrot.lane.b32.xlu0 %v4943, 64
      %v5018 = vpop.permute.xlu0 %5017
      %5019 = vrot.lane.b32.xlu0 %v4944, 64
      %v5020 = vpop.permute.xlu0 %5019
      %5021 = vrot.lane.b32.xlu0 %v4945, 64
      %v5022 = vpop.permute.xlu0 %5021
      %5023 = vrot.lane.b32.xlu0 %v4946, 64
      %v5024 = vpop.permute.xlu0 %5023
      %5025 = vrot.lane.b32.xlu0 %v4947, 64
      %v5026 = vpop.permute.xlu0 %5025
      %5027 = vrot.lane.b32.xlu0 %v4948, 64
      %v5028 = vpop.permute.xlu0 %5027
      %5029 = vrot.lane.b32.xlu0 %v4949, 64
      %v5030 = vpop.permute.xlu0 %5029
      %5047 = vrot.lane.b32.xlu0 %v4958, 64
      %v5048 = vpop.permute.xlu0 %5047
      %5049 = vrot.lane.b32.xlu0 %v4959, 64
      %v5050 = vpop.permute.xlu0 %5049
      %5051 = vrot.lane.b32.xlu0 %v4960, 64
      %v5052 = vpop.permute.xlu0 %5051
      %5053 = vrot.lane.b32.xlu0 %v4961, 64
      %v5054 = vpop.permute.xlu0 %5053
      %5055 = vrot.lane.b32.xlu0 %v4962, 64
      %v5056 = vpop.permute.xlu0 %5055
      %5057 = vrot.lane.b32.xlu0 %v4963, 64
      %v5058 = vpop.permute.xlu0 %5057
      %5059 = vrot.lane.b32.xlu0 %v4964, 64
      %v5060 = vpop.permute.xlu0 %5059
      %5061 = vrot.lane.b32.xlu0 %v4965, 64
      %v5062 = vpop.permute.xlu0 %5061
      %5079 = vrot.lane.b32.xlu0 %v4974, 64
      %v5080 = vpop.permute.xlu0 %5079
      %5081 = vrot.lane.b32.xlu0 %v4975, 64
      %v5082 = vpop.permute.xlu0 %5081
      %5083 = vrot.lane.b32.xlu0 %v4976, 64
      %v5084 = vpop.permute.xlu0 %5083
      %5085 = vrot.lane.b32.xlu0 %v4977, 64
      %v5086 = vpop.permute.xlu0 %5085
      %5087 = vrot.lane.b32.xlu0 %v4978, 64
      %v5088 = vpop.permute.xlu0 %5087
      %5089 = vrot.lane.b32.xlu0 %v4979, 64
      %v5090 = vpop.permute.xlu0 %5089
      %5091 = vrot.lane.b32.xlu0 %v4980, 64
      %v5092 = vpop.permute.xlu0 %5091
      %5093 = vrot.lane.b32.xlu0 %v4981, 64
      %v5094 = vpop.permute.xlu0 %5093
      %5111 = vrot.lane.b32.xlu0 %v4991, 64
      %v5112 = vpop.permute.xlu0 %5111
      %5113 = vrot.lane.b32.xlu0 %v4992, 64
      %v5114 = vpop.permute.xlu0 %5113
      %5115 = vrot.lane.b32.xlu0 %v4993, 64
      %v5116 = vpop.permute.xlu0 %5115
      %5117 = vrot.lane.b32.xlu0 %v4994, 64
      %v5118 = vpop.permute.xlu0 %5117
      %5119 = vrot.lane.b32.xlu0 %v4995, 64
      %v5120 = vpop.permute.xlu0 %5119
      %5121 = vrot.lane.b32.xlu0 %v4996, 64
      %v5122 = vpop.permute.xlu0 %5121
      %5123 = vrot.lane.b32.xlu0 %v4997, 64
      %v5124 = vpop.permute.xlu0 %5123
      %5125 = vrot.lane.b32.xlu0 %v4998, 64
      %v5126 = vpop.permute.xlu0 %5125
      %v5135 = vsel %vm580, %v4934, %v5016
      %v5136 = vsel %vm580, %v4935, %v5018
      %v5137 = vsel %vm580, %v4936, %v5020
      %v5138 = vsel %vm580, %v4937, %v5022
      %v5139 = vsel %vm580, %v4938, %v5024
      %v5140 = vsel %vm580, %v4939, %v5026
      %v5141 = vsel %vm580, %v4940, %v5028
      %v5142 = vsel %vm580, %v4941, %v5030
      %v5143 = vsel %vm580, %v4950, %v5048
      %v5144 = vsel %vm580, %v4951, %v5050
      %v5145 = vsel %vm580, %v4952, %v5052
      %v5146 = vsel %vm580, %v4953, %v5054
      %v5147 = vsel %vm580, %v4954, %v5056
      %v5148 = vsel %vm580, %v4955, %v5058
      %v5149 = vsel %vm580, %v4956, %v5060
      %v5150 = vsel %vm580, %v4957, %v5062
      %v5151 = vsel %vm580, %v4966, %v5080
      %v5152 = vsel %vm580, %v4967, %v5082
      %v5153 = vsel %vm580, %v4968, %v5084
      %v5154 = vsel %vm580, %v4969, %v5086
      %v5155 = vsel %vm580, %v4970, %v5088
      %v5156 = vsel %vm580, %v4971, %v5090
      %v5157 = vsel %vm580, %v4972, %v5092
      %v5158 = vsel %vm580, %v4973, %v5094
      %v5159 = vsel %vm580, %v4983, %v5112
      %v5160 = vsel %vm580, %v4984, %v5114
      %v5161 = vsel %vm580, %v4985, %v5116
      %v5162 = vsel %vm580, %v4986, %v5118
      %v5163 = vsel %vm580, %v4987, %v5120
      %v5164 = vsel %vm580, %v4988, %v5122
      %v5165 = vsel %vm580, %v4989, %v5124
      %v5166 = vsel %vm580, %v4990, %v5126
      %v5167 = vld [vmem:[%s3] sm:$0xff]
      %v5168 = vld [vmem:[%s3 + $0x8] sm:$0xff]
      %v5169 = vld [vmem:[%s3 + $0x10] sm:$0xff]
      %v5170 = vld [vmem:[%s3 + $0x18] sm:$0xff]
      %v5171 = vld [vmem:[%s3 + $0x20] sm:$0xff]
      %v5172 = vld [vmem:[%s3 + $0x28] sm:$0xff]
      %v5173 = vld [vmem:[%s3 + $0x30] sm:$0xff]
      %v5174 = vld [vmem:[%s3 + $0x38] sm:$0xff]
      %v5175 = vld [vmem:[%s3 + $0x40] sm:$0xff]
      %v5176 = vld [vmem:[%s3 + $0x48] sm:$0xff]
      %v5177 = vld [vmem:[%s3 + $0x50] sm:$0xff]
      %v5178 = vld [vmem:[%s3 + $0x58] sm:$0xff]
      %v5179 = vld [vmem:[%s3 + $0x60] sm:$0xff]
      %v5180 = vld [vmem:[%s3 + $0x68] sm:$0xff]
      %v5181 = vld [vmem:[%s3 + $0x70] sm:$0xff]
      %v5182 = vld [vmem:[%s3 + $0x78] sm:$0xff]
      %v5183 = vld [vmem:[%s3 + $0x80] sm:$0xff]
      %v5184 = vld [vmem:[%s3 + $0x88] sm:$0xff]
      %v5185 = vld [vmem:[%s3 + $0x90] sm:$0xff]
      %v5186 = vld [vmem:[%s3 + $0x98] sm:$0xff]
      %v5187 = vld [vmem:[%s3 + $0xa0] sm:$0xff]
      %v5188 = vld [vmem:[%s3 + $0xa8] sm:$0xff]
      %v5189 = vld [vmem:[%s3 + $0xb0] sm:$0xff]
      %v5190 = vld [vmem:[%s3 + $0xb8] sm:$0xff]
      %v5191 = vld [vmem:[%s3 + $0xc0] sm:$0xff]
      %v5192 = vld [vmem:[%s3 + $0xc8] sm:$0xff]
      %v5193 = vld [vmem:[%s3 + $0xd0] sm:$0xff]
      %v5194 = vld [vmem:[%s3 + $0xd8] sm:$0xff]
      %v5195 = vld [vmem:[%s3 + $0xe0] sm:$0xff]
      %v5196 = vld [vmem:[%s3 + $0xe8] sm:$0xff]
      %v5197 = vld [vmem:[%s3 + $0xf0] sm:$0xff]
      %v5198 = vld [vmem:[%s3 + $0xf8] sm:$0xff]
      %v5199 = vld [vmem:[%s3 + $0x100] sm:$0xff]
      %v5200 = vld [vmem:[%s3 + $0x108] sm:$0xff]
      %v5201 = vld [vmem:[%s3 + $0x110] sm:$0xff]
      %v5202 = vld [vmem:[%s3 + $0x118] sm:$0xff]
      %v5203 = vld [vmem:[%s3 + $0x120] sm:$0xff]
      %v5204 = vld [vmem:[%s3 + $0x128] sm:$0xff]
      %v5205 = vld [vmem:[%s3 + $0x130] sm:$0xff]
      %v5206 = vld [vmem:[%s3 + $0x138] sm:$0xff]
      %v5207 = vld [vmem:[%s3 + $0x140] sm:$0xff]
      %v5208 = vld [vmem:[%s3 + $0x148] sm:$0xff]
      %v5209 = vld [vmem:[%s3 + $0x150] sm:$0xff]
      %v5210 = vld [vmem:[%s3 + $0x158] sm:$0xff]
      %v5211 = vld [vmem:[%s3 + $0x160] sm:$0xff]
      %v5212 = vld [vmem:[%s3 + $0x168] sm:$0xff]
      %v5213 = vld [vmem:[%s3 + $0x170] sm:$0xff]
      %v5214 = vld [vmem:[%s3 + $0x178] sm:$0xff]
      %v5215 = vld [vmem:[%s3 + $0x180] sm:$0xff]
      %v5216 = vld [vmem:[%s3 + $0x188] sm:$0xff]
      %v5217 = vld [vmem:[%s3 + $0x190] sm:$0xff]
      %v5218 = vld [vmem:[%s3 + $0x198] sm:$0xff]
      %v5219 = vld [vmem:[%s3 + $0x1a0] sm:$0xff]
      %v5220 = vld [vmem:[%s3 + $0x1a8] sm:$0xff]
      %v5221 = vld [vmem:[%s3 + $0x1b0] sm:$0xff]
      %v5222 = vld [vmem:[%s3 + $0x1b8] sm:$0xff]
      %v5223 = vld [vmem:[%s3 + $0x1c0] sm:$0xff]
      %v5224 = vld [vmem:[%s3 + $0x1c8] sm:$0xff]
      %v5225 = vld [vmem:[%s3 + $0x1d0] sm:$0xff]
      %v5226 = vld [vmem:[%s3 + $0x1d8] sm:$0xff]
      %v5227 = vld [vmem:[%s3 + $0x1e0] sm:$0xff]
      %v5228 = vld [vmem:[%s3 + $0x1e8] sm:$0xff]
      %v5229 = vld [vmem:[%s3 + $0x1f0] sm:$0xff]
      %v5230 = vld [vmem:[%s3 + $0x1f8] sm:$0xff]
      %v5231 = vld [vmem:[%s3 + $0x200] sm:$0xff]
      %v5232 = vld [vmem:[%s3 + $0x208] sm:$0xff]
      %v5233 = vld [vmem:[%s3 + $0x210] sm:$0xff]
      %v5234 = vld [vmem:[%s3 + $0x218] sm:$0xff]
      %v5235 = vld [vmem:[%s3 + $0x220] sm:$0xff]
      %v5236 = vld [vmem:[%s3 + $0x228] sm:$0xff]
      %v5237 = vld [vmem:[%s3 + $0x230] sm:$0xff]
      %v5238 = vld [vmem:[%s3 + $0x238] sm:$0xff]
      %v5240 = vsel %vm580, %v4999, 0
      %v5243 = vsel %vm580, %v5000, 0
      %v5246 = vsel %vm580, %v5001, 0
      %v5249 = vsel %vm580, %v5002, 0
      %v5252 = vsel %vm580, %v5003, 0
      %v5255 = vsel %vm580, %v5004, 0
      %v5258 = vsel %vm580, %v5005, 0
      %v5261 = vsel %vm580, %v5006, 0
      %5263 = vmatprep.subr.mxu0 0.0
      %5264 = vmatpush1.msra.mxu0 %v5167
      %5265 = vmatprep.subr.mxu0 0.0
      %5266 = vmatpush1.msra.mxu0 %v5168
      %5267 = vmatprep.subr.mxu0 0.0
      %5268 = vmatpush1.msra.mxu0 %v5169
      %5269 = vmatprep.subr.mxu0 0.0
      %5270 = vmatpush1.msra.mxu0 %v5170
      %5271 = vmatprep.subr.mxu0 0.0
      %5272 = vmatpush1.msra.mxu0 %v5171
      %5273 = vmatprep.subr.mxu0 0.0
      %5274 = vmatpush1.msra.mxu0 %v5172
      %5275 = vmatprep.subr.mxu0 0.0
      %5276 = vmatpush1.msra.mxu0 %v5173
      %5277 = vmatprep.subr.mxu0 0.0
      %5278 = vmatpush1.msra.mxu0 %v5174
      %5279 = vmatprep.subr.mxu0 0.0
      %5280 = vmatpush1.msra.mxu0 %v5175
      %5281 = vmatprep.subr.mxu0 0.0
      %5282 = vmatpush1.msra.mxu0 %v5176
      %5283 = vmatprep.subr.mxu0 0.0
      %5284 = vmatpush1.msra.mxu0 %v5177
      %5285 = vmatprep.subr.mxu0 0.0
      %5286 = vmatpush1.msra.mxu0 %v5178
      %5287 = vmatprep.subr.mxu0 0.0
      %5288 = vmatpush1.msra.mxu0 %v5179
      %5289 = vmatprep.subr.mxu0 0.0
      %5290 = vmatpush1.msra.mxu0 %v5180
      %5291 = vmatprep.subr.mxu0 0.0
      %5292 = vmatpush1.msra.mxu0 %v5181
      %5293 = vmatprep.subr.mxu0 0.0
      %5294 = vmatpush1.msra.mxu0 %v5182
      %5295 = vmatprep.subr.mxu0 0.0
      %5296 = vmatpush1.msra.mxu0 %v5183
      %5297 = vmatprep.subr.mxu0 0.0
      %5298 = vmatpush1.msra.mxu0 %v5184
      %5299 = vmatprep.subr.mxu0 0.0
      %5300 = vmatpush1.msra.mxu0 %v5185
      %5301 = vmatprep.subr.mxu0 0.0
      %5302 = vmatpush1.msra.mxu0 %v5186
      %5303 = vmatprep.subr.mxu0 0.0
      %5304 = vmatpush1.msra.mxu0 %v5187
      %5305 = vmatprep.subr.mxu0 0.0
      %5306 = vmatpush1.msra.mxu0 %v5188
      %5307 = vmatprep.subr.mxu0 0.0
      %5308 = vmatpush1.msra.mxu0 %v5189
      %5309 = vmatprep.subr.mxu0 0.0
      %5310 = vmatpush1.msra.mxu0 %v5190
      %5311 = vmatprep.subr.mxu0 0.0
      %5312 = vmatpush1.msra.mxu0 %v5191
      %5313 = vmatprep.subr.mxu0 0.0
      %5314 = vmatpush1.msra.mxu0 %v5192
      %5315 = vmatprep.subr.mxu0 0.0
      %5316 = vmatpush1.msra.mxu0 %v5193
      %5317 = vmatprep.subr.mxu0 0.0
      %5318 = vmatpush1.msra.mxu0 %v5194
      %5319 = vmatprep.subr.mxu0 0.0
      %5320 = vmatpush1.msra.mxu0 %v5195
      %5321 = vmatprep.subr.mxu0 0.0
      %5322 = vmatpush1.msra.mxu0 %v5196
      %5323 = vmatprep.subr.mxu0 0.0
      %5324 = vmatpush1.msra.mxu0 %v5197
      %5325 = vmatprep.subr.mxu0 0.0
      %5326 = vmatpush1.msra.mxu0 %v5198
      %5327 = vmatprep.mubr.f32.mxu0 %v5143
      %5328 = vmatmul.mubr.f32.gmra.mrb[0].mxu0 %v5135
      %v5329 = vpop.f32.mrb[0].mxu0
      %v5330 = vadd.f32 0.0, %v5329
      %v5331 = vpop.f32.mrb[0].mxu0
      %5332 = vmatprep.mubr.f32.mxu0 %v5144
      %5333 = vmatmul.mubr.f32.gmra.mrb[0].mxu0 %v5136
      %v5334 = vpop.f32.mrb[0].mxu0
      %v5335 = vadd.f32 0.0, %v5334
      %v5336 = vpop.f32.mrb[0].mxu0
      %5337 = vmatprep.mubr.f32.mxu0 %v5145
      %5338 = vmatmul.mubr.f32.gmra.mrb[0].mxu0 %v5137
      %v5339 = vpop.f32.mrb[0].mxu0
      %v5340 = vadd.f32 0.0, %v5339
      %v5341 = vpop.f32.mrb[0].mxu0
      %5342 = vmatprep.mubr.f32.mxu0 %v5146
      %5343 = vmatmul.mubr.f32.gmra.mrb[0].mxu0 %v5138
      %v5344 = vpop.f32.mrb[0].mxu0
      %v5345 = vadd.f32 0.0, %v5344
      %v5346 = vpop.f32.mrb[0].mxu0
      %5347 = vmatprep.mubr.f32.mxu0 %v5147
      %5348 = vmatmul.mubr.f32.gmra.mrb[0].mxu0 %v5139
      %v5349 = vpop.f32.mrb[0].mxu0
      %v5350 = vadd.f32 0.0, %v5349
      %v5351 = vpop.f32.mrb[0].mxu0
      %5352 = vmatprep.mubr.f32.mxu0 %v5148
      %5353 = vmatmul.mubr.f32.gmra.mrb[0].mxu0 %v5140
      %v5354 = vpop.f32.mrb[0].mxu0
      %v5355 = vadd.f32 0.0, %v5354
      %v5356 = vpop.f32.mrb[0].mxu0
      %5357 = vmatprep.mubr.f32.mxu0 %v5149
      %5358 = vmatmul.mubr.f32.gmra.mrb[0].mxu0 %v5141
      %v5359 = vpop.f32.mrb[0].mxu0
      %v5360 = vadd.f32 0.0, %v5359
      %v5361 = vpop.f32.mrb[0].mxu0
      %5362 = vmatprep.mubr.f32.mxu0 %v5150
      %5363 = vmatmul.mubr.f32.gmra.mrb[0].mxu0 %v5142
      %v5364 = vpop.f32.mrb[0].mxu0
      %v5365 = vadd.f32 0.0, %v5364
      %v5366 = vpop.f32.mrb[0].mxu0
      %5367 = vdwg.mxu0
      %5368 = vmatprep.subr.mxu0 0.0
      %5369 = vmatpush1.msra.mxu0 %v5199
      %5370 = vmatprep.subr.mxu0 0.0
      %5371 = vmatpush1.msra.mxu0 %v5200
      %5372 = vmatprep.subr.mxu0 0.0
      %5373 = vmatpush1.msra.mxu0 %v5201
      %5374 = vmatprep.subr.mxu0 0.0
      %5375 = vmatpush1.msra.mxu0 %v5202
      %5376 = vmatprep.subr.mxu0 0.0
      %5377 = vmatpush1.msra.mxu0 %v5203
      %5378 = vmatprep.subr.mxu0 0.0
      %5379 = vmatpush1.msra.mxu0 %v5204
      %5380 = vmatprep.subr.mxu0 0.0
      %5381 = vmatpush1.msra.mxu0 %v5205
      %5382 = vmatprep.subr.mxu0 0.0
      %5383 = vmatpush1.msra.mxu0 %v5206
      %5384 = vmatprep.subr.mxu0 0.0
      %5385 = vmatpush1.msra.mxu0 %v5207
      %5386 = vmatprep.subr.mxu0 0.0
      %5387 = vmatpush1.msra.mxu0 %v5208
      %5388 = vmatprep.subr.mxu0 0.0
      %5389 = vmatpush1.msra.mxu0 %v5209
      %5390 = vmatprep.subr.mxu0 0.0
      %5391 = vmatpush1.msra.mxu0 %v5210
      %5392 = vmatprep.subr.mxu0 0.0
      %5393 = vmatpush1.msra.mxu0 %v5211
      %5394 = vmatprep.subr.mxu0 0.0
      %5395 = vmatpush1.msra.mxu0 %v5212
      %5396 = vmatprep.subr.mxu0 0.0
      %5397 = vmatpush1.msra.mxu0 %v5213
      %5398 = vmatprep.subr.mxu0 0.0
      %5399 = vmatpush1.msra.mxu0 %v5214
      %5400 = vmatprep.subr.mxu0 0.0
      %5401 = vmatpush1.msra.mxu0 %v5215
      %5402 = vmatprep.subr.mxu0 0.0
      %5403 = vmatpush1.msra.mxu0 %v5216
      %5404 = vmatprep.subr.mxu0 0.0
      %5405 = vmatpush1.msra.mxu0 %v5217
      %5406 = vmatprep.subr.mxu0 0.0
      %5407 = vmatpush1.msra.mxu0 %v5218
      %5408 = vmatprep.subr.mxu0 0.0
      %5409 = vmatpush1.msra.mxu0 %v5219
      %5410 = vmatprep.subr.mxu0 0.0
      %5411 = vmatpush1.msra.mxu0 %v5220
      %5412 = vmatprep.subr.mxu0 0.0
      %5413 = vmatpush1.msra.mxu0 %v5221
      %5414 = vmatprep.subr.mxu0 0.0
      %5415 = vmatpush1.msra.mxu0 %v5222
      %5416 = vmatprep.subr.mxu0 0.0
      %5417 = vmatpush1.msra.mxu0 %v5223
      %5418 = vmatprep.subr.mxu0 0.0
      %5419 = vmatpush1.msra.mxu0 %v5224
      %5420 = vmatprep.subr.mxu0 0.0
      %5421 = vmatpush1.msra.mxu0 %v5225
      %5422 = vmatprep.subr.mxu0 0.0
      %5423 = vmatpush1.msra.mxu0 %v5226
      %5424 = vmatprep.subr.mxu0 0.0
      %5425 = vmatpush1.msra.mxu0 %v5227
      %5426 = vmatprep.subr.mxu0 0.0
      %5427 = vmatpush1.msra.mxu0 %v5228
      %5428 = vmatprep.subr.mxu0 0.0
      %5429 = vmatpush1.msra.mxu0 %v5229
      %5430 = vmatprep.subr.mxu0 0.0
      %5431 = vmatpush1.msra.mxu0 %v5230
      %5432 = vmatprep.mubr.f32.mxu0 %v5159
      %5433 = vmatmul.mubr.f32.gmra.mrb[0].mxu0 %v5151
      %v5434 = vpop.f32.mrb[0].mxu0
      %v5435 = vadd.f32 %v5330, %v5434
      %v5436 = vpop.f32.mrb[0].mxu0
      %5437 = vmatprep.mubr.f32.mxu0 %v5160
      %5438 = vmatmul.mubr.f32.gmra.mrb[0].mxu0 %v5152
      %v5439 = vpop.f32.mrb[0].mxu0
      %v5440 = vadd.f32 %v5335, %v5439
      %v5441 = vpop.f32.mrb[0].mxu0
      %5442 = vmatprep.mubr.f32.mxu0 %v5161
      %5443 = vmatmul.mubr.f32.gmra.mrb[0].mxu0 %v5153
      %v5444 = vpop.f32.mrb[0].mxu0
      %v5445 = vadd.f32 %v5340, %v5444
      %v5446 = vpop.f32.mrb[0].mxu0
      %5447 = vmatprep.mubr.f32.mxu0 %v5162
      %5448 = vmatmul.mubr.f32.gmra.mrb[0].mxu0 %v5154
      %v5449 = vpop.f32.mrb[0].mxu0
      %v5450 = vadd.f32 %v5345, %v5449
      %v5451 = vpop.f32.mrb[0].mxu0
      %5452 = vmatprep.mubr.f32.mxu0 %v5163
      %5453 = vmatmul.mubr.f32.gmra.mrb[0].mxu0 %v5155
      %v5454 = vpop.f32.mrb[0].mxu0
      %v5455 = vadd.f32 %v5350, %v5454
      %v5456 = vpop.f32.mrb[0].mxu0
      %5457 = vmatprep.mubr.f32.mxu0 %v5164
      %5458 = vmatmul.mubr.f32.gmra.mrb[0].mxu0 %v5156
      %v5459 = vpop.f32.mrb[0].mxu0
      %v5460 = vadd.f32 %v5355, %v5459
      %v5461 = vpop.f32.mrb[0].mxu0
      %5462 = vmatprep.mubr.f32.mxu0 %v5165
      %5463 = vmatmul.mubr.f32.gmra.mrb[0].mxu0 %v5157
      %v5464 = vpop.f32.mrb[0].mxu0
      %v5465 = vadd.f32 %v5360, %v5464
      %v5466 = vpop.f32.mrb[0].mxu0
      %5467 = vmatprep.mubr.f32.mxu0 %v5166
      %5468 = vmatmul.mubr.f32.gmra.mrb[0].mxu0 %v5158
      %v5469 = vpop.f32.mrb[0].mxu0
      %v5470 = vadd.f32 %v5365, %v5469
      %v5471 = vpop.f32.mrb[0].mxu0
      %5472 = vdwg.mxu0
      %5473 = vmatprep.subr.mxu0 0.0
      %5474 = vmatpush1.msra.mxu0 %v5231
      %5475 = vmatprep.subr.mxu0 0.0
      %5476 = vmatpush1.msra.mxu0 %v5232
      %5477 = vmatprep.subr.mxu0 0.0
      %5478 = vmatpush1.msra.mxu0 %v5233
      %5479 = vmatprep.subr.mxu0 0.0
      %5480 = vmatpush1.msra.mxu0 %v5234
      %5481 = vmatprep.subr.mxu0 0.0
      %5482 = vmatpush1.msra.mxu0 %v5235
      %5483 = vmatprep.subr.mxu0 0.0
      %5484 = vmatpush1.msra.mxu0 %v5236
      %5485 = vmatprep.subr.mxu0 0.0
      %5486 = vmatpush1.msra.mxu0 %v5237
      %5487 = vmatprep.subr.mxu0 0.0
      %5488 = vmatpush1.msra.mxu0 %v5238
      %5489 = vmatprep.subr.mxu0 0.0
      %5490 = vmatpush1.msra.mxu0 0.0
      %5491 = vmatprep.subr.mxu0 0.0
      %5492 = vmatpush1.msra.mxu0 0.0
      %5493 = vmatprep.subr.mxu0 0.0
      %5494 = vmatpush1.msra.mxu0 0.0
      %5495 = vmatprep.subr.mxu0 0.0
      %5496 = vmatpush1.msra.mxu0 0.0
      %5497 = vmatprep.subr.mxu0 0.0
      %5498 = vmatpush1.msra.mxu0 0.0
      %5499 = vmatprep.subr.mxu0 0.0
      %5500 = vmatpush1.msra.mxu0 0.0
      %5501 = vmatprep.subr.mxu0 0.0
      %5502 = vmatpush1.msra.mxu0 0.0
      %5503 = vmatprep.subr.mxu0 0.0
      %5504 = vmatpush1.msra.mxu0 0.0
      %5505 = vmatprep.subr.mxu0 0.0
      %5506 = vmatpush1.msra.mxu0 0.0
      %5507 = vmatprep.subr.mxu0 0.0
      %5508 = vmatpush1.msra.mxu0 0.0
      %5509 = vmatprep.subr.mxu0 0.0
      %5510 = vmatpush1.msra.mxu0 0.0
      %5511 = vmatprep.subr.mxu0 0.0
      %5512 = vmatpush1.msra.mxu0 0.0
      %5513 = vmatprep.subr.mxu0 0.0
      %5514 = vmatpush1.msra.mxu0 0.0
      %5515 = vmatprep.subr.mxu0 0.0
      %5516 = vmatpush1.msra.mxu0 0.0
      %5517 = vmatprep.subr.mxu0 0.0
      %5518 = vmatpush1.msra.mxu0 0.0
      %5519 = vmatprep.subr.mxu0 0.0
      %5520 = vmatpush1.msra.mxu0 0.0
      %5521 = vmatprep.subr.mxu0 0.0
      %5522 = vmatpush1.msra.mxu0 0.0
      %5523 = vmatprep.subr.mxu0 0.0
      %5524 = vmatpush1.msra.mxu0 0.0
      %5525 = vmatprep.subr.mxu0 0.0
      %5526 = vmatpush1.msra.mxu0 0.0
      %5527 = vmatprep.subr.mxu0 0.0
      %5528 = vmatpush1.msra.mxu0 0.0
      %5529 = vmatprep.subr.mxu0 0.0
      %5530 = vmatpush1.msra.mxu0 0.0
      %5531 = vmatprep.subr.mxu0 0.0
      %5532 = vmatpush1.msra.mxu0 0.0
      %5533 = vmatprep.subr.mxu0 0.0
      %5534 = vmatpush1.msra.mxu0 0.0
      %5535 = vmatprep.subr.mxu0 0.0
      %5536 = vmatpush1.msra.mxu0 0.0
      %5537 = vmatprep.mubr.f32.mxu0 0.0
      %5538 = vmatmul.mubr.f32.gmra.mrb[0].mxu0 %v5240
      %v5539 = vpop.f32.mrb[0].mxu0
      %v5540 = vadd.f32 %v5435, %v5539
      %v5541 = vpop.f32.mrb[0].mxu0
      %5542 = vmatprep.mubr.f32.mxu0 0.0
      %5543 = vmatmul.mubr.f32.gmra.mrb[0].mxu0 %v5243
      %v5544 = vpop.f32.mrb[0].mxu0
      %v5545 = vadd.f32 %v5440, %v5544
      %v5546 = vpop.f32.mrb[0].mxu0
      %5547 = vmatprep.mubr.f32.mxu0 0.0
      %5548 = vmatmul.mubr.f32.gmra.mrb[0].mxu0 %v5246
      %v5549 = vpop.f32.mrb[0].mxu0
      %v5550 = vadd.f32 %v5445, %v5549
      %v5551 = vpop.f32.mrb[0].mxu0
      %5552 = vmatprep.mubr.f32.mxu0 0.0
      %5553 = vmatmul.mubr.f32.gmra.mrb[0].mxu0 %v5249
      %v5554 = vpop.f32.mrb[0].mxu0
      %v5555 = vadd.f32 %v5450, %v5554
      %v5556 = vpop.f32.mrb[0].mxu0
      %5557 = vmatprep.mubr.f32.mxu0 0.0
      %5558 = vmatmul.mubr.f32.gmra.mrb[0].mxu0 %v5252
      %v5559 = vpop.f32.mrb[0].mxu0
      %v5560 = vadd.f32 %v5455, %v5559
      %v5561 = vpop.f32.mrb[0].mxu0
      %5562 = vmatprep.mubr.f32.mxu0 0.0
      %5563 = vmatmul.mubr.f32.gmra.mrb[0].mxu0 %v5255
      %v5564 = vpop.f32.mrb[0].mxu0
      %v5565 = vadd.f32 %v5460, %v5564
      %v5566 = vpop.f32.mrb[0].mxu0
      %5567 = vmatprep.mubr.f32.mxu0 0.0
      %5568 = vmatmul.mubr.f32.gmra.mrb[0].mxu0 %v5258
      %v5569 = vpop.f32.mrb[0].mxu0
      %v5570 = vadd.f32 %v5465, %v5569
      %v5571 = vpop.f32.mrb[0].mxu0
      %5572 = vmatprep.mubr.f32.mxu0 0.0
      %5573 = vmatmul.mubr.f32.gmra.mrb[0].mxu0 %v5261
      %v5574 = vpop.f32.mrb[0].mxu0
      %v5575 = vadd.f32 %v5470, %v5574
      %v5576 = vpop.f32.mrb[0].mxu0
      %5577 = vdwg.mxu0
      %v5578 = vld [vmem:[%s9] sm:$0x1]
      %v5580 = vlaneseq
      %v5581 = vshrl.u32 %v5580, 7
      %v5582 = vsub.s32 0, %v5581
      %v5583 = vrot.slane %v5578, %v5582
      %v5585 = vmul.f32 %v5540, %v5583
      %v5586 = vmul.f32 %v5545, %v5583
      %v5587 = vmul.f32 %v5550, %v5583
      %v5588 = vmul.f32 %v5555, %v5583
      %v5589 = vmul.f32 %v5560, %v5583
      %v5590 = vmul.f32 %v5565, %v5583
      %v5591 = vmul.f32 %v5570, %v5583
      %v5592 = vmul.f32 %v5575, %v5583
      %v5593 = vld [vmem:[%s10] sm:$0x1]
      %v5595 = vlaneseq
      %v5596 = vshrl.u32 %v5595, 7
      %v5597 = vsub.s32 0, %v5596
      %v5598 = vrot.slane %v5593, %v5597
      %v5600 = vadd.f32 %v5585, %v5598
      %v5601 = vadd.f32 %v5586, %v5598
      %v5602 = vadd.f32 %v5587, %v5598
      %v5603 = vadd.f32 %v5588, %v5598
      %v5604 = vadd.f32 %v5589, %v5598
      %v5605 = vadd.f32 %v5590, %v5598
      %v5606 = vadd.f32 %v5591, %v5598
      %v5607 = vadd.f32 %v5592, %v5598
      %vm5608 = vcmp.ge.f32.partialorder %v5600, 0.0
      %vm5609 = vcmp.ge.f32.partialorder %v5601, 0.0
      %vm5610 = vcmp.ge.f32.partialorder %v5602, 0.0
      %vm5611 = vcmp.ge.f32.partialorder %v5603, 0.0
      %vm5612 = vcmp.ge.f32.partialorder %v5604, 0.0
      %vm5613 = vcmp.ge.f32.partialorder %v5605, 0.0
      %vm5614 = vcmp.ge.f32.partialorder %v5606, 0.0
      %vm5615 = vcmp.ge.f32.partialorder %v5607, 0.0
      %v5616 = vmul.f32 %v5600, 0.01
      %v5617 = vmul.f32 %v5601, 0.01
      %v5618 = vmul.f32 %v5602, 0.01
      %v5619 = vmul.f32 %v5603, 0.01
      %v5620 = vmul.f32 %v5604, 0.01
      %v5621 = vmul.f32 %v5605, 0.01
      %v5622 = vmul.f32 %v5606, 0.01
      %v5623 = vmul.f32 %v5607, 0.01
      %v5624 = vsel %vm5608, %v5600, %v5616
      %v5625 = vsel %vm5609, %v5601, %v5617
      %v5626 = vsel %vm5610, %v5602, %v5618
      %v5627 = vsel %vm5611, %v5603, %v5619
      %v5628 = vsel %vm5612, %v5604, %v5620
      %v5629 = vsel %vm5613, %v5605, %v5621
      %v5630 = vsel %vm5614, %v5606, %v5622
      %v5631 = vsel %vm5615, %v5607, %v5623
      %s5632 = scalar_lea.vmem [#allocation5], 16
      %5633 = vst.msk [vmem:[%s5632 + $0x1] sm:$0xff] %vm524, %v5624
      %5634 = vst.msk [vmem:[%s5632 + $0x11] sm:$0xff] %vm524, %v5625
      %5635 = vst.msk [vmem:[%s5632 + $0x21] sm:$0xff] %vm524, %v5626
      %5636 = vst.msk [vmem:[%s5632 + $0x31] sm:$0xff] %vm524, %v5627
      %5637 = vst.msk [vmem:[%s5632 + $0x41] sm:$0xff] %vm524, %v5628
      %5638 = vst.msk [vmem:[%s5632 + $0x51] sm:$0xff] %vm524, %v5629
      %5639 = vst.msk [vmem:[%s5632 + $0x61] sm:$0xff] %vm524, %v5630
      %5640 = vst.msk [vmem:[%s5632 + $0x71] sm:$0xff] %vm524, %v5631
      %v5641 = vld [vmem:[#allocation5] sm:$0xff]
      %v5642 = vld [vmem:[#allocation5 + $0x10] sm:$0xff]
      %v5643 = vld [vmem:[#allocation5 + $0x20] sm:$0xff]
      %v5644 = vld [vmem:[#allocation5 + $0x30] sm:$0xff]
      %v5645 = vld [vmem:[#allocation5 + $0x40] sm:$0xff]
      %v5646 = vld [vmem:[#allocation5 + $0x50] sm:$0xff]
      %v5647 = vld [vmem:[#allocation5 + $0x60] sm:$0xff]
      %v5648 = vld [vmem:[#allocation5 + $0x70] sm:$0xff]
      %v5649 = vld [vmem:[#allocation5 + $0x1] sm:$0xff]
      %v5650 = vld [vmem:[#allocation5 + $0x11] sm:$0xff]
      %v5651 = vld [vmem:[#allocation5 + $0x21] sm:$0xff]
      %v5652 = vld [vmem:[#allocation5 + $0x31] sm:$0xff]
      %v5653 = vld [vmem:[#allocation5 + $0x41] sm:$0xff]
      %v5654 = vld [vmem:[#allocation5 + $0x51] sm:$0xff]
      %v5655 = vld [vmem:[#allocation5 + $0x61] sm:$0xff]
      %v5656 = vld [vmem:[#allocation5 + $0x71] sm:$0xff]
      %v5657 = vld [vmem:[#allocation5 + $0x2] sm:$0xff]
      %v5658 = vld [vmem:[#allocation5 + $0x12] sm:$0xff]
      %v5659 = vld [vmem:[#allocation5 + $0x22] sm:$0xff]
      %v5660 = vld [vmem:[#allocation5 + $0x32] sm:$0xff]
      %v5661 = vld [vmem:[#allocation5 + $0x42] sm:$0xff]
      %v5662 = vld [vmem:[#allocation5 + $0x52] sm:$0xff]
      %v5663 = vld [vmem:[#allocation5 + $0x62] sm:$0xff]
      %v5664 = vld [vmem:[#allocation5 + $0x72] sm:$0xff]
      %v5665 = vld [vmem:[%s5632] sm:$0xff]
      %v5666 = vld [vmem:[%s5632 + $0x10] sm:$0xff]
      %v5667 = vld [vmem:[%s5632 + $0x20] sm:$0xff]
      %v5668 = vld [vmem:[%s5632 + $0x30] sm:$0xff]
      %v5669 = vld [vmem:[%s5632 + $0x40] sm:$0xff]
      %v5670 = vld [vmem:[%s5632 + $0x50] sm:$0xff]
      %v5671 = vld [vmem:[%s5632 + $0x60] sm:$0xff]
      %v5672 = vld [vmem:[%s5632 + $0x70] sm:$0xff]
      %v5673 = vld [vmem:[%s5632 + $0x1] sm:$0xff]
      %v5674 = vld [vmem:[%s5632 + $0x11] sm:$0xff]
      %v5675 = vld [vmem:[%s5632 + $0x21] sm:$0xff]
      %v5676 = vld [vmem:[%s5632 + $0x31] sm:$0xff]
      %v5677 = vld [vmem:[%s5632 + $0x41] sm:$0xff]
      %v5678 = vld [vmem:[%s5632 + $0x51] sm:$0xff]
      %v5679 = vld [vmem:[%s5632 + $0x61] sm:$0xff]
      %v5680 = vld [vmem:[%s5632 + $0x71] sm:$0xff]
      %v5681 = vld [vmem:[%s5632 + $0x2] sm:$0xff]
      %v5682 = vld [vmem:[%s5632 + $0x12] sm:$0xff]
      %v5683 = vld [vmem:[%s5632 + $0x22] sm:$0xff]
      %v5684 = vld [vmem:[%s5632 + $0x32] sm:$0xff]
      %v5685 = vld [vmem:[%s5632 + $0x42] sm:$0xff]
      %v5686 = vld [vmem:[%s5632 + $0x52] sm:$0xff]
      %v5687 = vld [vmem:[%s5632 + $0x62] sm:$0xff]
      %v5688 = vld [vmem:[%s5632 + $0x72] sm:$0xff]
      %s5689 = scalar_lea.vmem [#allocation5], 32
      %v5690 = vld [vmem:[%s5689] sm:$0xff]
      %v5691 = vld [vmem:[%s5689 + $0x10] sm:$0xff]
      %v5692 = vld [vmem:[%s5689 + $0x20] sm:$0xff]
      %v5693 = vld [vmem:[%s5689 + $0x30] sm:$0xff]
      %v5694 = vld [vmem:[%s5689 + $0x40] sm:$0xff]
      %v5695 = vld [vmem:[%s5689 + $0x50] sm:$0xff]
      %v5696 = vld [vmem:[%s5689 + $0x60] sm:$0xff]
      %v5697 = vld [vmem:[%s5689 + $0x70] sm:$0xff]
      %v5698 = vld [vmem:[%s5689 + $0x1] sm:$0xff]
      %v5699 = vld [vmem:[%s5689 + $0x11] sm:$0xff]
      %v5700 = vld [vmem:[%s5689 + $0x21] sm:$0xff]
      %v5701 = vld [vmem:[%s5689 + $0x31] sm:$0xff]
      %v5702 = vld [vmem:[%s5689 + $0x41] sm:$0xff]
      %v5703 = vld [vmem:[%s5689 + $0x51] sm:$0xff]
      %v5704 = vld [vmem:[%s5689 + $0x61] sm:$0xff]
      %v5705 = vld [vmem:[%s5689 + $0x71] sm:$0xff]
      %v5706 = vld [vmem:[%s5689 + $0x2] sm:$0xff]
      %v5707 = vld [vmem:[%s5689 + $0x12] sm:$0xff]
      %v5708 = vld [vmem:[%s5689 + $0x22] sm:$0xff]
      %v5709 = vld [vmem:[%s5689 + $0x32] sm:$0xff]
      %v5710 = vld [vmem:[%s5689 + $0x42] sm:$0xff]
      %v5711 = vld [vmem:[%s5689 + $0x52] sm:$0xff]
      %v5712 = vld [vmem:[%s5689 + $0x62] sm:$0xff]
      %v5713 = vld [vmem:[%s5689 + $0x72] sm:$0xff]
      %5722 = vrot.lane.b32.xlu0 %v5649, 32
      %v5723 = vpop.permute.xlu0 %5722
      %5724 = vrot.lane.b32.xlu0 %v5650, 32
      %v5725 = vpop.permute.xlu0 %5724
      %5726 = vrot.lane.b32.xlu0 %v5651, 32
      %v5727 = vpop.permute.xlu0 %5726
      %5728 = vrot.lane.b32.xlu0 %v5652, 32
      %v5729 = vpop.permute.xlu0 %5728
      %5730 = vrot.lane.b32.xlu0 %v5653, 32
      %v5731 = vpop.permute.xlu0 %5730
      %5732 = vrot.lane.b32.xlu0 %v5654, 32
      %v5733 = vpop.permute.xlu0 %5732
      %5734 = vrot.lane.b32.xlu0 %v5655, 32
      %v5735 = vpop.permute.xlu0 %5734
      %5736 = vrot.lane.b32.xlu0 %v5656, 32
      %v5737 = vpop.permute.xlu0 %5736
      %5754 = vrot.lane.b32.xlu0 %v5657, 64
      %v5755 = vpop.permute.xlu0 %5754
      %5756 = vrot.lane.b32.xlu0 %v5658, 64
      %v5757 = vpop.permute.xlu0 %5756
      %5758 = vrot.lane.b32.xlu0 %v5659, 64
      %v5759 = vpop.permute.xlu0 %5758
      %5760 = vrot.lane.b32.xlu0 %v5660, 64
      %v5761 = vpop.permute.xlu0 %5760
      %5762 = vrot.lane.b32.xlu0 %v5661, 64
      %v5763 = vpop.permute.xlu0 %5762
      %5764 = vrot.lane.b32.xlu0 %v5662, 64
      %v5765 = vpop.permute.xlu0 %5764
      %5766 = vrot.lane.b32.xlu0 %v5663, 64
      %v5767 = vpop.permute.xlu0 %5766
      %5768 = vrot.lane.b32.xlu0 %v5664, 64
      %v5769 = vpop.permute.xlu0 %5768
      %5786 = vrot.lane.b32.xlu0 %v5665, 96
      %v5787 = vpop.permute.xlu0 %5786
      %5788 = vrot.lane.b32.xlu0 %v5666, 96
      %v5789 = vpop.permute.xlu0 %5788
      %5790 = vrot.lane.b32.xlu0 %v5667, 96
      %v5791 = vpop.permute.xlu0 %5790
      %5792 = vrot.lane.b32.xlu0 %v5668, 96
      %v5793 = vpop.permute.xlu0 %5792
      %5794 = vrot.lane.b32.xlu0 %v5669, 96
      %v5795 = vpop.permute.xlu0 %5794
      %5796 = vrot.lane.b32.xlu0 %v5670, 96
      %v5797 = vpop.permute.xlu0 %5796
      %5798 = vrot.lane.b32.xlu0 %v5671, 96
      %v5799 = vpop.permute.xlu0 %5798
      %5800 = vrot.lane.b32.xlu0 %v5672, 96
      %v5801 = vpop.permute.xlu0 %5800
      %5818 = vrot.lane.b32.xlu0 %v5681, 32
      %v5819 = vpop.permute.xlu0 %5818
      %5820 = vrot.lane.b32.xlu0 %v5682, 32
      %v5821 = vpop.permute.xlu0 %5820
      %5822 = vrot.lane.b32.xlu0 %v5683, 32
      %v5823 = vpop.permute.xlu0 %5822
      %5824 = vrot.lane.b32.xlu0 %v5684, 32
      %v5825 = vpop.permute.xlu0 %5824
      %5826 = vrot.lane.b32.xlu0 %v5685, 32
      %v5827 = vpop.permute.xlu0 %5826
      %5828 = vrot.lane.b32.xlu0 %v5686, 32
      %v5829 = vpop.permute.xlu0 %5828
      %5830 = vrot.lane.b32.xlu0 %v5687, 32
      %v5831 = vpop.permute.xlu0 %5830
      %5832 = vrot.lane.b32.xlu0 %v5688, 32
      %v5833 = vpop.permute.xlu0 %5832
      %5850 = vrot.lane.b32.xlu0 %v5690, 64
      %v5851 = vpop.permute.xlu0 %5850
      %5852 = vrot.lane.b32.xlu0 %v5691, 64
      %v5853 = vpop.permute.xlu0 %5852
      %5854 = vrot.lane.b32.xlu0 %v5692, 64
      %v5855 = vpop.permute.xlu0 %5854
      %5856 = vrot.lane.b32.xlu0 %v5693, 64
      %v5857 = vpop.permute.xlu0 %5856
      %5858 = vrot.lane.b32.xlu0 %v5694, 64
      %v5859 = vpop.permute.xlu0 %5858
      %5860 = vrot.lane.b32.xlu0 %v5695, 64
      %v5861 = vpop.permute.xlu0 %5860
      %5862 = vrot.lane.b32.xlu0 %v5696, 64
      %v5863 = vpop.permute.xlu0 %5862
      %5864 = vrot.lane.b32.xlu0 %v5697, 64
      %v5865 = vpop.permute.xlu0 %5864
      %5882 = vrot.lane.b32.xlu0 %v5698, 96
      %v5883 = vpop.permute.xlu0 %5882
      %5884 = vrot.lane.b32.xlu0 %v5699, 96
      %v5885 = vpop.permute.xlu0 %5884
      %5886 = vrot.lane.b32.xlu0 %v5700, 96
      %v5887 = vpop.permute.xlu0 %5886
      %5888 = vrot.lane.b32.xlu0 %v5701, 96
      %v5889 = vpop.permute.xlu0 %5888
      %5890 = vrot.lane.b32.xlu0 %v5702, 96
      %v5891 = vpop.permute.xlu0 %5890
      %5892 = vrot.lane.b32.xlu0 %v5703, 96
      %v5893 = vpop.permute.xlu0 %5892
      %5894 = vrot.lane.b32.xlu0 %v5704, 96
      %v5895 = vpop.permute.xlu0 %5894
      %5896 = vrot.lane.b32.xlu0 %v5705, 96
      %v5897 = vpop.permute.xlu0 %5896
      %v5906 = vsel %vm524, %v5641, %v5723
      %v5907 = vsel %vm524, %v5642, %v5725
      %v5908 = vsel %vm524, %v5643, %v5727
      %v5909 = vsel %vm524, %v5644, %v5729
      %v5910 = vsel %vm524, %v5645, %v5731
      %v5911 = vsel %vm524, %v5646, %v5733
      %v5912 = vsel %vm524, %v5647, %v5735
      %v5913 = vsel %vm524, %v5648, %v5737
      %v5914 = vsel %vm580, %v5906, %v5755
      %v5915 = vsel %vm580, %v5907, %v5757
      %v5916 = vsel %vm580, %v5908, %v5759
      %v5917 = vsel %vm580, %v5909, %v5761
      %v5918 = vsel %vm580, %v5910, %v5763
      %v5919 = vsel %vm580, %v5911, %v5765
      %v5920 = vsel %vm580, %v5912, %v5767
      %v5921 = vsel %vm580, %v5913, %v5769
      %v5922 = vsel %vm3919, %v5914, %v5787
      %v5923 = vsel %vm3919, %v5915, %v5789
      %v5924 = vsel %vm3919, %v5916, %v5791
      %v5925 = vsel %vm3919, %v5917, %v5793
      %v5926 = vsel %vm3919, %v5918, %v5795
      %v5927 = vsel %vm3919, %v5919, %v5797
      %v5928 = vsel %vm3919, %v5920, %v5799
      %v5929 = vsel %vm3919, %v5921, %v5801
      %v5930 = vsel %vm524, %v5673, %v5819
      %v5931 = vsel %vm524, %v5674, %v5821
      %v5932 = vsel %vm524, %v5675, %v5823
      %v5933 = vsel %vm524, %v5676, %v5825
      %v5934 = vsel %vm524, %v5677, %v5827
      %v5935 = vsel %vm524, %v5678, %v5829
      %v5936 = vsel %vm524, %v5679, %v5831
      %v5937 = vsel %vm524, %v5680, %v5833
      %v5938 = vsel %vm580, %v5930, %v5851
      %v5939 = vsel %vm580, %v5931, %v5853
      %v5940 = vsel %vm580, %v5932, %v5855
      %v5941 = vsel %vm580, %v5933, %v5857
      %v5942 = vsel %vm580, %v5934, %v5859
      %v5943 = vsel %vm580, %v5935, %v5861
      %v5944 = vsel %vm580, %v5936, %v5863
      %v5945 = vsel %vm580, %v5937, %v5865
      %v5946 = vsel %vm3919, %v5938, %v5883
      %v5947 = vsel %vm3919, %v5939, %v5885
      %v5948 = vsel %vm3919, %v5940, %v5887
      %v5949 = vsel %vm3919, %v5941, %v5889
      %v5950 = vsel %vm3919, %v5942, %v5891
      %v5951 = vsel %vm3919, %v5943, %v5893
      %v5952 = vsel %vm3919, %v5944, %v5895
      %v5953 = vsel %vm3919, %v5945, %v5897
      %v5954 = vld [vmem:[%s4] sm:$0xff]
      %v5955 = vld [vmem:[%s4 + $0x8] sm:$0xff]
      %v5956 = vld [vmem:[%s4 + $0x10] sm:$0xff]
      %v5957 = vld [vmem:[%s4 + $0x18] sm:$0xff]
      %v5958 = vld [vmem:[%s4 + $0x20] sm:$0xff]
      %v5959 = vld [vmem:[%s4 + $0x28] sm:$0xff]
      %v5960 = vld [vmem:[%s4 + $0x30] sm:$0xff]
      %v5961 = vld [vmem:[%s4 + $0x38] sm:$0xff]
      %v5962 = vld [vmem:[%s4 + $0x40] sm:$0xff]
      %v5963 = vld [vmem:[%s4 + $0x48] sm:$0xff]
      %v5964 = vld [vmem:[%s4 + $0x50] sm:$0xff]
      %v5965 = vld [vmem:[%s4 + $0x58] sm:$0xff]
      %v5966 = vld [vmem:[%s4 + $0x60] sm:$0xff]
      %v5967 = vld [vmem:[%s4 + $0x68] sm:$0xff]
      %v5968 = vld [vmem:[%s4 + $0x70] sm:$0xff]
      %v5969 = vld [vmem:[%s4 + $0x78] sm:$0xff]
      %v5970 = vld [vmem:[%s4 + $0x80] sm:$0xff]
      %v5971 = vld [vmem:[%s4 + $0x88] sm:$0xff]
      %v5972 = vld [vmem:[%s4 + $0x90] sm:$0xff]
      %v5973 = vld [vmem:[%s4 + $0x98] sm:$0xff]
      %v5974 = vld [vmem:[%s4 + $0xa0] sm:$0xff]
      %v5975 = vld [vmem:[%s4 + $0xa8] sm:$0xff]
      %v5976 = vld [vmem:[%s4 + $0xb0] sm:$0xff]
      %v5977 = vld [vmem:[%s4 + $0xb8] sm:$0xff]
      %v5978 = vld [vmem:[%s4 + $0xc0] sm:$0xff]
      %v5979 = vld [vmem:[%s4 + $0xc8] sm:$0xff]
      %v5980 = vld [vmem:[%s4 + $0xd0] sm:$0xff]
      %v5981 = vld [vmem:[%s4 + $0xd8] sm:$0xff]
      %v5982 = vld [vmem:[%s4 + $0xe0] sm:$0xff]
      %v5983 = vld [vmem:[%s4 + $0xe8] sm:$0xff]
      %v5984 = vld [vmem:[%s4 + $0xf0] sm:$0xff]
      %v5985 = vld [vmem:[%s4 + $0xf8] sm:$0xff]
      %v5986 = vld [vmem:[%s4 + $0x100] sm:$0xff]
      %v5987 = vld [vmem:[%s4 + $0x108] sm:$0xff]
      %v5988 = vld [vmem:[%s4 + $0x110] sm:$0xff]
      %v5989 = vld [vmem:[%s4 + $0x118] sm:$0xff]
      %v5991 = vsel %vm524, %v5706, 0
      %v5994 = vsel %vm524, %v5707, 0
      %v5997 = vsel %vm524, %v5708, 0
      %v6000 = vsel %vm524, %v5709, 0
      %v6003 = vsel %vm524, %v5710, 0
      %v6006 = vsel %vm524, %v5711, 0
      %v6009 = vsel %vm524, %v5712, 0
      %v6012 = vsel %vm524, %v5713, 0
      %6014 = vmatprep.subr.mxu0 0.0
      %6015 = vmatpush1.msra.mxu0 %v5954
      %6016 = vmatprep.subr.mxu0 0.0
      %6017 = vmatpush1.msra.mxu0 %v5955
      %6018 = vmatprep.subr.mxu0 0.0
      %6019 = vmatpush1.msra.mxu0 %v5956
      %6020 = vmatprep.subr.mxu0 0.0
      %6021 = vmatpush1.msra.mxu0 %v5957
      %6022 = vmatprep.subr.mxu0 0.0
      %6023 = vmatpush1.msra.mxu0 %v5958
      %6024 = vmatprep.subr.mxu0 0.0
      %6025 = vmatpush1.msra.mxu0 %v5959
      %6026 = vmatprep.subr.mxu0 0.0
      %6027 = vmatpush1.msra.mxu0 %v5960
      %6028 = vmatprep.subr.mxu0 0.0
      %6029 = vmatpush1.msra.mxu0 %v5961
      %6030 = vmatprep.subr.mxu0 0.0
      %6031 = vmatpush1.msra.mxu0 %v5962
      %6032 = vmatprep.subr.mxu0 0.0
      %6033 = vmatpush1.msra.mxu0 %v5963
      %6034 = vmatprep.subr.mxu0 0.0
      %6035 = vmatpush1.msra.mxu0 %v5964
      %6036 = vmatprep.subr.mxu0 0.0
      %6037 = vmatpush1.msra.mxu0 %v5965
      %6038 = vmatprep.subr.mxu0 0.0
      %6039 = vmatpush1.msra.mxu0 %v5966
      %6040 = vmatprep.subr.mxu0 0.0
      %6041 = vmatpush1.msra.mxu0 %v5967
      %6042 = vmatprep.subr.mxu0 0.0
      %6043 = vmatpush1.msra.mxu0 %v5968
      %6044 = vmatprep.subr.mxu0 0.0
      %6045 = vmatpush1.msra.mxu0 %v5969
      %6046 = vmatprep.subr.mxu0 0.0
      %6047 = vmatpush1.msra.mxu0 %v5970
      %6048 = vmatprep.subr.mxu0 0.0
      %6049 = vmatpush1.msra.mxu0 %v5971
      %6050 = vmatprep.subr.mxu0 0.0
      %6051 = vmatpush1.msra.mxu0 %v5972
      %6052 = vmatprep.subr.mxu0 0.0
      %6053 = vmatpush1.msra.mxu0 %v5973
      %6054 = vmatprep.subr.mxu0 0.0
      %6055 = vmatpush1.msra.mxu0 %v5974
      %6056 = vmatprep.subr.mxu0 0.0
      %6057 = vmatpush1.msra.mxu0 %v5975
      %6058 = vmatprep.subr.mxu0 0.0
      %6059 = vmatpush1.msra.mxu0 %v5976
      %6060 = vmatprep.subr.mxu0 0.0
      %6061 = vmatpush1.msra.mxu0 %v5977
      %6062 = vmatprep.subr.mxu0 0.0
      %6063 = vmatpush1.msra.mxu0 %v5978
      %6064 = vmatprep.subr.mxu0 0.0
      %6065 = vmatpush1.msra.mxu0 %v5979
      %6066 = vmatprep.subr.mxu0 0.0
      %6067 = vmatpush1.msra.mxu0 %v5980
      %6068 = vmatprep.subr.mxu0 0.0
      %6069 = vmatpush1.msra.mxu0 %v5981
      %6070 = vmatprep.subr.mxu0 0.0
      %6071 = vmatpush1.msra.mxu0 %v5982
      %6072 = vmatprep.subr.mxu0 0.0
      %6073 = vmatpush1.msra.mxu0 %v5983
      %6074 = vmatprep.subr.mxu0 0.0
      %6075 = vmatpush1.msra.mxu0 %v5984
      %6076 = vmatprep.subr.mxu0 0.0
      %6077 = vmatpush1.msra.mxu0 %v5985
      %6078 = vmatprep.mubr.f32.mxu0 %v5946
      %6079 = vmatmul.mubr.f32.gmra.mrb[0].mxu0 %v5922
      %v6080 = vpop.f32.mrb[0].mxu0
      %v6081 = vadd.f32 0.0, %v6080
      %v6082 = vpop.f32.mrb[0].mxu0
      %6083 = vmatprep.mubr.f32.mxu0 %v5947
      %6084 = vmatmul.mubr.f32.gmra.mrb[0].mxu0 %v5923
      %v6085 = vpop.f32.mrb[0].mxu0
      %v6086 = vadd.f32 0.0, %v6085
      %v6087 = vpop.f32.mrb[0].mxu0
      %6088 = vmatprep.mubr.f32.mxu0 %v5948
      %6089 = vmatmul.mubr.f32.gmra.mrb[0].mxu0 %v5924
      %v6090 = vpop.f32.mrb[0].mxu0
      %v6091 = vadd.f32 0.0, %v6090
      %v6092 = vpop.f32.mrb[0].mxu0
      %6093 = vmatprep.mubr.f32.mxu0 %v5949
      %6094 = vmatmul.mubr.f32.gmra.mrb[0].mxu0 %v5925
      %v6095 = vpop.f32.mrb[0].mxu0
      %v6096 = vadd.f32 0.0, %v6095
      %v6097 = vpop.f32.mrb[0].mxu0
      %6098 = vmatprep.mubr.f32.mxu0 %v5950
      %6099 = vmatmul.mubr.f32.gmra.mrb[0].mxu0 %v5926
      %v6100 = vpop.f32.mrb[0].mxu0
      %v6101 = vadd.f32 0.0, %v6100
      %v6102 = vpop.f32.mrb[0].mxu0
      %6103 = vmatprep.mubr.f32.mxu0 %v5951
      %6104 = vmatmul.mubr.f32.gmra.mrb[0].mxu0 %v5927
      %v6105 = vpop.f32.mrb[0].mxu0
      %v6106 = vadd.f32 0.0, %v6105
      %v6107 = vpop.f32.mrb[0].mxu0
      %6108 = vmatprep.mubr.f32.mxu0 %v5952
      %6109 = vmatmul.mubr.f32.gmra.mrb[0].mxu0 %v5928
      %v6110 = vpop.f32.mrb[0].mxu0
      %v6111 = vadd.f32 0.0, %v6110
      %v6112 = vpop.f32.mrb[0].mxu0
      %6113 = vmatprep.mubr.f32.mxu0 %v5953
      %6114 = vmatmul.mubr.f32.gmra.mrb[0].mxu0 %v5929
      %v6115 = vpop.f32.mrb[0].mxu0
      %v6116 = vadd.f32 0.0, %v6115
      %v6117 = vpop.f32.mrb[0].mxu0
      %6118 = vdwg.mxu0
      %6119 = vmatprep.subr.mxu0 0.0
      %6120 = vmatpush1.msra.mxu0 %v5986
      %6121 = vmatprep.subr.mxu0 0.0
      %6122 = vmatpush1.msra.mxu0 %v5987
      %6123 = vmatprep.subr.mxu0 0.0
      %6124 = vmatpush1.msra.mxu0 %v5988
      %6125 = vmatprep.subr.mxu0 0.0
      %6126 = vmatpush1.msra.mxu0 %v5989
      %6127 = vmatprep.subr.mxu0 0.0
      %6128 = vmatpush1.msra.mxu0 0.0
      %6129 = vmatprep.subr.mxu0 0.0
      %6130 = vmatpush1.msra.mxu0 0.0
      %6131 = vmatprep.subr.mxu0 0.0
      %6132 = vmatpush1.msra.mxu0 0.0
      %6133 = vmatprep.subr.mxu0 0.0
      %6134 = vmatpush1.msra.mxu0 0.0
      %6135 = vmatprep.subr.mxu0 0.0
      %6136 = vmatpush1.msra.mxu0 0.0
      %6137 = vmatprep.subr.mxu0 0.0
      %6138 = vmatpush1.msra.mxu0 0.0
      %6139 = vmatprep.subr.mxu0 0.0
      %6140 = vmatpush1.msra.mxu0 0.0
      %6141 = vmatprep.subr.mxu0 0.0
      %6142 = vmatpush1.msra.mxu0 0.0
      %6143 = vmatprep.subr.mxu0 0.0
      %6144 = vmatpush1.msra.mxu0 0.0
      %6145 = vmatprep.subr.mxu0 0.0
      %6146 = vmatpush1.msra.mxu0 0.0
      %6147 = vmatprep.subr.mxu0 0.0
      %6148 = vmatpush1.msra.mxu0 0.0
      %6149 = vmatprep.subr.mxu0 0.0
      %6150 = vmatpush1.msra.mxu0 0.0
      %6151 = vmatprep.subr.mxu0 0.0
      %6152 = vmatpush1.msra.mxu0 0.0
      %6153 = vmatprep.subr.mxu0 0.0
      %6154 = vmatpush1.msra.mxu0 0.0
      %6155 = vmatprep.subr.mxu0 0.0
      %6156 = vmatpush1.msra.mxu0 0.0
      %6157 = vmatprep.subr.mxu0 0.0
      %6158 = vmatpush1.msra.mxu0 0.0
      %6159 = vmatprep.subr.mxu0 0.0
      %6160 = vmatpush1.msra.mxu0 0.0
      %6161 = vmatprep.subr.mxu0 0.0
      %6162 = vmatpush1.msra.mxu0 0.0
      %6163 = vmatprep.subr.mxu0 0.0
      %6164 = vmatpush1.msra.mxu0 0.0
      %6165 = vmatprep.subr.mxu0 0.0
      %6166 = vmatpush1.msra.mxu0 0.0
      %6167 = vmatprep.subr.mxu0 0.0
      %6168 = vmatpush1.msra.mxu0 0.0
      %6169 = vmatprep.subr.mxu0 0.0
      %6170 = vmatpush1.msra.mxu0 0.0
      %6171 = vmatprep.subr.mxu0 0.0
      %6172 = vmatpush1.msra.mxu0 0.0
      %6173 = vmatprep.subr.mxu0 0.0
      %6174 = vmatpush1.msra.mxu0 0.0
      %6175 = vmatprep.subr.mxu0 0.0
      %6176 = vmatpush1.msra.mxu0 0.0
      %6177 = vmatprep.subr.mxu0 0.0
      %6178 = vmatpush1.msra.mxu0 0.0
      %6179 = vmatprep.subr.mxu0 0.0
      %6180 = vmatpush1.msra.mxu0 0.0
      %6181 = vmatprep.subr.mxu0 0.0
      %6182 = vmatpush1.msra.mxu0 0.0
      %6183 = vmatprep.mubr.f32.mxu0 0.0
      %6184 = vmatmul.mubr.f32.gmra.mrb[0].mxu0 %v5991
      %v6185 = vpop.f32.mrb[0].mxu0
      %v6186 = vadd.f32 %v6081, %v6185
      %v6187 = vpop.f32.mrb[0].mxu0
      %6188 = vmatprep.mubr.f32.mxu0 0.0
      %6189 = vmatmul.mubr.f32.gmra.mrb[0].mxu0 %v5994
      %v6190 = vpop.f32.mrb[0].mxu0
      %v6191 = vadd.f32 %v6086, %v6190
      %v6192 = vpop.f32.mrb[0].mxu0
      %6193 = vmatprep.mubr.f32.mxu0 0.0
      %6194 = vmatmul.mubr.f32.gmra.mrb[0].mxu0 %v5997
      %v6195 = vpop.f32.mrb[0].mxu0
      %v6196 = vadd.f32 %v6091, %v6195
      %v6197 = vpop.f32.mrb[0].mxu0
      %6198 = vmatprep.mubr.f32.mxu0 0.0
      %6199 = vmatmul.mubr.f32.gmra.mrb[0].mxu0 %v6000
      %v6200 = vpop.f32.mrb[0].mxu0
      %v6201 = vadd.f32 %v6096, %v6200
      %v6202 = vpop.f32.mrb[0].mxu0
      %6203 = vmatprep.mubr.f32.mxu0 0.0
      %6204 = vmatmul.mubr.f32.gmra.mrb[0].mxu0 %v6003
      %v6205 = vpop.f32.mrb[0].mxu0
      %v6206 = vadd.f32 %v6101, %v6205
      %v6207 = vpop.f32.mrb[0].mxu0
      %6208 = vmatprep.mubr.f32.mxu0 0.0
      %6209 = vmatmul.mubr.f32.gmra.mrb[0].mxu0 %v6006
      %v6210 = vpop.f32.mrb[0].mxu0
      %v6211 = vadd.f32 %v6106, %v6210
      %v6212 = vpop.f32.mrb[0].mxu0
      %6213 = vmatprep.mubr.f32.mxu0 0.0
      %6214 = vmatmul.mubr.f32.gmra.mrb[0].mxu0 %v6009
      %v6215 = vpop.f32.mrb[0].mxu0
      %v6216 = vadd.f32 %v6111, %v6215
      %v6217 = vpop.f32.mrb[0].mxu0
      %6218 = vmatprep.mubr.f32.mxu0 0.0
      %6219 = vmatmul.mubr.f32.gmra.mrb[0].mxu0 %v6012
      %v6220 = vpop.f32.mrb[0].mxu0
      %v6221 = vadd.f32 %v6116, %v6220
      %v6222 = vpop.f32.mrb[0].mxu0
      %6223 = vdwg.mxu0
      %v6224 = vld [vmem:[%s11] sm:$0x1]
      %v6226 = vlaneseq
      %v6227 = vshrl.u32 %v6226, 7
      %v6228 = vsub.s32 0, %v6227
      %v6229 = vrot.slane %v6224, %v6228
      %v6231 = vmul.f32 %v6186, %v6229
      %v6232 = vmul.f32 %v6191, %v6229
      %v6233 = vmul.f32 %v6196, %v6229
      %v6234 = vmul.f32 %v6201, %v6229
      %v6235 = vmul.f32 %v6206, %v6229
      %v6236 = vmul.f32 %v6211, %v6229
      %v6237 = vmul.f32 %v6216, %v6229
      %v6238 = vmul.f32 %v6221, %v6229
      %v6239 = vld [vmem:[%s12] sm:$0x1]
      %v6241 = vlaneseq
      %v6242 = vshrl.u32 %v6241, 7
      %v6243 = vsub.s32 0, %v6242
      %v6244 = vrot.slane %v6239, %v6243
      %v6246 = vadd.f32 %v6231, %v6244
      %v6247 = vadd.f32 %v6232, %v6244
      %v6248 = vadd.f32 %v6233, %v6244
      %v6249 = vadd.f32 %v6234, %v6244
      %v6250 = vadd.f32 %v6235, %v6244
      %v6251 = vadd.f32 %v6236, %v6244
      %v6252 = vadd.f32 %v6237, %v6244
      %v6253 = vadd.f32 %v6238, %v6244
      %6254 = vst.msk [vmem:[%s467] sm:$0xff] %vm2230, %v6246
      %6255 = vst.msk [vmem:[%s467 + $0x8] sm:$0xff] %vm2230, %v6247
      %6256 = vst.msk [vmem:[%s467 + $0x10] sm:$0xff] %vm2230, %v6248
      %6257 = vst.msk [vmem:[%s467 + $0x18] sm:$0xff] %vm2230, %v6249
      %6258 = vst.msk [vmem:[%s467 + $0x20] sm:$0xff] %vm2230, %v6250
      %6259 = vst.msk [vmem:[%s467 + $0x28] sm:$0xff] %vm2230, %v6251
      %6260 = vst.msk [vmem:[%s467 + $0x30] sm:$0xff] %vm2230, %v6252
      %6261 = vst.msk [vmem:[%s467 + $0x38] sm:$0xff] %vm2230, %v6253
      %p6262 = scmp.lt.s32.totalorder %s25, 1
      %s6263 = scalar_select %p6262, %s25, 1
      %s6264 = smul.addr %s6263, 8
      %s6265 = smul.addr %s6264, 8
      %s6266 = scalar_lea.vmem %s14, %s6265
      // Predicated region
      $region77: #{conv_forward.1} parent=75 // pred_check
        %p6267 = pneg %p342
      $region78: #{conv_forward.1} parent=75 // pred_check_branch
        %6269 = sbr.rel (%p6267) target = $region80
      $region79: #{conv_forward.1} parent=75 // pred_region
        _
      $region80: #{conv_forward.1} parent=75 // pred_fallthru
        _
    $region76: #{conv_forward.1} parent=5 // pred_fallthru
      _
    %p6270 = scmp.le.s32.totalorder 2, %s20
    // Predicated region
    $region81: #{conv_forward.1} parent=5 // pred_check
      %p6271 = pneg %p6270
    $region82: #{conv_forward.1} parent=5 // pred_check_branch
      %6273 = sbr.rel (%p6271) target = $region84
    $region83: #{conv_forward.1} parent=5 // pred_region
      %s6274 = ssub.s32 %s20, 2
      // Predicated region
      $region85: #{conv_forward.1} parent=83 // pred_check
        %p6275 = pneg %p348
      $region86: #{conv_forward.1} parent=83 // pred_check_branch
        %6277 = sbr.rel (%p6275) target = $region88
      $region87: #{conv_forward.1} parent=83 // pred_region
        %p6278 = scmp.lt.s32.totalorder %s26, 1
        %s6279 = scalar_select %p6278, %s26, 1
        %s6280 = smul.addr %s6279, 8
        %s6281 = smul.addr %s6280, 8
        %s6282 = scalar_lea.vmem %s14, %s6281
      $region88: #{conv_forward.1} parent=83 // pred_fallthru
        _
    $region84: #{conv_forward.1} parent=5 // pred_fallthru
      _
  $region6: #{conv_forward.1} parent=0 // loop_footer
    %s24 = sadd.s32 1, %s20
  $region7: #{conv_forward.1} parent=0 // loop_footer_branch
    %19 = sbr.rel target = $region3
  $region8: #{conv_forward.1} parent=0 // loop_exit
    _

</llo_original>
